<compile_context>
chip_gen: v6e
topology: v6e:2x2x1
jax: 0.10.0
libtpu: 0.0.40
codegen_flags: <defaults>
</compile_context>

<pallas_src>
import functools

import jax
import jax.numpy as jnp
from jax.experimental import pallas as pl
from jax.experimental.pallas import tpu as pltpu

# ----------------------- synthetic model config (small) -----------------------
VOCAB = 100
HIDDEN = 32
NUM_HEADS = 2
HEAD_DIM = HIDDEN // NUM_HEADS
FFN = 4 * HIDDEN
NUM_LAYERS = 2
NUM_EMOTIONS = 6
SEQ = 8
BATCH = 2
LN_EPS = 1e-7
OUT_PAD = 128  # lane-dense packed head output: [emotion_logits | sentiment | zeros]


# ------------------------------ fused Pallas kernel ----------------------------
def fused_forward_kernel(
    x_ref,        # (1, S, H)   token+pos embeddings for one sequence (pre embedding-LN)
    kmask_ref,    # (1, 1, S)   additive key mask (0 keep / -1e9 drop)
    eg_ref, eb_ref,                       # embedding LN gamma/beta  (1, H)
    wqkv_ref, bqkv_ref,                   # (L, H, 3H), (L, 1, 3H)   (Q scale folded in)
    wo_ref, bo_ref,                       # (L, H, H), (L, 1, H)
    ln1g_ref, ln1b_ref,                   # (L, 1, H)
    w1_ref, b1_ref,                       # (L, H, F), (L, 1, F)
    w2_ref, b2_ref,                       # (L, F, H), (L, 1, H)
    ln2g_ref, ln2b_ref,                   # (L, 1, H)
    wh_ref, bh_ref,                       # (H, OUT_PAD), (1, OUT_PAD)
    out_ref,                              # (1, 1, OUT_PAD)
):
    S = x_ref.shape[1]
    H = x_ref.shape[2]

    def layernorm(v, g, b):
        # Single-pass stats: var = E[x^2] - mu^2 (one reduce chain instead of two).
        mu = jnp.mean(v, axis=-1, keepdims=True)
        mu2 = jnp.mean(v * v, axis=-1, keepdims=True)
        var = mu2 - mu * mu
        return (v - mu) * jax.lax.rsqrt(var + LN_EPS) * g + b

    def split_heads(t):  # (S, H) -> (NH, S, HD)
        return jnp.transpose(t.reshape(S, NUM_HEADS, HEAD_DIM), (1, 0, 2))

    # Embedding LayerNorm; residual stream stays resident in vregs/VMEM from here on.
    x = layernorm(x_ref[0], eg_ref[...], eb_ref[...])          # (S, H)
    kmask = kmask_ref[0]                                        # (1, S) additive

    for l in range(NUM_LAYERS):                                 # static unroll (L=2)
        # ---- fused QKV projection: one (S,H)@(H,3H) matmul ----
        qkv = jnp.dot(x, wqkv_ref[l],
                      preferred_element_type=jnp.float32) + bqkv_ref[l]   # (S, 3H)
        q = split_heads(qkv[:, :HIDDEN])                                  # (NH, S, HD)
        k = split_heads(qkv[:, HIDDEN:2 * HIDDEN])
        v = split_heads(qkv[:, 2 * HIDDEN:])

        # ---- scaled-dot-product attention (scale already folded into Wq) ----
        s = jnp.einsum('hqd,hkd->hqk', q, k,
                       preferred_element_type=jnp.float32)                # (NH, S, S)
        s = s + kmask                                                     # key padding mask
        s = s - jnp.max(s, axis=-1, keepdims=True)
        p = jnp.exp(s)
        denom = jnp.sum(p, axis=-1, keepdims=True)
        p = p * pl.reciprocal(denom, approx=True)                         # EUP vrcp
        ctx = jnp.einsum('hqk,hkd->hqd', p, v,
                         preferred_element_type=jnp.float32)              # (NH, S, HD)

        # Concat heads back to (S, H); head-sum folded into the single Wo matmul.
        ctx = jnp.transpose(ctx, (1, 0, 2)).reshape(S, H)                 # (S, H)
        attn = jnp.dot(ctx, wo_ref[l],
                       preferred_element_type=jnp.float32) + bo_ref[l]    # (S, H)

        # ---- residual + LN1, FFN, residual + LN2 ----
        y = layernorm(x + attn, ln1g_ref[l], ln1b_ref[l])
        # NOTE: PyTorch nn.GELU / DeBERTa use exact erf GELU; tanh approx kept here.
        h1 = jax.nn.gelu(jnp.dot(y, w1_ref[l],
                                 preferred_element_type=jnp.float32) + b1_ref[l])
        h2 = jnp.dot(h1, w2_ref[l], preferred_element_type=jnp.float32) + b2_ref[l]
        x = layernorm(y + h2, ln2g_ref[l], ln2b_ref[l])

    # CLS pooling = row 0 of this sequence block; both heads fused into one
    # lane-dense (1, OUT_PAD) output row.
    pooled = x[0:1, :]                                                    # (1, H)
    out_ref[0] = jnp.dot(pooled, wh_ref[...],
                         preferred_element_type=jnp.float32) + bh_ref[...]


# --------------------------- parameter construction ----------------------------
def _linear(key, din, dout, std=0.02):
    return jax.random.normal(key, (din, dout), jnp.float32) * std


def init_params(key):
    keys = jax.random.split(key, 4 + NUM_LAYERS)
    layers = []
    for i in range(NUM_LAYERS):
        ks = jax.random.split(keys[4 + i], 6)
        layers.append(dict(
            wq=_linear(ks[0], HIDDEN, HIDDEN), bq=jnp.zeros((1, HIDDEN), jnp.float32),
            wk=_linear(ks[1], HIDDEN, HIDDEN), bk=jnp.zeros((1, HIDDEN), jnp.float32),
            wv=_linear(ks[2], HIDDEN, HIDDEN), bv=jnp.zeros((1, HIDDEN), jnp.float32),
            wo=_linear(ks[3], HIDDEN, HIDDEN), bo=jnp.zeros((1, HIDDEN), jnp.float32),
            ln1_g=jnp.ones((1, HIDDEN), jnp.float32), ln1_b=jnp.zeros((1, HIDDEN), jnp.float32),
            w1=_linear(ks[4], HIDDEN, FFN), b1=jnp.zeros((1, FFN), jnp.float32),
            w2=_linear(ks[5], FFN, HIDDEN), b2=jnp.zeros((1, HIDDEN), jnp.float32),
            ln2_g=jnp.ones((1, HIDDEN), jnp.float32), ln2_b=jnp.zeros((1, HIDDEN), jnp.float32),
        ))
    return dict(
        tok_emb=jax.random.normal(keys[0], (VOCAB, HIDDEN), jnp.float32) * 0.02,
        pos_emb=jax.random.normal(keys[1], (SEQ, HIDDEN), jnp.float32) * 0.02,
        emb_ln_g=jnp.ones((1, HIDDEN), jnp.float32),
        emb_ln_b=jnp.zeros((1, HIDDEN), jnp.float32),
        layers=layers,
        We=_linear(keys[2], HIDDEN, NUM_EMOTIONS), be=jnp.zeros((1, NUM_EMOTIONS), jnp.float32),
        Ws=_linear(keys[3], HIDDEN, 1), bs=jnp.zeros((1, 1), jnp.float32),
    )


def pack_params(params):
    """Re-lay out weights into the fused kernel's layer-stacked, QKV-fused form."""
    scale = 1.0 / (HEAD_DIM ** 0.5)
    L = params["layers"]
    stack = lambda k: jnp.stack([layer[k] for layer in L])

    wq = stack("wq") * scale          # fold 1/sqrt(HEAD_DIM) into the Q projection
    bq = stack("bq") * scale
    wqkv = jnp.concatenate([wq, stack("wk"), stack("wv")], axis=-1)   # (L, H, 3H)
    bqkv = jnp.concatenate([bq, stack("bk"), stack("bv")], axis=-1)   # (L, 1, 3H)

    wo = stack("wo"); bo = stack("bo")
    ln1g = stack("ln1_g"); ln1b = stack("ln1_b")
    w1 = stack("w1"); b1 = stack("b1")
    w2 = stack("w2"); b2 = stack("b2")
    ln2g = stack("ln2_g"); ln2b = stack("ln2_b")

    # Fused, lane-dense task-head weights: cols [0:6]=emotion, col 6=sentiment, rest 0.
    wh = jnp.zeros((HIDDEN, OUT_PAD), jnp.float32)
    wh = wh.at[:, :NUM_EMOTIONS].set(params["We"]).at[:, NUM_EMOTIONS].set(params["Ws"][:, 0])
    bh = jnp.zeros((1, OUT_PAD), jnp.float32)
    bh = bh.at[:, :NUM_EMOTIONS].set(params["be"]).at[:, NUM_EMOTIONS].set(params["bs"][:, 0])

    return (params["emb_ln_g"], params["emb_ln_b"],
            wqkv, bqkv, wo, bo, ln1g, ln1b,
            w1, b1, w2, b2, ln2g, ln2b, wh, bh)


# --------------------------------- forward -------------------------------------
def forward(params, input_ids, attention_mask=None):
    B, S = input_ids.shape
    if attention_mask is None:
        attention_mask = jnp.ones((B, S), jnp.float32)
    attention_mask = attention_mask.astype(jnp.float32)

    # Glue: embedding gather + O(S) additive key mask per sequence.
    emb = params["tok_emb"][input_ids] + params["pos_emb"][None, :S, :]    # (B, S, H)
    key_mask_add = jnp.where(attention_mask > 0.5, 0.0, -1e9)
    key_mask_add = key_mask_add.astype(jnp.float32).reshape(B, 1, S)       # (B, 1, S)

    packed = pack_params(params)

    act_specs = [
        pl.BlockSpec((1, S, HIDDEN), lambda b: (b, 0, 0)),      # embeddings, one sequence
        pl.BlockSpec((1, 1, S), lambda b: (b, 0, 0)),           # key mask, one sequence
    ]
    weight_specs = [
        pl.BlockSpec(w.shape, (lambda b, _n=w.ndim: (0,) * _n)) for w in packed
    ]

    out = pl.pallas_call(
        fused_forward_kernel,
        out_shape=jax.ShapeDtypeStruct((B, 1, OUT_PAD), jnp.float32),
        grid_spec=pltpu.PrefetchScalarGridSpec(
            num_scalar_prefetch=0,
            grid=(B,),
            in_specs=act_specs + weight_specs,
            out_specs=pl.BlockSpec((1, 1, OUT_PAD), lambda b: (b, 0, 0)),
        ),
        compiler_params=pltpu.CompilerParams(
            dimension_semantics=("parallel",)),
    )(emb, key_mask_add, *packed)

    out = out.reshape(B, OUT_PAD)
    classification_logits = out[:, :NUM_EMOTIONS]
    sentiment_output = out[:, NUM_EMOTIONS]
    return classification_logits, sentiment_output


# ----------------------------------- main ---------------------------------------
if __name__ == "__main__":
    key = jax.random.PRNGKey(0)
    pkey, ikey = jax.random.split(key)

    params = init_params(pkey)
    input_ids = jax.random.randint(ikey, (BATCH, SEQ), 0, VOCAB, dtype=jnp.int32)
    attention_mask = jnp.ones((BATCH, SEQ), jnp.float32)

    fwd = jax.jit(functools.partial(forward, params))
    classification_logits, sentiment_output = fwd(input_ids, attention_mask)
    jax.block_until_ready((classification_logits, sentiment_output))

    assert classification_logits.shape == (BATCH, NUM_EMOTIONS)
    assert sentiment_output.shape == (BATCH,)
    print("KERNEL_OK")
</pallas_src>

<mosaic_0001>
module attributes {stable_mosaic.version = 11 : i64} {
  func.func @fused_forward_kernel(%arg0: i32, %arg1: memref<1x8x32xf32, #tpu.memory_space<vmem>>, %arg2: memref<1x1x8xf32, #tpu.memory_space<vmem>>, %arg3: memref<1x32xf32, #tpu.memory_space<vmem>>, %arg4: memref<1x32xf32, #tpu.memory_space<vmem>>, %arg5: memref<2x32x96xf32, #tpu.memory_space<vmem>>, %arg6: memref<2x1x96xf32, #tpu.memory_space<vmem>>, %arg7: memref<2x32x32xf32, #tpu.memory_space<vmem>>, %arg8: memref<2x1x32xf32, #tpu.memory_space<vmem>>, %arg9: memref<2x1x32xf32, #tpu.memory_space<vmem>>, %arg10: memref<2x1x32xf32, #tpu.memory_space<vmem>>, %arg11: memref<2x32x128xf32, #tpu.memory_space<vmem>>, %arg12: memref<2x1x128xf32, #tpu.memory_space<vmem>>, %arg13: memref<2x128x32xf32, #tpu.memory_space<vmem>>, %arg14: memref<2x1x32xf32, #tpu.memory_space<vmem>>, %arg15: memref<2x1x32xf32, #tpu.memory_space<vmem>>, %arg16: memref<2x1x32xf32, #tpu.memory_space<vmem>>, %arg17: memref<32x128xf32, #tpu.memory_space<vmem>>, %arg18: memref<1x128xf32, #tpu.memory_space<vmem>>, %arg19: memref<1x1x128xf32, #tpu.memory_space<vmem>>) attributes {dimension_semantics = [#tpu.dimension_semantics<parallel>], iteration_bounds = array<i64: 2>, scalar_prefetch = 0 : i64, scratch_operands = 0 : i64, tpu.core_type = #tpu.core_type<tc>, window_params = [{transform_indices = @transform_0, window_bounds = array<i64: 1, 8, 32>}, {transform_indices = @transform_1, window_bounds = array<i64: 1, 1, 8>}, {pipeline_mode = #tpu.pipeline_mode<synchronous>, transform_indices = @transform_2, window_bounds = array<i64: 1, 32>}, {pipeline_mode = #tpu.pipeline_mode<synchronous>, transform_indices = @transform_3, window_bounds = array<i64: 1, 32>}, {pipeline_mode = #tpu.pipeline_mode<synchronous>, transform_indices = @transform_4, window_bounds = array<i64: 2, 32, 96>}, {pipeline_mode = #tpu.pipeline_mode<synchronous>, transform_indices = @transform_5, window_bounds = array<i64: 2, 1, 96>}, {pipeline_mode = #tpu.pipeline_mode<synchronous>, transform_indices = @transform_6, window_bounds = array<i64: 2, 32, 32>}, {pipeline_mode = #tpu.pipeline_mode<synchronous>, transform_indices = @transform_7, window_bounds = array<i64: 2, 1, 32>}, {pipeline_mode = #tpu.pipeline_mode<synchronous>, transform_indices = @transform_8, window_bounds = array<i64: 2, 1, 32>}, {pipeline_mode = #tpu.pipeline_mode<synchronous>, transform_indices = @transform_9, window_bounds = array<i64: 2, 1, 32>}, {pipeline_mode = #tpu.pipeline_mode<synchronous>, transform_indices = @transform_10, window_bounds = array<i64: 2, 32, 128>}, {pipeline_mode = #tpu.pipeline_mode<synchronous>, transform_indices = @transform_11, window_bounds = array<i64: 2, 1, 128>}, {pipeline_mode = #tpu.pipeline_mode<synchronous>, transform_indices = @transform_12, window_bounds = array<i64: 2, 128, 32>}, {pipeline_mode = #tpu.pipeline_mode<synchronous>, transform_indices = @transform_13, window_bounds = array<i64: 2, 1, 32>}, {pipeline_mode = #tpu.pipeline_mode<synchronous>, transform_indices = @transform_14, window_bounds = array<i64: 2, 1, 32>}, {pipeline_mode = #tpu.pipeline_mode<synchronous>, transform_indices = @transform_15, window_bounds = array<i64: 2, 1, 32>}, {pipeline_mode = #tpu.pipeline_mode<synchronous>, transform_indices = @transform_16, window_bounds = array<i64: 32, 128>}, {pipeline_mode = #tpu.pipeline_mode<synchronous>, transform_indices = @transform_17, window_bounds = array<i64: 1, 128>}, {transform_indices = @transform_18, window_bounds = array<i64: 1, 1, 128>}]} {
    %c0 = arith.constant 0 : index
    %c0_0 = arith.constant 0 : index
    %c0_1 = arith.constant 0 : index
    %0 = vector.load %arg1[%c0, %c0_0, %c0_1] : memref<1x8x32xf32, #tpu.memory_space<vmem>>, vector<1x8x32xf32>
    %1 = vector.shape_cast %0 : vector<1x8x32xf32> to vector<8x32xf32>
    %c0_2 = arith.constant 0 : index
    %c0_3 = arith.constant 0 : index
    %2 = vector.load %arg3[%c0_2, %c0_3] : memref<1x32xf32, #tpu.memory_space<vmem>>, vector<1x32xf32>
    %c0_4 = arith.constant 0 : index
    %c0_5 = arith.constant 0 : index
    %3 = vector.load %arg4[%c0_4, %c0_5] : memref<1x32xf32, #tpu.memory_space<vmem>>, vector<1x32xf32>
    %cst = arith.constant dense<0.000000e+00> : vector<8xf32>
    %4 = vector.multi_reduction <add>, %1, %cst [1] : vector<8x32xf32> to vector<8xf32>
    %5 = vector.shape_cast %4 : vector<8xf32> to vector<8x1xf32>
    %cst_6 = arith.constant 3.200000e+01 : f32
    %6 = vector.broadcast %cst_6 : f32 to vector<8x1xf32>
    %7 = arith.divf %5, %6 : vector<8x1xf32>
    %8 = arith.mulf %1, %1 : vector<8x32xf32>
    %cst_7 = arith.constant dense<0.000000e+00> : vector<8xf32>
    %9 = vector.multi_reduction <add>, %8, %cst_7 [1] : vector<8x32xf32> to vector<8xf32>
    %10 = vector.shape_cast %9 : vector<8xf32> to vector<8x1xf32>
    %cst_8 = arith.constant 3.200000e+01 : f32
    %11 = vector.broadcast %cst_8 : f32 to vector<8x1xf32>
    %12 = arith.divf %10, %11 : vector<8x1xf32>
    %13 = arith.mulf %7, %7 : vector<8x1xf32>
    %14 = arith.subf %12, %13 : vector<8x1xf32>
    %15 = vector.broadcast %7 : vector<8x1xf32> to vector<8x32xf32>
    %16 = arith.subf %1, %15 : vector<8x32xf32>
    %cst_9 = arith.constant 1.000000e-07 : f32
    %17 = vector.broadcast %cst_9 : f32 to vector<8x1xf32>
    %18 = arith.addf %14, %17 : vector<8x1xf32>
    %19 = math.rsqrt %18 : vector<8x1xf32>
    %20 = vector.broadcast %19 : vector<8x1xf32> to vector<8x32xf32>
    %21 = arith.mulf %16, %20 : vector<8x32xf32>
    %22 = vector.broadcast %2 : vector<1x32xf32> to vector<8x32xf32>
    %23 = arith.mulf %21, %22 : vector<8x32xf32>
    %24 = vector.broadcast %3 : vector<1x32xf32> to vector<8x32xf32>
    %25 = arith.addf %23, %24 : vector<8x32xf32>
    %c0_10 = arith.constant 0 : index
    %c0_11 = arith.constant 0 : index
    %c0_12 = arith.constant 0 : index
    %26 = vector.load %arg2[%c0_10, %c0_11, %c0_12] : memref<1x1x8xf32, #tpu.memory_space<vmem>>, vector<1x1x8xf32>
    %27 = vector.shape_cast %26 : vector<1x1x8xf32> to vector<1x8xf32>
    %c0_13 = arith.constant 0 : index
    %c0_14 = arith.constant 0 : index
    %c0_15 = arith.constant 0 : index
    %28 = vector.load %arg5[%c0_13, %c0_14, %c0_15] : memref<2x32x96xf32, #tpu.memory_space<vmem>>, vector<1x32x96xf32>
    %29 = vector.shape_cast %28 : vector<1x32x96xf32> to vector<32x96xf32>
    %cst_16 = arith.constant dense<0.000000e+00> : vector<8x96xf32>
    %30 = tpu.matmul %25, %29, %cst_16 {dimension_numbers = #tpu.dot_dimension_numbers<[1], [0], [0], [1], [0, 0, 1, 1], [], []>} : vector<8x32xf32>, vector<32x96xf32>, vector<8x96xf32> -> vector<8x96xf32>
    %c0_17 = arith.constant 0 : index
    %c0_18 = arith.constant 0 : index
    %c0_19 = arith.constant 0 : index
    %31 = vector.load %arg6[%c0_17, %c0_18, %c0_19] : memref<2x1x96xf32, #tpu.memory_space<vmem>>, vector<1x1x96xf32>
    %32 = vector.shape_cast %31 : vector<1x1x96xf32> to vector<1x96xf32>
    %33 = vector.broadcast %32 : vector<1x96xf32> to vector<8x96xf32>
    %34 = arith.addf %30, %33 : vector<8x96xf32>
    %35 = vector.extract_strided_slice %34 {offsets = [0, 0], sizes = [8, 32], strides = [1, 1]} : vector<8x96xf32> to vector<8x32xf32>
    %36 = vector.shape_cast %35 : vector<8x32xf32> to vector<8x2x16xf32>
    %37 = tpu.transpose %36, [1, 0, 2] : vector<8x2x16xf32> -> vector<2x8x16xf32>
    %38 = vector.extract_strided_slice %34 {offsets = [0, 32], sizes = [8, 32], strides = [1, 1]} : vector<8x96xf32> to vector<8x32xf32>
    %39 = vector.shape_cast %38 : vector<8x32xf32> to vector<8x2x16xf32>
    %40 = tpu.transpose %39, [1, 0, 2] : vector<8x2x16xf32> -> vector<2x8x16xf32>
    %41 = vector.extract_strided_slice %34 {offsets = [0, 64], sizes = [8, 32], strides = [1, 1]} : vector<8x96xf32> to vector<8x32xf32>
    %42 = vector.shape_cast %41 : vector<8x32xf32> to vector<8x2x16xf32>
    %43 = tpu.transpose %42, [1, 0, 2] : vector<8x2x16xf32> -> vector<2x8x16xf32>
    "tpu.trace_start"() <{level = 10 : i32, message = "hqd,hkd->hqk"}> : () -> ()
    %cst_20 = arith.constant dense<0.000000e+00> : vector<2x8x8xf32>
    %44 = tpu.matmul %37, %40, %cst_20 {dimension_numbers = #tpu.dot_dimension_numbers<[2], [2], [1], [1], [0, 0, 0, 1, 1, 1], [0], [0]>} : vector<2x8x16xf32>, vector<2x8x16xf32>, vector<2x8x8xf32> -> vector<2x8x8xf32>
    "tpu.trace_stop"() : () -> ()
    %45 = vector.shape_cast %27 : vector<1x8xf32> to vector<1x1x8xf32>
    %46 = vector.broadcast %45 : vector<1x1x8xf32> to vector<2x8x8xf32>
    %47 = arith.addf %44, %46 : vector<2x8x8xf32>
    %cst_21 = arith.constant dense<0xFF800000> : vector<2x8xf32>
    %48 = vector.multi_reduction <maximumf>, %47, %cst_21 [2] : vector<2x8x8xf32> to vector<2x8xf32>
    %49 = vector.shape_cast %48 : vector<2x8xf32> to vector<2x8x1xf32>
    %50 = vector.broadcast %49 : vector<2x8x1xf32> to vector<2x8x8xf32>
    %51 = arith.subf %47, %50 : vector<2x8x8xf32>
    %52 = math.exp %51 : vector<2x8x8xf32>
    %cst_22 = arith.constant dense<0.000000e+00> : vector<2x8xf32>
    %53 = vector.multi_reduction <add>, %52, %cst_22 [2] : vector<2x8x8xf32> to vector<2x8xf32>
    %54 = vector.shape_cast %53 : vector<2x8xf32> to vector<2x8x1xf32>
    %55 = tpu.reciprocal %54 {approx = true} : vector<2x8x1xf32> -> vector<2x8x1xf32>
    %56 = vector.broadcast %55 : vector<2x8x1xf32> to vector<2x8x8xf32>
    %57 = arith.mulf %52, %56 : vector<2x8x8xf32>
    "tpu.trace_start"() <{level = 10 : i32, message = "hqk,hkd->hqd"}> : () -> ()
    %cst_23 = arith.constant dense<0.000000e+00> : vector<2x8x16xf32>
    %58 = tpu.matmul %57, %43, %cst_23 {dimension_numbers = #tpu.dot_dimension_numbers<[2], [1], [1], [2], [0, 0, 0, 1, 1, 2], [0], [0]>} : vector<2x8x8xf32>, vector<2x8x16xf32>, vector<2x8x16xf32> -> vector<2x8x16xf32>
    "tpu.trace_stop"() : () -> ()
    %59 = tpu.transpose %58, [1, 0, 2] : vector<2x8x16xf32> -> vector<8x2x16xf32>
    %60 = vector.shape_cast %59 : vector<8x2x16xf32> to vector<8x32xf32>
    %c0_24 = arith.constant 0 : index
    %c0_25 = arith.constant 0 : index
    %c0_26 = arith.constant 0 : index
    %61 = vector.load %arg7[%c0_24, %c0_25, %c0_26] : memref<2x32x32xf32, #tpu.memory_space<vmem>>, vector<1x32x32xf32>
    %62 = vector.shape_cast %61 : vector<1x32x32xf32> to vector<32x32xf32>
    %cst_27 = arith.constant dense<0.000000e+00> : vector<8x32xf32>
    %63 = tpu.matmul %60, %62, %cst_27 {dimension_numbers = #tpu.dot_dimension_numbers<[1], [0], [0], [1], [0, 0, 1, 1], [], []>} : vector<8x32xf32>, vector<32x32xf32>, vector<8x32xf32> -> vector<8x32xf32>
    %c0_28 = arith.constant 0 : index
    %c0_29 = arith.constant 0 : index
    %c0_30 = arith.constant 0 : index
    %64 = vector.load %arg8[%c0_28, %c0_29, %c0_30] : memref<2x1x32xf32, #tpu.memory_space<vmem>>, vector<1x1x32xf32>
    %65 = vector.shape_cast %64 : vector<1x1x32xf32> to vector<1x32xf32>
    %66 = vector.broadcast %65 : vector<1x32xf32> to vector<8x32xf32>
    %67 = arith.addf %63, %66 : vector<8x32xf32>
    %68 = arith.addf %25, %67 : vector<8x32xf32>
    %c0_31 = arith.constant 0 : index
    %c0_32 = arith.constant 0 : index
    %c0_33 = arith.constant 0 : index
    %69 = vector.load %arg9[%c0_31, %c0_32, %c0_33] : memref<2x1x32xf32, #tpu.memory_space<vmem>>, vector<1x1x32xf32>
    %70 = vector.shape_cast %69 : vector<1x1x32xf32> to vector<1x32xf32>
    %c0_34 = arith.constant 0 : index
    %c0_35 = arith.constant 0 : index
    %c0_36 = arith.constant 0 : index
    %71 = vector.load %arg10[%c0_34, %c0_35, %c0_36] : memref<2x1x32xf32, #tpu.memory_space<vmem>>, vector<1x1x32xf32>
    %72 = vector.shape_cast %71 : vector<1x1x32xf32> to vector<1x32xf32>
    %cst_37 = arith.constant dense<0.000000e+00> : vector<8xf32>
    %73 = vector.multi_reduction <add>, %68, %cst_37 [1] : vector<8x32xf32> to vector<8xf32>
    %74 = vector.shape_cast %73 : vector<8xf32> to vector<8x1xf32>
    %cst_38 = arith.constant 3.200000e+01 : f32
    %75 = vector.broadcast %cst_38 : f32 to vector<8x1xf32>
    %76 = arith.divf %74, %75 : vector<8x1xf32>
    %77 = arith.mulf %68, %68 : vector<8x32xf32>
    %cst_39 = arith.constant dense<0.000000e+00> : vector<8xf32>
    %78 = vector.multi_reduction <add>, %77, %cst_39 [1] : vector<8x32xf32> to vector<8xf32>
    %79 = vector.shape_cast %78 : vector<8xf32> to vector<8x1xf32>
    %cst_40 = arith.constant 3.200000e+01 : f32
    %80 = vector.broadcast %cst_40 : f32 to vector<8x1xf32>
    %81 = arith.divf %79, %80 : vector<8x1xf32>
    %82 = arith.mulf %76, %76 : vector<8x1xf32>
    %83 = arith.subf %81, %82 : vector<8x1xf32>
    %84 = vector.broadcast %76 : vector<8x1xf32> to vector<8x32xf32>
    %85 = arith.subf %68, %84 : vector<8x32xf32>
    %cst_41 = arith.constant 1.000000e-07 : f32
    %86 = vector.broadcast %cst_41 : f32 to vector<8x1xf32>
    %87 = arith.addf %83, %86 : vector<8x1xf32>
    %88 = math.rsqrt %87 : vector<8x1xf32>
    %89 = vector.broadcast %88 : vector<8x1xf32> to vector<8x32xf32>
    %90 = arith.mulf %85, %89 : vector<8x32xf32>
    %91 = vector.broadcast %70 : vector<1x32xf32> to vector<8x32xf32>
    %92 = arith.mulf %90, %91 : vector<8x32xf32>
    %93 = vector.broadcast %72 : vector<1x32xf32> to vector<8x32xf32>
    %94 = arith.addf %92, %93 : vector<8x32xf32>
    %c0_42 = arith.constant 0 : index
    %c0_43 = arith.constant 0 : index
    %c0_44 = arith.constant 0 : index
    %95 = vector.load %arg11[%c0_42, %c0_43, %c0_44] : memref<2x32x128xf32, #tpu.memory_space<vmem>>, vector<1x32x128xf32>
    %96 = vector.shape_cast %95 : vector<1x32x128xf32> to vector<32x128xf32>
    %cst_45 = arith.constant dense<0.000000e+00> : vector<8x128xf32>
    %97 = tpu.matmul %94, %96, %cst_45 {dimension_numbers = #tpu.dot_dimension_numbers<[1], [0], [0], [1], [0, 0, 1, 1], [], []>} : vector<8x32xf32>, vector<32x128xf32>, vector<8x128xf32> -> vector<8x128xf32>
    %c0_46 = arith.constant 0 : index
    %c0_47 = arith.constant 0 : index
    %c0_48 = arith.constant 0 : index
    %98 = vector.load %arg12[%c0_46, %c0_47, %c0_48] : memref<2x1x128xf32, #tpu.memory_space<vmem>>, vector<1x1x128xf32>
    %99 = vector.shape_cast %98 : vector<1x1x128xf32> to vector<1x128xf32>
    %100 = vector.broadcast %99 : vector<1x128xf32> to vector<8x128xf32>
    %101 = arith.addf %97, %100 : vector<8x128xf32>
    %102 = arith.mulf %101, %101 : vector<8x128xf32>
    %103 = arith.mulf %101, %102 : vector<8x128xf32>
    %cst_49 = arith.constant 4.471500e-02 : f32
    %104 = vector.broadcast %cst_49 : f32 to vector<8x128xf32>
    %105 = arith.mulf %104, %103 : vector<8x128xf32>
    %106 = arith.addf %101, %105 : vector<8x128xf32>
    %cst_50 = arith.constant 0.797884583 : f32
    %107 = vector.broadcast %cst_50 : f32 to vector<8x128xf32>
    %108 = arith.mulf %107, %106 : vector<8x128xf32>
    %109 = math.tanh %108 : vector<8x128xf32>
    %cst_51 = arith.constant 1.000000e+00 : f32
    %110 = vector.broadcast %cst_51 : f32 to vector<8x128xf32>
    %111 = arith.addf %110, %109 : vector<8x128xf32>
    %cst_52 = arith.constant 5.000000e-01 : f32
    %112 = vector.broadcast %cst_52 : f32 to vector<8x128xf32>
    %113 = arith.mulf %112, %111 : vector<8x128xf32>
    %114 = arith.mulf %101, %113 : vector<8x128xf32>
    %c0_53 = arith.constant 0 : index
    %c0_54 = arith.constant 0 : index
    %c0_55 = arith.constant 0 : index
    %115 = vector.load %arg13[%c0_53, %c0_54, %c0_55] : memref<2x128x32xf32, #tpu.memory_space<vmem>>, vector<1x128x32xf32>
    %116 = vector.shape_cast %115 : vector<1x128x32xf32> to vector<128x32xf32>
    %cst_56 = arith.constant dense<0.000000e+00> : vector<8x32xf32>
    %117 = tpu.matmul %114, %116, %cst_56 {dimension_numbers = #tpu.dot_dimension_numbers<[1], [0], [0], [1], [0, 0, 1, 1], [], []>} : vector<8x128xf32>, vector<128x32xf32>, vector<8x32xf32> -> vector<8x32xf32>
    %c0_57 = arith.constant 0 : index
    %c0_58 = arith.constant 0 : index
    %c0_59 = arith.constant 0 : index
    %118 = vector.load %arg14[%c0_57, %c0_58, %c0_59] : memref<2x1x32xf32, #tpu.memory_space<vmem>>, vector<1x1x32xf32>
    %119 = vector.shape_cast %118 : vector<1x1x32xf32> to vector<1x32xf32>
    %120 = vector.broadcast %119 : vector<1x32xf32> to vector<8x32xf32>
    %121 = arith.addf %117, %120 : vector<8x32xf32>
    %122 = arith.addf %94, %121 : vector<8x32xf32>
    %c0_60 = arith.constant 0 : index
    %c0_61 = arith.constant 0 : index
    %c0_62 = arith.constant 0 : index
    %123 = vector.load %arg15[%c0_60, %c0_61, %c0_62] : memref<2x1x32xf32, #tpu.memory_space<vmem>>, vector<1x1x32xf32>
    %124 = vector.shape_cast %123 : vector<1x1x32xf32> to vector<1x32xf32>
    %c0_63 = arith.constant 0 : index
    %c0_64 = arith.constant 0 : index
    %c0_65 = arith.constant 0 : index
    %125 = vector.load %arg16[%c0_63, %c0_64, %c0_65] : memref<2x1x32xf32, #tpu.memory_space<vmem>>, vector<1x1x32xf32>
    %126 = vector.shape_cast %125 : vector<1x1x32xf32> to vector<1x32xf32>
    %cst_66 = arith.constant dense<0.000000e+00> : vector<8xf32>
    %127 = vector.multi_reduction <add>, %122, %cst_66 [1] : vector<8x32xf32> to vector<8xf32>
    %128 = vector.shape_cast %127 : vector<8xf32> to vector<8x1xf32>
    %cst_67 = arith.constant 3.200000e+01 : f32
    %129 = vector.broadcast %cst_67 : f32 to vector<8x1xf32>
    %130 = arith.divf %128, %129 : vector<8x1xf32>
    %131 = arith.mulf %122, %122 : vector<8x32xf32>
    %cst_68 = arith.constant dense<0.000000e+00> : vector<8xf32>
    %132 = vector.multi_reduction <add>, %131, %cst_68 [1] : vector<8x32xf32> to vector<8xf32>
    %133 = vector.shape_cast %132 : vector<8xf32> to vector<8x1xf32>
    %cst_69 = arith.constant 3.200000e+01 : f32
    %134 = vector.broadcast %cst_69 : f32 to vector<8x1xf32>
    %135 = arith.divf %133, %134 : vector<8x1xf32>
    %136 = arith.mulf %130, %130 : vector<8x1xf32>
    %137 = arith.subf %135, %136 : vector<8x1xf32>
    %138 = vector.broadcast %130 : vector<8x1xf32> to vector<8x32xf32>
    %139 = arith.subf %122, %138 : vector<8x32xf32>
    %cst_70 = arith.constant 1.000000e-07 : f32
    %140 = vector.broadcast %cst_70 : f32 to vector<8x1xf32>
    %141 = arith.addf %137, %140 : vector<8x1xf32>
    %142 = math.rsqrt %141 : vector<8x1xf32>
    %143 = vector.broadcast %142 : vector<8x1xf32> to vector<8x32xf32>
    %144 = arith.mulf %139, %143 : vector<8x32xf32>
    %145 = vector.broadcast %124 : vector<1x32xf32> to vector<8x32xf32>
    %146 = arith.mulf %144, %145 : vector<8x32xf32>
    %147 = vector.broadcast %126 : vector<1x32xf32> to vector<8x32xf32>
    %148 = arith.addf %146, %147 : vector<8x32xf32>
    %c1 = arith.constant 1 : index
    %c0_71 = arith.constant 0 : index
    %c0_72 = arith.constant 0 : index
    %149 = vector.load %arg5[%c1, %c0_71, %c0_72] : memref<2x32x96xf32, #tpu.memory_space<vmem>>, vector<1x32x96xf32>
    %150 = vector.shape_cast %149 : vector<1x32x96xf32> to vector<32x96xf32>
    %cst_73 = arith.constant dense<0.000000e+00> : vector<8x96xf32>
    %151 = tpu.matmul %148, %150, %cst_73 {dimension_numbers = #tpu.dot_dimension_numbers<[1], [0], [0], [1], [0, 0, 1, 1], [], []>} : vector<8x32xf32>, vector<32x96xf32>, vector<8x96xf32> -> vector<8x96xf32>
    %c1_74 = arith.constant 1 : index
    %c0_75 = arith.constant 0 : index
    %c0_76 = arith.constant 0 : index
    %152 = vector.load %arg6[%c1_74, %c0_75, %c0_76] : memref<2x1x96xf32, #tpu.memory_space<vmem>>, vector<1x1x96xf32>
    %153 = vector.shape_cast %152 : vector<1x1x96xf32> to vector<1x96xf32>
    %154 = vector.broadcast %153 : vector<1x96xf32> to vector<8x96xf32>
    %155 = arith.addf %151, %154 : vector<8x96xf32>
    %156 = vector.extract_strided_slice %155 {offsets = [0, 0], sizes = [8, 32], strides = [1, 1]} : vector<8x96xf32> to vector<8x32xf32>
    %157 = vector.shape_cast %156 : vector<8x32xf32> to vector<8x2x16xf32>
    %158 = tpu.transpose %157, [1, 0, 2] : vector<8x2x16xf32> -> vector<2x8x16xf32>
    %159 = vector.extract_strided_slice %155 {offsets = [0, 32], sizes = [8, 32], strides = [1, 1]} : vector<8x96xf32> to vector<8x32xf32>
    %160 = vector.shape_cast %159 : vector<8x32xf32> to vector<8x2x16xf32>
    %161 = tpu.transpose %160, [1, 0, 2] : vector<8x2x16xf32> -> vector<2x8x16xf32>
    %162 = vector.extract_strided_slice %155 {offsets = [0, 64], sizes = [8, 32], strides = [1, 1]} : vector<8x96xf32> to vector<8x32xf32>
    %163 = vector.shape_cast %162 : vector<8x32xf32> to vector<8x2x16xf32>
    %164 = tpu.transpose %163, [1, 0, 2] : vector<8x2x16xf32> -> vector<2x8x16xf32>
    "tpu.trace_start"() <{level = 10 : i32, message = "hqd,hkd->hqk"}> : () -> ()
    %cst_77 = arith.constant dense<0.000000e+00> : vector<2x8x8xf32>
    %165 = tpu.matmul %158, %161, %cst_77 {dimension_numbers = #tpu.dot_dimension_numbers<[2], [2], [1], [1], [0, 0, 0, 1, 1, 1], [0], [0]>} : vector<2x8x16xf32>, vector<2x8x16xf32>, vector<2x8x8xf32> -> vector<2x8x8xf32>
    "tpu.trace_stop"() : () -> ()
    %166 = vector.shape_cast %27 : vector<1x8xf32> to vector<1x1x8xf32>
    %167 = vector.broadcast %166 : vector<1x1x8xf32> to vector<2x8x8xf32>
    %168 = arith.addf %165, %167 : vector<2x8x8xf32>
    %cst_78 = arith.constant dense<0xFF800000> : vector<2x8xf32>
    %169 = vector.multi_reduction <maximumf>, %168, %cst_78 [2] : vector<2x8x8xf32> to vector<2x8xf32>
    %170 = vector.shape_cast %169 : vector<2x8xf32> to vector<2x8x1xf32>
    %171 = vector.broadcast %170 : vector<2x8x1xf32> to vector<2x8x8xf32>
    %172 = arith.subf %168, %171 : vector<2x8x8xf32>
    %173 = math.exp %172 : vector<2x8x8xf32>
    %cst_79 = arith.constant dense<0.000000e+00> : vector<2x8xf32>
    %174 = vector.multi_reduction <add>, %173, %cst_79 [2] : vector<2x8x8xf32> to vector<2x8xf32>
    %175 = vector.shape_cast %174 : vector<2x8xf32> to vector<2x8x1xf32>
    %176 = tpu.reciprocal %175 {approx = true} : vector<2x8x1xf32> -> vector<2x8x1xf32>
    %177 = vector.broadcast %176 : vector<2x8x1xf32> to vector<2x8x8xf32>
    %178 = arith.mulf %173, %177 : vector<2x8x8xf32>
    "tpu.trace_start"() <{level = 10 : i32, message = "hqk,hkd->hqd"}> : () -> ()
    %cst_80 = arith.constant dense<0.000000e+00> : vector<2x8x16xf32>
    %179 = tpu.matmul %178, %164, %cst_80 {dimension_numbers = #tpu.dot_dimension_numbers<[2], [1], [1], [2], [0, 0, 0, 1, 1, 2], [0], [0]>} : vector<2x8x8xf32>, vector<2x8x16xf32>, vector<2x8x16xf32> -> vector<2x8x16xf32>
    "tpu.trace_stop"() : () -> ()
    %180 = tpu.transpose %179, [1, 0, 2] : vector<2x8x16xf32> -> vector<8x2x16xf32>
    %181 = vector.shape_cast %180 : vector<8x2x16xf32> to vector<8x32xf32>
    %c1_81 = arith.constant 1 : index
    %c0_82 = arith.constant 0 : index
    %c0_83 = arith.constant 0 : index
    %182 = vector.load %arg7[%c1_81, %c0_82, %c0_83] : memref<2x32x32xf32, #tpu.memory_space<vmem>>, vector<1x32x32xf32>
    %183 = vector.shape_cast %182 : vector<1x32x32xf32> to vector<32x32xf32>
    %cst_84 = arith.constant dense<0.000000e+00> : vector<8x32xf32>
    %184 = tpu.matmul %181, %183, %cst_84 {dimension_numbers = #tpu.dot_dimension_numbers<[1], [0], [0], [1], [0, 0, 1, 1], [], []>} : vector<8x32xf32>, vector<32x32xf32>, vector<8x32xf32> -> vector<8x32xf32>
    %c1_85 = arith.constant 1 : index
    %c0_86 = arith.constant 0 : index
    %c0_87 = arith.constant 0 : index
    %185 = vector.load %arg8[%c1_85, %c0_86, %c0_87] : memref<2x1x32xf32, #tpu.memory_space<vmem>>, vector<1x1x32xf32>
    %186 = vector.shape_cast %185 : vector<1x1x32xf32> to vector<1x32xf32>
    %187 = vector.broadcast %186 : vector<1x32xf32> to vector<8x32xf32>
    %188 = arith.addf %184, %187 : vector<8x32xf32>
    %189 = arith.addf %148, %188 : vector<8x32xf32>
    %c1_88 = arith.constant 1 : index
    %c0_89 = arith.constant 0 : index
    %c0_90 = arith.constant 0 : index
    %190 = vector.load %arg9[%c1_88, %c0_89, %c0_90] : memref<2x1x32xf32, #tpu.memory_space<vmem>>, vector<1x1x32xf32>
    %191 = vector.shape_cast %190 : vector<1x1x32xf32> to vector<1x32xf32>
    %c1_91 = arith.constant 1 : index
    %c0_92 = arith.constant 0 : index
    %c0_93 = arith.constant 0 : index
    %192 = vector.load %arg10[%c1_91, %c0_92, %c0_93] : memref<2x1x32xf32, #tpu.memory_space<vmem>>, vector<1x1x32xf32>
    %193 = vector.shape_cast %192 : vector<1x1x32xf32> to vector<1x32xf32>
    %cst_94 = arith.constant dense<0.000000e+00> : vector<8xf32>
    %194 = vector.multi_reduction <add>, %189, %cst_94 [1] : vector<8x32xf32> to vector<8xf32>
    %195 = vector.shape_cast %194 : vector<8xf32> to vector<8x1xf32>
    %cst_95 = arith.constant 3.200000e+01 : f32
    %196 = vector.broadcast %cst_95 : f32 to vector<8x1xf32>
    %197 = arith.divf %195, %196 : vector<8x1xf32>
    %198 = arith.mulf %189, %189 : vector<8x32xf32>
    %cst_96 = arith.constant dense<0.000000e+00> : vector<8xf32>
    %199 = vector.multi_reduction <add>, %198, %cst_96 [1] : vector<8x32xf32> to vector<8xf32>
    %200 = vector.shape_cast %199 : vector<8xf32> to vector<8x1xf32>
    %cst_97 = arith.constant 3.200000e+01 : f32
    %201 = vector.broadcast %cst_97 : f32 to vector<8x1xf32>
    %202 = arith.divf %200, %201 : vector<8x1xf32>
    %203 = arith.mulf %197, %197 : vector<8x1xf32>
    %204 = arith.subf %202, %203 : vector<8x1xf32>
    %205 = vector.broadcast %197 : vector<8x1xf32> to vector<8x32xf32>
    %206 = arith.subf %189, %205 : vector<8x32xf32>
    %cst_98 = arith.constant 1.000000e-07 : f32
    %207 = vector.broadcast %cst_98 : f32 to vector<8x1xf32>
    %208 = arith.addf %204, %207 : vector<8x1xf32>
    %209 = math.rsqrt %208 : vector<8x1xf32>
    %210 = vector.broadcast %209 : vector<8x1xf32> to vector<8x32xf32>
    %211 = arith.mulf %206, %210 : vector<8x32xf32>
    %212 = vector.broadcast %191 : vector<1x32xf32> to vector<8x32xf32>
    %213 = arith.mulf %211, %212 : vector<8x32xf32>
    %214 = vector.broadcast %193 : vector<1x32xf32> to vector<8x32xf32>
    %215 = arith.addf %213, %214 : vector<8x32xf32>
    %c1_99 = arith.constant 1 : index
    %c0_100 = arith.constant 0 : index
    %c0_101 = arith.constant 0 : index
    %216 = vector.load %arg11[%c1_99, %c0_100, %c0_101] : memref<2x32x128xf32, #tpu.memory_space<vmem>>, vector<1x32x128xf32>
    %217 = vector.shape_cast %216 : vector<1x32x128xf32> to vector<32x128xf32>
    %cst_102 = arith.constant dense<0.000000e+00> : vector<8x128xf32>
    %218 = tpu.matmul %215, %217, %cst_102 {dimension_numbers = #tpu.dot_dimension_numbers<[1], [0], [0], [1], [0, 0, 1, 1], [], []>} : vector<8x32xf32>, vector<32x128xf32>, vector<8x128xf32> -> vector<8x128xf32>
    %c1_103 = arith.constant 1 : index
    %c0_104 = arith.constant 0 : index
    %c0_105 = arith.constant 0 : index
    %219 = vector.load %arg12[%c1_103, %c0_104, %c0_105] : memref<2x1x128xf32, #tpu.memory_space<vmem>>, vector<1x1x128xf32>
    %220 = vector.shape_cast %219 : vector<1x1x128xf32> to vector<1x128xf32>
    %221 = vector.broadcast %220 : vector<1x128xf32> to vector<8x128xf32>
    %222 = arith.addf %218, %221 : vector<8x128xf32>
    %223 = arith.mulf %222, %222 : vector<8x128xf32>
    %224 = arith.mulf %222, %223 : vector<8x128xf32>
    %cst_106 = arith.constant 4.471500e-02 : f32
    %225 = vector.broadcast %cst_106 : f32 to vector<8x128xf32>
    %226 = arith.mulf %225, %224 : vector<8x128xf32>
    %227 = arith.addf %222, %226 : vector<8x128xf32>
    %cst_107 = arith.constant 0.797884583 : f32
    %228 = vector.broadcast %cst_107 : f32 to vector<8x128xf32>
    %229 = arith.mulf %228, %227 : vector<8x128xf32>
    %230 = math.tanh %229 : vector<8x128xf32>
    %cst_108 = arith.constant 1.000000e+00 : f32
    %231 = vector.broadcast %cst_108 : f32 to vector<8x128xf32>
    %232 = arith.addf %231, %230 : vector<8x128xf32>
    %cst_109 = arith.constant 5.000000e-01 : f32
    %233 = vector.broadcast %cst_109 : f32 to vector<8x128xf32>
    %234 = arith.mulf %233, %232 : vector<8x128xf32>
    %235 = arith.mulf %222, %234 : vector<8x128xf32>
    %c1_110 = arith.constant 1 : index
    %c0_111 = arith.constant 0 : index
    %c0_112 = arith.constant 0 : index
    %236 = vector.load %arg13[%c1_110, %c0_111, %c0_112] : memref<2x128x32xf32, #tpu.memory_space<vmem>>, vector<1x128x32xf32>
    %237 = vector.shape_cast %236 : vector<1x128x32xf32> to vector<128x32xf32>
    %cst_113 = arith.constant dense<0.000000e+00> : vector<8x32xf32>
    %238 = tpu.matmul %235, %237, %cst_113 {dimension_numbers = #tpu.dot_dimension_numbers<[1], [0], [0], [1], [0, 0, 1, 1], [], []>} : vector<8x128xf32>, vector<128x32xf32>, vector<8x32xf32> -> vector<8x32xf32>
    %c1_114 = arith.constant 1 : index
    %c0_115 = arith.constant 0 : index
    %c0_116 = arith.constant 0 : index
    %239 = vector.load %arg14[%c1_114, %c0_115, %c0_116] : memref<2x1x32xf32, #tpu.memory_space<vmem>>, vector<1x1x32xf32>
    %240 = vector.shape_cast %239 : vector<1x1x32xf32> to vector<1x32xf32>
    %241 = vector.broadcast %240 : vector<1x32xf32> to vector<8x32xf32>
    %242 = arith.addf %238, %241 : vector<8x32xf32>
    %243 = arith.addf %215, %242 : vector<8x32xf32>
    %c1_117 = arith.constant 1 : index
    %c0_118 = arith.constant 0 : index
    %c0_119 = arith.constant 0 : index
    %244 = vector.load %arg15[%c1_117, %c0_118, %c0_119] : memref<2x1x32xf32, #tpu.memory_space<vmem>>, vector<1x1x32xf32>
    %245 = vector.shape_cast %244 : vector<1x1x32xf32> to vector<1x32xf32>
    %c1_120 = arith.constant 1 : index
    %c0_121 = arith.constant 0 : index
    %c0_122 = arith.constant 0 : index
    %246 = vector.load %arg16[%c1_120, %c0_121, %c0_122] : memref<2x1x32xf32, #tpu.memory_space<vmem>>, vector<1x1x32xf32>
    %247 = vector.shape_cast %246 : vector<1x1x32xf32> to vector<1x32xf32>
    %cst_123 = arith.constant dense<0.000000e+00> : vector<8xf32>
    %248 = vector.multi_reduction <add>, %243, %cst_123 [1] : vector<8x32xf32> to vector<8xf32>
    %249 = vector.shape_cast %248 : vector<8xf32> to vector<8x1xf32>
    %cst_124 = arith.constant 3.200000e+01 : f32
    %250 = vector.broadcast %cst_124 : f32 to vector<8x1xf32>
    %251 = arith.divf %249, %250 : vector<8x1xf32>
    %252 = arith.mulf %243, %243 : vector<8x32xf32>
    %cst_125 = arith.constant dense<0.000000e+00> : vector<8xf32>
    %253 = vector.multi_reduction <add>, %252, %cst_125 [1] : vector<8x32xf32> to vector<8xf32>
    %254 = vector.shape_cast %253 : vector<8xf32> to vector<8x1xf32>
    %cst_126 = arith.constant 3.200000e+01 : f32
    %255 = vector.broadcast %cst_126 : f32 to vector<8x1xf32>
    %256 = arith.divf %254, %255 : vector<8x1xf32>
    %257 = arith.mulf %251, %251 : vector<8x1xf32>
    %258 = arith.subf %256, %257 : vector<8x1xf32>
    %259 = vector.broadcast %251 : vector<8x1xf32> to vector<8x32xf32>
    %260 = arith.subf %243, %259 : vector<8x32xf32>
    %cst_127 = arith.constant 1.000000e-07 : f32
    %261 = vector.broadcast %cst_127 : f32 to vector<8x1xf32>
    %262 = arith.addf %258, %261 : vector<8x1xf32>
    %263 = math.rsqrt %262 : vector<8x1xf32>
    %264 = vector.broadcast %263 : vector<8x1xf32> to vector<8x32xf32>
    %265 = arith.mulf %260, %264 : vector<8x32xf32>
    %266 = vector.broadcast %245 : vector<1x32xf32> to vector<8x32xf32>
    %267 = arith.mulf %265, %266 : vector<8x32xf32>
    %268 = vector.broadcast %247 : vector<1x32xf32> to vector<8x32xf32>
    %269 = arith.addf %267, %268 : vector<8x32xf32>
    %270 = vector.extract_strided_slice %269 {offsets = [0, 0], sizes = [1, 32], strides = [1, 1]} : vector<8x32xf32> to vector<1x32xf32>
    %c0_128 = arith.constant 0 : index
    %c0_129 = arith.constant 0 : index
    %271 = vector.load %arg17[%c0_128, %c0_129] : memref<32x128xf32, #tpu.memory_space<vmem>>, vector<32x128xf32>
    %cst_130 = arith.constant dense<0.000000e+00> : vector<1x128xf32>
    %272 = tpu.matmul %270, %271, %cst_130 {dimension_numbers = #tpu.dot_dimension_numbers<[1], [0], [0], [1], [0, 0, 1, 1], [], []>} : vector<1x32xf32>, vector<32x128xf32>, vector<1x128xf32> -> vector<1x128xf32>
    %c0_131 = arith.constant 0 : index
    %c0_132 = arith.constant 0 : index
    %273 = vector.load %arg18[%c0_131, %c0_132] : memref<1x128xf32, #tpu.memory_space<vmem>>, vector<1x128xf32>
    %274 = arith.addf %272, %273 : vector<1x128xf32>
    %c0_133 = arith.constant 0 : index
    %c0_134 = arith.constant 0 : index
    %c0_135 = arith.constant 0 : index
    %275 = vector.load %arg19[%c0_133, %c0_134, %c0_135] : memref<1x1x128xf32, #tpu.memory_space<vmem>>, vector<1x1x128xf32>
    %276 = vector.shape_cast %275 : vector<1x1x128xf32> to vector<1x128xf32>
    %277 = vector.shape_cast %274 : vector<1x128xf32> to vector<1x1x128xf32>
    tpu.vector_store %arg19[%c0_133, %c0_134, %c0_135], %277 {strides = array<i32>} : memref<1x1x128xf32, #tpu.memory_space<vmem>>, vector<1x1x128xf32>,
    return
  }
  func.func @transform_0(%arg0: i32) -> (i32, i32, i32) {
    %c0_i32 = arith.constant 0 : i32
    %c0_i32_0 = arith.constant 0 : i32
    %c0_i32_1 = arith.constant 0 : i32
    return %arg0, %c0_i32, %c0_i32_0 : i32, i32, i32
  }
  func.func @transform_1(%arg0: i32) -> (i32, i32, i32) {
    %c0_i32 = arith.constant 0 : i32
    %c0_i32_0 = arith.constant 0 : i32
    %c0_i32_1 = arith.constant 0 : i32
    return %arg0, %c0_i32, %c0_i32_0 : i32, i32, i32
  }
  func.func @transform_2(%arg0: i32) -> (i32, i32) {
    %c0_i32 = arith.constant 0 : i32
    %c0_i32_0 = arith.constant 0 : i32
    %c0_i32_1 = arith.constant 0 : i32
    return %c0_i32, %c0_i32_0 : i32, i32
  }
  func.func @transform_3(%arg0: i32) -> (i32, i32) {
    %c0_i32 = arith.constant 0 : i32
    %c0_i32_0 = arith.constant 0 : i32
    %c0_i32_1 = arith.constant 0 : i32
    return %c0_i32, %c0_i32_0 : i32, i32
  }
  func.func @transform_4(%arg0: i32) -> (i32, i32, i32) {
    %c0_i32 = arith.constant 0 : i32
    %c0_i32_0 = arith.constant 0 : i32
    %c0_i32_1 = arith.constant 0 : i32
    %c0_i32_2 = arith.constant 0 : i32
    return %c0_i32, %c0_i32_0, %c0_i32_1 : i32, i32, i32
  }
  func.func @transform_5(%arg0: i32) -> (i32, i32, i32) {
    %c0_i32 = arith.constant 0 : i32
    %c0_i32_0 = arith.constant 0 : i32
    %c0_i32_1 = arith.constant 0 : i32
    %c0_i32_2 = arith.constant 0 : i32
    return %c0_i32, %c0_i32_0, %c0_i32_1 : i32, i32, i32
  }
  func.func @transform_6(%arg0: i32) -> (i32, i32, i32) {
    %c0_i32 = arith.constant 0 : i32
    %c0_i32_0 = arith.constant 0 : i32
    %c0_i32_1 = arith.constant 0 : i32
    %c0_i32_2 = arith.constant 0 : i32
    return %c0_i32, %c0_i32_0, %c0_i32_1 : i32, i32, i32
  }
  func.func @transform_7(%arg0: i32) -> (i32, i32, i32) {
    %c0_i32 = arith.constant 0 : i32
    %c0_i32_0 = arith.constant 0 : i32
    %c0_i32_1 = arith.constant 0 : i32
    %c0_i32_2 = arith.constant 0 : i32
    return %c0_i32, %c0_i32_0, %c0_i32_1 : i32, i32, i32
  }
  func.func @transform_8(%arg0: i32) -> (i32, i32, i32) {
    %c0_i32 = arith.constant 0 : i32
    %c0_i32_0 = arith.constant 0 : i32
    %c0_i32_1 = arith.constant 0 : i32
    %c0_i32_2 = arith.constant 0 : i32
    return %c0_i32, %c0_i32_0, %c0_i32_1 : i32, i32, i32
  }
  func.func @transform_9(%arg0: i32) -> (i32, i32, i32) {
    %c0_i32 = arith.constant 0 : i32
    %c0_i32_0 = arith.constant 0 : i32
    %c0_i32_1 = arith.constant 0 : i32
    %c0_i32_2 = arith.constant 0 : i32
    return %c0_i32, %c0_i32_0, %c0_i32_1 : i32, i32, i32
  }
  func.func @transform_10(%arg0: i32) -> (i32, i32, i32) {
    %c0_i32 = arith.constant 0 : i32
    %c0_i32_0 = arith.constant 0 : i32
    %c0_i32_1 = arith.constant 0 : i32
    %c0_i32_2 = arith.constant 0 : i32
    return %c0_i32, %c0_i32_0, %c0_i32_1 : i32, i32, i32
  }
  func.func @transform_11(%arg0: i32) -> (i32, i32, i32) {
    %c0_i32 = arith.constant 0 : i32
    %c0_i32_0 = arith.constant 0 : i32
    %c0_i32_1 = arith.constant 0 : i32
    %c0_i32_2 = arith.constant 0 : i32
    return %c0_i32, %c0_i32_0, %c0_i32_1 : i32, i32, i32
  }
  func.func @transform_12(%arg0: i32) -> (i32, i32, i32) {
    %c0_i32 = arith.constant 0 : i32
    %c0_i32_0 = arith.constant 0 : i32
    %c0_i32_1 = arith.constant 0 : i32
    %c0_i32_2 = arith.constant 0 : i32
    return %c0_i32, %c0_i32_0, %c0_i32_1 : i32, i32, i32
  }
  func.func @transform_13(%arg0: i32) -> (i32, i32, i32) {
    %c0_i32 = arith.constant 0 : i32
    %c0_i32_0 = arith.constant 0 : i32
    %c0_i32_1 = arith.constant 0 : i32
    %c0_i32_2 = arith.constant 0 : i32
    return %c0_i32, %c0_i32_0, %c0_i32_1 : i32, i32, i32
  }
  func.func @transform_14(%arg0: i32) -> (i32, i32, i32) {
    %c0_i32 = arith.constant 0 : i32
    %c0_i32_0 = arith.constant 0 : i32
    %c0_i32_1 = arith.constant 0 : i32
    %c0_i32_2 = arith.constant 0 : i32
    return %c0_i32, %c0_i32_0, %c0_i32_1 : i32, i32, i32
  }
  func.func @transform_15(%arg0: i32) -> (i32, i32, i32) {
    %c0_i32 = arith.constant 0 : i32
    %c0_i32_0 = arith.constant 0 : i32
    %c0_i32_1 = arith.constant 0 : i32
    %c0_i32_2 = arith.constant 0 : i32
    return %c0_i32, %c0_i32_0, %c0_i32_1 : i32, i32, i32
  }
  func.func @transform_16(%arg0: i32) -> (i32, i32) {
    %c0_i32 = arith.constant 0 : i32
    %c0_i32_0 = arith.constant 0 : i32
    %c0_i32_1 = arith.constant 0 : i32
    return %c0_i32, %c0_i32_0 : i32, i32
  }
  func.func @transform_17(%arg0: i32) -> (i32, i32) {
    %c0_i32 = arith.constant 0 : i32
    %c0_i32_0 = arith.constant 0 : i32
    %c0_i32_1 = arith.constant 0 : i32
    return %c0_i32, %c0_i32_0 : i32, i32
  }
  func.func @transform_18(%arg0: i32) -> (i32, i32, i32) {
    %c0_i32 = arith.constant 0 : i32
    %c0_i32_0 = arith.constant 0 : i32
    %c0_i32_1 = arith.constant 0 : i32
    return %arg0, %c0_i32, %c0_i32_0 : i32, i32, i32
  }
}

</mosaic_0001>

<llo_original>
// kernel: forward.1
$region0: #{forward.1}
  #allocation0 [shape = 'u32[]', space=smem, size = 0x4, offset = 0x4, fixed_abs, tag = 'smem constant byte address 0x4 - core index']
  #allocation1 [shape = 'u32[144,128]{1,0:T(1,128)}', space=vmem, size = 0x12000, scoped, tag = 'internal scratch']
  %s0 = inlined_call_operand.vmem [shape: f32[2,8,32], index: 0, kind: input, shape index: {}]
  %s1 = inlined_call_operand.vmem [shape: f32[2,1,8], index: 1, kind: input, shape index: {}]
  %s2 = inlined_call_operand.vmem [shape: f32[1,32], index: 2, kind: input, shape index: {}]
  %s3 = inlined_call_operand.vmem [shape: f32[1,32], index: 3, kind: input, shape index: {}]
  %s4 = inlined_call_operand.hbm [shape: f32[2,32,96], index: 4, kind: input, shape index: {}]
  %s5 = inlined_call_operand.vmem [shape: f32[2,1,96], index: 5, kind: input, shape index: {}]
  %s6 = inlined_call_operand.vmem [shape: f32[2,32,32], index: 6, kind: input, shape index: {}]
  %s7 = inlined_call_operand.vmem [shape: f32[2,1,32], index: 7, kind: input, shape index: {}, may-alias: {7,9,13,15}]
  %s8 = inlined_call_operand.vmem [shape: f32[2,1,32], index: 8, kind: input, shape index: {}, may-alias: {8,14}]
  %s9 = inlined_call_operand.vmem [shape: f32[2,1,32], index: 9, kind: input, shape index: {}, may-alias: {7,9,13,15}]
  %s10 = inlined_call_operand.vmem [shape: f32[2,32,128], index: 10, kind: input, shape index: {}]
  %s11 = inlined_call_operand.vmem [shape: f32[2,1,128], index: 11, kind: input, shape index: {}]
  %s12 = inlined_call_operand.vmem [shape: f32[2,128,32], index: 12, kind: input, shape index: {}]
  %s13 = inlined_call_operand.vmem [shape: f32[2,1,32], index: 13, kind: input, shape index: {}, may-alias: {7,9,13,15}]
  %s14 = inlined_call_operand.vmem [shape: f32[2,1,32], index: 14, kind: input, shape index: {}, may-alias: {8,14}]
  %s15 = inlined_call_operand.vmem [shape: f32[2,1,32], index: 15, kind: input, shape index: {}, may-alias: {7,9,13,15}]
  %s16 = inlined_call_operand.vmem [shape: f32[32,128], index: 16, kind: input, shape index: {}]
  %s17 = inlined_call_operand.vmem [shape: f32[1,128], index: 17, kind: input, shape index: {}]
  %s18 = inlined_call_operand.vmem [shape: f32[2,1,128], index: 18, kind: output, shape index: {}]
  %s19 = sld [smem:[#allocation0]]
  $region109: #{forward.1} parent=0
    _
  %s21 = ssub.s32 1, %s19
  %s22 = scalar_select 0, %s21, %s19
  $region1: #{forward.1} parent=0
    #allocation2 [shape = 'u8[32768]{0}', space=vmem, size = 0x8000, scoped, tag = 'input window, operand 4, single buffered']
    #allocation3 [shape = 's32[2]{0}', space=sflag, size = 0x8, scoped, tag = 'scoped memory for forward.1']
    %23 = vsyncpa [#allocation3], 0
    loop: start=0, step=1, limit=4
    $region2: #{forward.1} parent=1 // loop_pre_header
      _
    $region3: #{forward.1} parent=1 // loop_header
      %s25 = sphi 0, %s29
      %p26 = scmp.ge.s32.totalorder %s25, 4
      %s35 = sphi 0, %s37
      %s38 = sphi 0, %s35
      %s39 = sphi 0, %s38
      %s55 = sphi 0, %s39
      %s61 = sphi 0, %s63
      %s64 = sphi 0, %s61
      %s65 = sphi 0, %s64
      %s81 = sphi 0, %s65
      %s85 = sphi 0, %s85
      %s87 = sphi 0, %s85
      %s88 = sphi 0, %s87
      %s102 = sphi 0, %s88
      %s106 = sphi 0, %s106
      %s108 = sphi 0, %s106
      %s109 = sphi 0, %s108
      %s123 = sphi 0, %s109
      %s127 = sphi 0, %s127
      %s129 = sphi 0, %s127
      %s130 = sphi 0, %s129
      %s144 = sphi 0, %s130
      %s148 = sphi 0, %s148
      %s150 = sphi 0, %s148
      %s151 = sphi 0, %s150
      %s165 = sphi 0, %s151
      %s169 = sphi 0, %s169
      %s171 = sphi 0, %s169
      %s172 = sphi 0, %s171
      %s186 = sphi 0, %s172
      %s190 = sphi 0, %s190
      %s192 = sphi 0, %s190
      %s193 = sphi 0, %s192
      %s207 = sphi 0, %s193
      %s211 = sphi 0, %s211
      %s213 = sphi 0, %s211
      %s214 = sphi 0, %s213
      %s228 = sphi 0, %s214
      %s232 = sphi 0, %s232
      %s234 = sphi 0, %s232
      %s235 = sphi 0, %s234
      %s249 = sphi 0, %s235
      %s253 = sphi 0, %s253
      %s255 = sphi 0, %s253
      %s256 = sphi 0, %s255
      %s270 = sphi 0, %s256
      %s274 = sphi 0, %s274
      %s276 = sphi 0, %s274
      %s277 = sphi 0, %s276
      %s291 = sphi 0, %s277
      %s295 = sphi 0, %s295
      %s297 = sphi 0, %s295
      %s298 = sphi 0, %s297
      %s312 = sphi 0, %s298
      %s316 = sphi 0, %s316
      %s318 = sphi 0, %s316
      %s319 = sphi 0, %s318
      %s333 = sphi 0, %s319
      %s337 = sphi 0, %s337
      %s339 = sphi 0, %s337
      %s340 = sphi 0, %s339
      %s354 = sphi 0, %s340
      %s358 = sphi 0, %s358
      %s360 = sphi 0, %s358
      %s361 = sphi 0, %s360
      %s375 = sphi 0, %s361
      %s379 = sphi 0, %s379
      %s381 = sphi 0, %s379
      %s382 = sphi 0, %s381
      %s396 = sphi 0, %s382
      %s400 = sphi 0, %s400
      %s402 = sphi 0, %s400
      %s403 = sphi 0, %s402
      %s417 = sphi 0, %s403
      %s423 = sphi 0, %s425
      %s426 = sphi 0, %s423
      %s427 = sphi 0, %s426
      %s443 = sphi 0, %s427
    $region4: #{forward.1} parent=1 // loop_header_branch
      %28 = sbr.rel (%p26) target = $region8
    $region5: #{forward.1} parent=1 // loop_body
      %s30 = ssub.s32 %s25, 1
      %s31 = ssub.s32 %s25, 2
      %s32 = sadd.s32 %s25, 1
      %s33 = ssub.s32 %s25, %s32
      %p34 = scmp.eq.s32.totalorder %s33, 0
      %s36 = sadd.s32 %s35, 1
      %s37 = scalar_select %p34, %s35, %s36
      %p40 = pneg %p34
      %p41 = scmp.eq.s32.totalorder %s25, 1
      %p42 = por %p40, %p41
      %p43 = scmp.ne.s32.totalorder %s35, %s38
      %p44 = scmp.eq.s32.totalorder %s25, 0
      %p45 = por %p43, %p44
      %p46 = scmp.ne.s32.totalorder %s35, %s38
      %p47 = scmp.eq.s32.totalorder %s30, 1
      %p48 = por %p46, %p47
      %p49 = scmp.ne.s32.totalorder %s38, %s39
      %p50 = scmp.eq.s32.totalorder %s30, 0
      %p51 = por %p49, %p50
      %p52 = scmp.ne.s32.totalorder %s38, %s39
      %p53 = scmp.eq.s32.totalorder %s31, 1
      %p54 = por %p52, %p53
      %p56 = scmp.ne.s32.totalorder %s39, %s55
      %p57 = scmp.eq.s32.totalorder %s31, 0
      %p58 = por %p56, %p57
      %s59 = ssub.s32 %s25, %s32
      %p60 = scmp.eq.s32.totalorder %s59, 0
      %s62 = sadd.s32 %s61, 1
      %s63 = scalar_select %p60, %s61, %s62
      %p66 = pneg %p60
      %p67 = scmp.eq.s32.totalorder %s25, 1
      %p68 = por %p66, %p67
      %p69 = scmp.ne.s32.totalorder %s61, %s64
      %p70 = scmp.eq.s32.totalorder %s25, 0
      %p71 = por %p69, %p70
      %p72 = scmp.ne.s32.totalorder %s61, %s64
      %p73 = scmp.eq.s32.totalorder %s30, 1
      %p74 = por %p72, %p73
      %p75 = scmp.ne.s32.totalorder %s64, %s65
      %p76 = scmp.eq.s32.totalorder %s30, 0
      %p77 = por %p75, %p76
      %p78 = scmp.ne.s32.totalorder %s64, %s65
      %p79 = scmp.eq.s32.totalorder %s31, 1
      %p80 = por %p78, %p79
      %p82 = scmp.ne.s32.totalorder %s65, %s81
      %p83 = scmp.eq.s32.totalorder %s31, 0
      %p84 = por %p82, %p83
      %s86 = sadd.s32 %s85, 1
      %p89 = scmp.eq.s32.totalorder %s25, 1
      %p90 = scmp.ne.s32.totalorder %s85, %s87
      %p91 = scmp.eq.s32.totalorder %s25, 0
      %p92 = por %p90, %p91
      %p93 = scmp.ne.s32.totalorder %s85, %s87
      %p94 = scmp.eq.s32.totalorder %s30, 1
      %p95 = por %p93, %p94
      %p96 = scmp.ne.s32.totalorder %s87, %s88
      %p97 = scmp.eq.s32.totalorder %s30, 0
      %p98 = por %p96, %p97
      %p99 = scmp.ne.s32.totalorder %s87, %s88
      %p100 = scmp.eq.s32.totalorder %s31, 1
      %p101 = por %p99, %p100
      %p103 = scmp.ne.s32.totalorder %s88, %s102
      %p104 = scmp.eq.s32.totalorder %s31, 0
      %p105 = por %p103, %p104
      %s107 = sadd.s32 %s106, 1
      %p110 = scmp.eq.s32.totalorder %s25, 1
      %p111 = scmp.ne.s32.totalorder %s106, %s108
      %p112 = scmp.eq.s32.totalorder %s25, 0
      %p113 = por %p111, %p112
      %p114 = scmp.ne.s32.totalorder %s106, %s108
      %p115 = scmp.eq.s32.totalorder %s30, 1
      %p116 = por %p114, %p115
      %p117 = scmp.ne.s32.totalorder %s108, %s109
      %p118 = scmp.eq.s32.totalorder %s30, 0
      %p119 = por %p117, %p118
      %p120 = scmp.ne.s32.totalorder %s108, %s109
      %p121 = scmp.eq.s32.totalorder %s31, 1
      %p122 = por %p120, %p121
      %p124 = scmp.ne.s32.totalorder %s109, %s123
      %p125 = scmp.eq.s32.totalorder %s31, 0
      %p126 = por %p124, %p125
      %s128 = sadd.s32 %s127, 1
      %p131 = scmp.eq.s32.totalorder %s25, 1
      %p132 = scmp.ne.s32.totalorder %s127, %s129
      %p133 = scmp.eq.s32.totalorder %s25, 0
      %p134 = por %p132, %p133
      %p135 = scmp.ne.s32.totalorder %s127, %s129
      %p136 = scmp.eq.s32.totalorder %s30, 1
      %p137 = por %p135, %p136
      %p138 = scmp.ne.s32.totalorder %s129, %s130
      %p139 = scmp.eq.s32.totalorder %s30, 0
      %p140 = por %p138, %p139
      %p141 = scmp.ne.s32.totalorder %s129, %s130
      %p142 = scmp.eq.s32.totalorder %s31, 1
      %p143 = por %p141, %p142
      %p145 = scmp.ne.s32.totalorder %s130, %s144
      %p146 = scmp.eq.s32.totalorder %s31, 0
      %p147 = por %p145, %p146
      %s149 = sadd.s32 %s148, 1
      %p152 = scmp.eq.s32.totalorder %s25, 1
      %p153 = scmp.ne.s32.totalorder %s148, %s150
      %p154 = scmp.eq.s32.totalorder %s25, 0
      %p155 = por %p153, %p154
      %p156 = scmp.ne.s32.totalorder %s148, %s150
      %p157 = scmp.eq.s32.totalorder %s30, 1
      %p158 = por %p156, %p157
      %p159 = scmp.ne.s32.totalorder %s150, %s151
      %p160 = scmp.eq.s32.totalorder %s30, 0
      %p161 = por %p159, %p160
      %p162 = scmp.ne.s32.totalorder %s150, %s151
      %p163 = scmp.eq.s32.totalorder %s31, 1
      %p164 = por %p162, %p163
      %p166 = scmp.ne.s32.totalorder %s151, %s165
      %p167 = scmp.eq.s32.totalorder %s31, 0
      %p168 = por %p166, %p167
      %s170 = sadd.s32 %s169, 1
      %p173 = scmp.eq.s32.totalorder %s25, 1
      %p174 = scmp.ne.s32.totalorder %s169, %s171
      %p175 = scmp.eq.s32.totalorder %s25, 0
      %p176 = por %p174, %p175
      %p177 = scmp.ne.s32.totalorder %s169, %s171
      %p178 = scmp.eq.s32.totalorder %s30, 1
      %p179 = por %p177, %p178
      %p180 = scmp.ne.s32.totalorder %s171, %s172
      %p181 = scmp.eq.s32.totalorder %s30, 0
      %p182 = por %p180, %p181
      %p183 = scmp.ne.s32.totalorder %s171, %s172
      %p184 = scmp.eq.s32.totalorder %s31, 1
      %p185 = por %p183, %p184
      %p187 = scmp.ne.s32.totalorder %s172, %s186
      %p188 = scmp.eq.s32.totalorder %s31, 0
      %p189 = por %p187, %p188
      %s191 = sadd.s32 %s190, 1
      %p194 = scmp.eq.s32.totalorder %s25, 1
      %p195 = scmp.ne.s32.totalorder %s190, %s192
      %p196 = scmp.eq.s32.totalorder %s25, 0
      %p197 = por %p195, %p196
      %p198 = scmp.ne.s32.totalorder %s190, %s192
      %p199 = scmp.eq.s32.totalorder %s30, 1
      %p200 = por %p198, %p199
      %p201 = scmp.ne.s32.totalorder %s192, %s193
      %p202 = scmp.eq.s32.totalorder %s30, 0
      %p203 = por %p201, %p202
      %p204 = scmp.ne.s32.totalorder %s192, %s193
      %p205 = scmp.eq.s32.totalorder %s31, 1
      %p206 = por %p204, %p205
      %p208 = scmp.ne.s32.totalorder %s193, %s207
      %p209 = scmp.eq.s32.totalorder %s31, 0
      %p210 = por %p208, %p209
      %s212 = sadd.s32 %s211, 1
      %p215 = scmp.eq.s32.totalorder %s25, 1
      %p216 = scmp.ne.s32.totalorder %s211, %s213
      %p217 = scmp.eq.s32.totalorder %s25, 0
      %p218 = por %p216, %p217
      %p219 = scmp.ne.s32.totalorder %s211, %s213
      %p220 = scmp.eq.s32.totalorder %s30, 1
      %p221 = por %p219, %p220
      %p222 = scmp.ne.s32.totalorder %s213, %s214
      %p223 = scmp.eq.s32.totalorder %s30, 0
      %p224 = por %p222, %p223
      %p225 = scmp.ne.s32.totalorder %s213, %s214
      %p226 = scmp.eq.s32.totalorder %s31, 1
      %p227 = por %p225, %p226
      %p229 = scmp.ne.s32.totalorder %s214, %s228
      %p230 = scmp.eq.s32.totalorder %s31, 0
      %p231 = por %p229, %p230
      %s233 = sadd.s32 %s232, 1
      %p236 = scmp.eq.s32.totalorder %s25, 1
      %p237 = scmp.ne.s32.totalorder %s232, %s234
      %p238 = scmp.eq.s32.totalorder %s25, 0
      %p239 = por %p237, %p238
      %p240 = scmp.ne.s32.totalorder %s232, %s234
      %p241 = scmp.eq.s32.totalorder %s30, 1
      %p242 = por %p240, %p241
      %p243 = scmp.ne.s32.totalorder %s234, %s235
      %p244 = scmp.eq.s32.totalorder %s30, 0
      %p245 = por %p243, %p244
      %p246 = scmp.ne.s32.totalorder %s234, %s235
      %p247 = scmp.eq.s32.totalorder %s31, 1
      %p248 = por %p246, %p247
      %p250 = scmp.ne.s32.totalorder %s235, %s249
      %p251 = scmp.eq.s32.totalorder %s31, 0
      %p252 = por %p250, %p251
      %s254 = sadd.s32 %s253, 1
      %p257 = scmp.eq.s32.totalorder %s25, 1
      %p258 = scmp.ne.s32.totalorder %s253, %s255
      %p259 = scmp.eq.s32.totalorder %s25, 0
      %p260 = por %p258, %p259
      %p261 = scmp.ne.s32.totalorder %s253, %s255
      %p262 = scmp.eq.s32.totalorder %s30, 1
      %p263 = por %p261, %p262
      %p264 = scmp.ne.s32.totalorder %s255, %s256
      %p265 = scmp.eq.s32.totalorder %s30, 0
      %p266 = por %p264, %p265
      %p267 = scmp.ne.s32.totalorder %s255, %s256
      %p268 = scmp.eq.s32.totalorder %s31, 1
      %p269 = por %p267, %p268
      %p271 = scmp.ne.s32.totalorder %s256, %s270
      %p272 = scmp.eq.s32.totalorder %s31, 0
      %p273 = por %p271, %p272
      %s275 = sadd.s32 %s274, 1
      %p278 = scmp.eq.s32.totalorder %s25, 1
      %p279 = scmp.ne.s32.totalorder %s274, %s276
      %p280 = scmp.eq.s32.totalorder %s25, 0
      %p281 = por %p279, %p280
      %p282 = scmp.ne.s32.totalorder %s274, %s276
      %p283 = scmp.eq.s32.totalorder %s30, 1
      %p284 = por %p282, %p283
      %p285 = scmp.ne.s32.totalorder %s276, %s277
      %p286 = scmp.eq.s32.totalorder %s30, 0
      %p287 = por %p285, %p286
      %p288 = scmp.ne.s32.totalorder %s276, %s277
      %p289 = scmp.eq.s32.totalorder %s31, 1
      %p290 = por %p288, %p289
      %p292 = scmp.ne.s32.totalorder %s277, %s291
      %p293 = scmp.eq.s32.totalorder %s31, 0
      %p294 = por %p292, %p293
      %s296 = sadd.s32 %s295, 1
      %p299 = scmp.eq.s32.totalorder %s25, 1
      %p300 = scmp.ne.s32.totalorder %s295, %s297
      %p301 = scmp.eq.s32.totalorder %s25, 0
      %p302 = por %p300, %p301
      %p303 = scmp.ne.s32.totalorder %s295, %s297
      %p304 = scmp.eq.s32.totalorder %s30, 1
      %p305 = por %p303, %p304
      %p306 = scmp.ne.s32.totalorder %s297, %s298
      %p307 = scmp.eq.s32.totalorder %s30, 0
      %p308 = por %p306, %p307
      %p309 = scmp.ne.s32.totalorder %s297, %s298
      %p310 = scmp.eq.s32.totalorder %s31, 1
      %p311 = por %p309, %p310
      %p313 = scmp.ne.s32.totalorder %s298, %s312
      %p314 = scmp.eq.s32.totalorder %s31, 0
      %p315 = por %p313, %p314
      %s317 = sadd.s32 %s316, 1
      %p320 = scmp.eq.s32.totalorder %s25, 1
      %p321 = scmp.ne.s32.totalorder %s316, %s318
      %p322 = scmp.eq.s32.totalorder %s25, 0
      %p323 = por %p321, %p322
      %p324 = scmp.ne.s32.totalorder %s316, %s318
      %p325 = scmp.eq.s32.totalorder %s30, 1
      %p326 = por %p324, %p325
      %p327 = scmp.ne.s32.totalorder %s318, %s319
      %p328 = scmp.eq.s32.totalorder %s30, 0
      %p329 = por %p327, %p328
      %p330 = scmp.ne.s32.totalorder %s318, %s319
      %p331 = scmp.eq.s32.totalorder %s31, 1
      %p332 = por %p330, %p331
      %p334 = scmp.ne.s32.totalorder %s319, %s333
      %p335 = scmp.eq.s32.totalorder %s31, 0
      %p336 = por %p334, %p335
      %s338 = sadd.s32 %s337, 1
      %p341 = scmp.eq.s32.totalorder %s25, 1
      %p342 = scmp.ne.s32.totalorder %s337, %s339
      %p343 = scmp.eq.s32.totalorder %s25, 0
      %p344 = por %p342, %p343
      %p345 = scmp.ne.s32.totalorder %s337, %s339
      %p346 = scmp.eq.s32.totalorder %s30, 1
      %p347 = por %p345, %p346
      %p348 = scmp.ne.s32.totalorder %s339, %s340
      %p349 = scmp.eq.s32.totalorder %s30, 0
      %p350 = por %p348, %p349
      %p351 = scmp.ne.s32.totalorder %s339, %s340
      %p352 = scmp.eq.s32.totalorder %s31, 1
      %p353 = por %p351, %p352
      %p355 = scmp.ne.s32.totalorder %s340, %s354
      %p356 = scmp.eq.s32.totalorder %s31, 0
      %p357 = por %p355, %p356
      %s359 = sadd.s32 %s358, 1
      %p362 = scmp.eq.s32.totalorder %s25, 1
      %p363 = scmp.ne.s32.totalorder %s358, %s360
      %p364 = scmp.eq.s32.totalorder %s25, 0
      %p365 = por %p363, %p364
      %p366 = scmp.ne.s32.totalorder %s358, %s360
      %p367 = scmp.eq.s32.totalorder %s30, 1
      %p368 = por %p366, %p367
      %p369 = scmp.ne.s32.totalorder %s360, %s361
      %p370 = scmp.eq.s32.totalorder %s30, 0
      %p371 = por %p369, %p370
      %p372 = scmp.ne.s32.totalorder %s360, %s361
      %p373 = scmp.eq.s32.totalorder %s31, 1
      %p374 = por %p372, %p373
      %p376 = scmp.ne.s32.totalorder %s361, %s375
      %p377 = scmp.eq.s32.totalorder %s31, 0
      %p378 = por %p376, %p377
      %s380 = sadd.s32 %s379, 1
      %p383 = scmp.eq.s32.totalorder %s25, 1
      %p384 = scmp.ne.s32.totalorder %s379, %s381
      %p385 = scmp.eq.s32.totalorder %s25, 0
      %p386 = por %p384, %p385
      %p387 = scmp.ne.s32.totalorder %s379, %s381
      %p388 = scmp.eq.s32.totalorder %s30, 1
      %p389 = por %p387, %p388
      %p390 = scmp.ne.s32.totalorder %s381, %s382
      %p391 = scmp.eq.s32.totalorder %s30, 0
      %p392 = por %p390, %p391
      %p393 = scmp.ne.s32.totalorder %s381, %s382
      %p394 = scmp.eq.s32.totalorder %s31, 1
      %p395 = por %p393, %p394
      %p397 = scmp.ne.s32.totalorder %s382, %s396
      %p398 = scmp.eq.s32.totalorder %s31, 0
      %p399 = por %p397, %p398
      %s401 = sadd.s32 %s400, 1
      %p404 = scmp.eq.s32.totalorder %s25, 1
      %p405 = scmp.ne.s32.totalorder %s400, %s402
      %p406 = scmp.eq.s32.totalorder %s25, 0
      %p407 = por %p405, %p406
      %p408 = scmp.ne.s32.totalorder %s400, %s402
      %p409 = scmp.eq.s32.totalorder %s30, 1
      %p410 = por %p408, %p409
      %p411 = scmp.ne.s32.totalorder %s402, %s403
      %p412 = scmp.eq.s32.totalorder %s30, 0
      %p413 = por %p411, %p412
      %p414 = scmp.ne.s32.totalorder %s402, %s403
      %p415 = scmp.eq.s32.totalorder %s31, 1
      %p416 = por %p414, %p415
      %p418 = scmp.ne.s32.totalorder %s403, %s417
      %p419 = scmp.eq.s32.totalorder %s31, 0
      %p420 = por %p418, %p419
      %s421 = ssub.s32 %s25, %s32
      %p422 = scmp.eq.s32.totalorder %s421, 0
      %s424 = sadd.s32 %s423, 1
      %s425 = scalar_select %p422, %s423, %s424
      %p428 = pneg %p422
      %p429 = scmp.eq.s32.totalorder %s25, 1
      %p430 = por %p428, %p429
      %p431 = scmp.ne.s32.totalorder %s423, %s426
      %p432 = scmp.eq.s32.totalorder %s25, 0
      %p433 = por %p431, %p432
      %p434 = scmp.ne.s32.totalorder %s423, %s426
      %p435 = scmp.eq.s32.totalorder %s30, 1
      %p436 = por %p434, %p435
      %p437 = scmp.ne.s32.totalorder %s426, %s427
      %p438 = scmp.eq.s32.totalorder %s30, 0
      %p439 = por %p437, %p438
      %p440 = scmp.ne.s32.totalorder %s426, %s427
      %p441 = scmp.eq.s32.totalorder %s31, 1
      %p442 = por %p440, %p441
      %p444 = scmp.ne.s32.totalorder %s427, %s443
      %p445 = scmp.eq.s32.totalorder %s31, 0
      %p446 = por %p444, %p445
      %p447 = scmp.le.s32.totalorder 1, %s25
      %p448 = scmp.lt.s32.totalorder %s25, 3
      %p449 = pnand %p447, %p448
      %p450 = pneg %p449
      // Predicated region
      $region9: #{forward.1} parent=5 // pred_check
        _
      $region10: #{forward.1} parent=5 // pred_check_branch
        %452 = sbr.rel (%p449) target = $region12
      $region11: #{forward.1} parent=5 // pred_region
        %s453 = ssub.s32 %s25, 1
        // Predicated region
        $region13: #{forward.1} parent=11 // pred_check
          %p454 = pneg %p98
        $region14: #{forward.1} parent=11 // pred_check_branch
          %456 = sbr.rel (%p454) target = $region16
        $region15: #{forward.1} parent=11 // pred_region
          _
        $region16: #{forward.1} parent=11 // pred_fallthru
          _
        // Predicated region
        $region17: #{forward.1} parent=11 // pred_check
          %p457 = pneg %p119
        $region18: #{forward.1} parent=11 // pred_check_branch
          %459 = sbr.rel (%p457) target = $region20
        $region19: #{forward.1} parent=11 // pred_region
          _
        $region20: #{forward.1} parent=11 // pred_fallthru
          _
        // Predicated region
        $region21: #{forward.1} parent=11 // pred_check
          %p460 = pneg %p140
        $region22: #{forward.1} parent=11 // pred_check_branch
          %462 = sbr.rel (%p460) target = $region24
        $region23: #{forward.1} parent=11 // pred_region
          %s464 = ssub.s32 1024, 1024
          %465 = vsyncadd [#allocation3], %s464
          %s466 = sshll.u32 [#allocation2], 4
          %s467 = int_to_ptr.vmem [resolvable:$true] %s466
          %472 = dma.hbm_to_vmem [thread:$0]  %s4, 1024, %s467, [#allocation3], 128, 128, 8
        $region24: #{forward.1} parent=11 // pred_fallthru
          _
        // Predicated region
        $region25: #{forward.1} parent=11 // pred_check
          %p473 = pneg %p161
        $region26: #{forward.1} parent=11 // pred_check_branch
          %475 = sbr.rel (%p473) target = $region28
        $region27: #{forward.1} parent=11 // pred_region
          _
        $region28: #{forward.1} parent=11 // pred_fallthru
          _
        // Predicated region
        $region29: #{forward.1} parent=11 // pred_check
          %p476 = pneg %p182
        $region30: #{forward.1} parent=11 // pred_check_branch
          %478 = sbr.rel (%p476) target = $region32
        $region31: #{forward.1} parent=11 // pred_region
          _
        $region32: #{forward.1} parent=11 // pred_fallthru
          _
        // Predicated region
        $region33: #{forward.1} parent=11 // pred_check
          %p479 = pneg %p203
        $region34: #{forward.1} parent=11 // pred_check_branch
          %481 = sbr.rel (%p479) target = $region36
        $region35: #{forward.1} parent=11 // pred_region
          _
        $region36: #{forward.1} parent=11 // pred_fallthru
          _
        // Predicated region
        $region37: #{forward.1} parent=11 // pred_check
          %p482 = pneg %p224
        $region38: #{forward.1} parent=11 // pred_check_branch
          %484 = sbr.rel (%p482) target = $region40
        $region39: #{forward.1} parent=11 // pred_region
          _
        $region40: #{forward.1} parent=11 // pred_fallthru
          _
        // Predicated region
        $region41: #{forward.1} parent=11 // pred_check
          %p485 = pneg %p245
        $region42: #{forward.1} parent=11 // pred_check_branch
          %487 = sbr.rel (%p485) target = $region44
        $region43: #{forward.1} parent=11 // pred_region
          _
        $region44: #{forward.1} parent=11 // pred_fallthru
          _
        // Predicated region
        $region45: #{forward.1} parent=11 // pred_check
          %p488 = pneg %p266
        $region46: #{forward.1} parent=11 // pred_check_branch
          %490 = sbr.rel (%p488) target = $region48
        $region47: #{forward.1} parent=11 // pred_region
          _
        $region48: #{forward.1} parent=11 // pred_fallthru
          _
        // Predicated region
        $region49: #{forward.1} parent=11 // pred_check
          %p491 = pneg %p287
        $region50: #{forward.1} parent=11 // pred_check_branch
          %493 = sbr.rel (%p491) target = $region52
        $region51: #{forward.1} parent=11 // pred_region
          _
        $region52: #{forward.1} parent=11 // pred_fallthru
          _
        // Predicated region
        $region53: #{forward.1} parent=11 // pred_check
          %p494 = pneg %p308
        $region54: #{forward.1} parent=11 // pred_check_branch
          %496 = sbr.rel (%p494) target = $region56
        $region55: #{forward.1} parent=11 // pred_region
          _
        $region56: #{forward.1} parent=11 // pred_fallthru
          _
        // Predicated region
        $region57: #{forward.1} parent=11 // pred_check
          %p497 = pneg %p329
        $region58: #{forward.1} parent=11 // pred_check_branch
          %499 = sbr.rel (%p497) target = $region60
        $region59: #{forward.1} parent=11 // pred_region
          _
        $region60: #{forward.1} parent=11 // pred_fallthru
          _
        // Predicated region
        $region61: #{forward.1} parent=11 // pred_check
          %p500 = pneg %p350
        $region62: #{forward.1} parent=11 // pred_check_branch
          %502 = sbr.rel (%p500) target = $region64
        $region63: #{forward.1} parent=11 // pred_region
          _
        $region64: #{forward.1} parent=11 // pred_fallthru
          _
        // Predicated region
        $region65: #{forward.1} parent=11 // pred_check
          %p503 = pneg %p371
        $region66: #{forward.1} parent=11 // pred_check_branch
          %505 = sbr.rel (%p503) target = $region68
        $region67: #{forward.1} parent=11 // pred_region
          _
        $region68: #{forward.1} parent=11 // pred_fallthru
          _
        // Predicated region
        $region69: #{forward.1} parent=11 // pred_check
          %p506 = pneg %p392
        $region70: #{forward.1} parent=11 // pred_check_branch
          %508 = sbr.rel (%p506) target = $region72
        $region71: #{forward.1} parent=11 // pred_region
          _
        $region72: #{forward.1} parent=11 // pred_fallthru
          _
        // Predicated region
        $region73: #{forward.1} parent=11 // pred_check
          %p509 = pneg %p413
        $region74: #{forward.1} parent=11 // pred_check_branch
          %511 = sbr.rel (%p509) target = $region76
        $region75: #{forward.1} parent=11 // pred_region
          _
        $region76: #{forward.1} parent=11 // pred_fallthru
          _
      $region12: #{forward.1} parent=5 // pred_fallthru
        _
      %p512 = scmp.lt.s32.totalorder %s25, 2
      // Predicated region
      $region77: #{forward.1} parent=5 // pred_check
        %p513 = pneg %p512
      $region78: #{forward.1} parent=5 // pred_check_branch
        %515 = sbr.rel (%p513) target = $region80
      $region79: #{forward.1} parent=5 // pred_region
        // Predicated region
        $region81: #{forward.1} parent=79 // pred_check
          %p516 = pneg %p45
        $region82: #{forward.1} parent=79 // pred_check_branch
          %518 = sbr.rel (%p516) target = $region84
        $region83: #{forward.1} parent=79 // pred_region
          %p519 = scmp.lt.s32.totalorder %s25, 1
          %s520 = scalar_select %p519, %s25, 1
          %s521 = smul.addr %s520, 8
          %s522 = scalar_lea.vmem %s0, %s521
        $region84: #{forward.1} parent=79 // pred_fallthru
          _
        // Predicated region
        $region85: #{forward.1} parent=79 // pred_check
          %p523 = pneg %p71
        $region86: #{forward.1} parent=79 // pred_check_branch
          %525 = sbr.rel (%p523) target = $region88
        $region87: #{forward.1} parent=79 // pred_region
          %p526 = scmp.lt.s32.totalorder %s25, 1
          %s527 = scalar_select %p526, %s25, 1
          %s528 = scalar_lea.vmem %s1, %s527
        $region88: #{forward.1} parent=79 // pred_fallthru
          _
      $region80: #{forward.1} parent=5 // pred_fallthru
        _
      %p529 = scmp.le.s32.totalorder 1, %s25
      %p530 = scmp.lt.s32.totalorder %s25, 3
      %p531 = pnand %p529, %p530
      %p532 = pneg %p531
      // Predicated region
      $region89: #{forward.1} parent=5 // pred_check
        _
      $region90: #{forward.1} parent=5 // pred_check_branch
        %534 = sbr.rel (%p531) target = $region92
      $region91: #{forward.1} parent=5 // pred_region
        %s535 = ssub.s32 %s25, 1
        // Predicated region
        $region93: #{forward.1} parent=91 // pred_check
          %p536 = pneg %p140
        $region94: #{forward.1} parent=91 // pred_check_branch
          %538 = sbr.rel (%p536) target = $region96
        $region95: #{forward.1} parent=91 // pred_region
          %539 = dma.done [#allocation3], 1024
        $region96: #{forward.1} parent=91 // pred_fallthru
          _
        %p540 = scmp.lt.s32.totalorder %s30, 1
        %s541 = scalar_select %p540, %s30, 1
        %s542 = smul.addr %s541, 8
        %s543 = scalar_lea.vmem %s0, %s542
        %p544 = pneg %p51
        %p545 = pneg %p48
        %p546 = scmp.lt.s32.totalorder %s30, 1
        %s547 = scalar_select %p546, %s30, 1
        %s548 = scalar_lea.vmem %s1, %s547
        %p549 = pneg %p77
        %p550 = pneg %p74
        %p551 = pneg %p98
        %p552 = pneg %p95
        %p553 = pneg %p119
        %p554 = pneg %p116
        %p555 = pneg %p140
        %p556 = pneg %p137
        %p557 = pneg %p161
        %p558 = pneg %p158
        %p559 = pneg %p182
        %p560 = pneg %p179
        %p561 = pneg %p203
        %p562 = pneg %p200
        %p563 = pneg %p224
        %p564 = pneg %p221
        %p565 = pneg %p245
        %p566 = pneg %p242
        %p567 = pneg %p266
        %p568 = pneg %p263
        %p569 = pneg %p287
        %p570 = pneg %p284
        %p571 = pneg %p308
        %p572 = pneg %p305
        %p573 = pneg %p329
        %p574 = pneg %p326
        %p575 = pneg %p350
        %p576 = pneg %p347
        %p577 = pneg %p371
        %p578 = pneg %p368
        %p579 = pneg %p392
        %p580 = pneg %p389
        %p581 = pneg %p413
        %p582 = pneg %p410
        %p583 = pneg %p439
        %p584 = pneg %p436
        %p585 = scmp.lt.s32.totalorder %s30, 1
        %s586 = scalar_select %p585, %s30, 1
        %s587 = scalar_lea.vmem %s18, %s586
        %p588 = scmp.lt.s32.totalorder %s30, 1
        %s589 = scalar_select %p588, %s30, 1
        %s590 = smul.addr %s589, 8
        %s591 = scalar_lea.vmem %s0, %s590
        %p592 = scmp.lt.s32.totalorder %s30, 1
        %s593 = scalar_select %p592, %s30, 1
        %s594 = scalar_lea.vmem %s1, %s593
        %p595 = scmp.lt.s32.totalorder %s30, 1
        %s596 = scalar_select %p595, %s30, 1
        %s597 = scalar_lea.vmem %s18, %s596
        %v598 = vld [vmem:[%s591] sm:$0xff]
        %v599 = vld [vmem:[%s2] sm:$0x1]
        %v600 = vld [vmem:[%s3] sm:$0x1]
        %vm601 = vcmask 261120
        %v602 = vsel %vm601, %v598, 0.0
        %603 = vadd.xlane.f32.xlu0 %v602
        %v604 = vpop.xlane.xlu0 %603
        %v605 = vrcp.pop 32.0
        %v606 = vmul.f32 %v604, %v605
        %v607 = vmul.f32 %v598, %v598
        %v608 = vsel %vm601, %v607, 0.0
        %609 = vadd.xlane.f32.xlu0 %v608
        %v610 = vpop.xlane.xlu0 %609
        %v611 = vmul.f32 %v610, %v605
        %v612 = vmul.f32 %v606, %v606
        %v613 = vsub.f32 %v611, %v612
        %v614 = vsub.f32 %v598, %v606
        %v615 = vadd.f32 %v613, 1e-07
        %v616 = vrsqrt.pop %v615
        %v617 = vmul.f32 %v614, %v616
        %v619 = vlaneseq
        %v620 = vshrl.u32 %v619, 7
        %v621 = vsub.s32 0, %v620
        %v622 = vrot.slane %v599, %v621
        %v624 = vmul.f32 %v617, %v622
        %v626 = vlaneseq
        %v627 = vshrl.u32 %v626, 7
        %v628 = vsub.s32 0, %v627
        %v629 = vrot.slane %v600, %v628
        %v631 = vadd.f32 %v624, %v629
        %v632 = vld [vmem:[%s594] sm:$0x1]
        %v633 = vld [vmem:[#allocation2] sm:$0xff]
        %v634 = vld [vmem:[#allocation2 + $0x8] sm:$0xff]
        %v635 = vld [vmem:[#allocation2 + $0x10] sm:$0xff]
        %v636 = vld [vmem:[#allocation2 + $0x18] sm:$0xff]
        %v637 = vld [vmem:[%s5] sm:$0x1]
        %v639 = vlaneseq
        %v640 = vshrl.u32 %v639, 7
        %v641 = vsub.s32 0, %v640
        %v642 = vrot.slane %v637, %v641
        %v645 = vsel %vm601, %v631, 0
        %647 = vmatprep.subr.mxu0 0.0
        %648 = vmatpush1.msra.mxu0 0.0
        %649 = vmatprep.subr.mxu0 0.0
        %650 = vmatpush1.msra.mxu0 0.0
        %651 = vmatprep.subr.mxu0 0.0
        %652 = vmatpush1.msra.mxu0 0.0
        %653 = vmatprep.subr.mxu0 0.0
        %654 = vmatpush1.msra.mxu0 0.0
        %655 = vmatprep.subr.mxu0 0.0
        %656 = vmatpush1.msra.mxu0 0.0
        %657 = vmatprep.subr.mxu0 0.0
        %658 = vmatpush1.msra.mxu0 0.0
        %659 = vmatprep.subr.mxu0 0.0
        %660 = vmatpush1.msra.mxu0 0.0
        %661 = vmatprep.subr.mxu0 0.0
        %662 = vmatpush1.msra.mxu0 0.0
        %663 = vmatprep.subr.mxu0 0.0
        %664 = vmatpush1.msra.mxu0 0.0
        %665 = vmatprep.subr.mxu0 0.0
        %666 = vmatpush1.msra.mxu0 0.0
        %667 = vmatprep.subr.mxu0 0.0
        %668 = vmatpush1.msra.mxu0 0.0
        %669 = vmatprep.subr.mxu0 0.0
        %670 = vmatpush1.msra.mxu0 0.0
        %671 = vmatprep.subr.mxu0 0.0
        %672 = vmatpush1.msra.mxu0 %v636
        %673 = vmatprep.subr.mxu0 0.0
        %674 = vmatpush1.msra.mxu0 %v635
        %675 = vmatprep.subr.mxu0 0.0
        %676 = vmatpush1.msra.mxu0 %v634
        %677 = vmatprep.subr.mxu0 0.0
        %678 = vmatpush1.msra.mxu0 %v633
        %679 = vmatprep.subr.mxu0 0.0
        %680 = vmatpush2.msra.mxu0 0.0
        %681 = vmatprep.subr.mxu0 0.0
        %682 = vmatpush2.msra.mxu0 0.0
        %683 = vmatprep.subr.mxu0 0.0
        %684 = vmatpush2.msra.mxu0 0.0
        %685 = vmatprep.subr.mxu0 0.0
        %686 = vmatpush2.msra.mxu0 0.0
        %687 = vmatprep.subr.mxu0 0.0
        %688 = vmatpush2.msra.mxu0 0.0
        %689 = vmatprep.subr.mxu0 0.0
        %690 = vmatpush2.msra.mxu0 0.0
        %691 = vmatprep.subr.mxu0 0.0
        %692 = vmatpush2.msra.mxu0 0.0
        %693 = vmatprep.subr.mxu0 0.0
        %694 = vmatpush2.msra.mxu0 0.0
        %695 = vmatprep.subr.mxu0 0.0
        %696 = vmatpush2.msra.mxu0 0.0
        %697 = vmatprep.subr.mxu0 0.0
        %698 = vmatpush2.msra.mxu0 0.0
        %699 = vmatprep.subr.mxu0 0.0
        %700 = vmatpush2.msra.mxu0 0.0
        %701 = vmatprep.subr.mxu0 0.0
        %702 = vmatpush2.msra.mxu0 0.0
        %703 = vmatprep.subr.mxu0 0.0
        %704 = vmatpush2.msra.mxu0 0.0
        %705 = vmatprep.subr.mxu0 0.0
        %706 = vmatpush2.msra.mxu0 0.0
        %707 = vmatprep.subr.mxu0 0.0
        %708 = vmatpush2.msra.mxu0 0.0
        %709 = vmatprep.subr.mxu0 0.0
        %710 = vmatpush2.msra.mxu0 0.0
        %711 = vmatprep.mubr.f32.mxu0 0.0
        %712 = vmatmul.mubr.f32.gmra.mxu0 %v645
        %v713 = vpop.f32.mrf.mxu0
        %v714 = vadd.f32 %v642, %v713
        %v715 = vpop.f32.mrf.mxu0
        %716 = vdwg.mxu0
        %718 = vrot.lane.b32.xlu0 %v714, 112
        %v719 = vpop.permute.xlu0 %718
        %v721 = vcombine.high %v714, 0.0
        %v723 = vunpack.c.l.s4 1983009808
        %v724 = vunpack.c.0.s8 %v723
        %v725 = vlaneseq
        %v726 = vshrl.u32 %v725, 7
        %v727 = vsub.s32 %v724, %v726
        %v728 = vrot.slane %v714, %v727
        %v730 = vunpack.c.l.s4 1983009808
        %v731 = vunpack.c.0.s8 %v730
        %v732 = vlaneseq
        %v733 = vshrl.u32 %v732, 7
        %v734 = vsub.s32 %v731, %v733
        %v735 = vrot.slane %v721, %v734
        %v736 = vcombine.high %v719, 0.0
        %v738 = vunpack.c.l.s4 1983009808
        %v739 = vunpack.c.0.s8 %v738
        %v740 = vlaneseq
        %v741 = vshrl.u32 %v740, 7
        %v742 = vsub.s32 %v739, %v741
        %v743 = vrot.slane %v719, %v742
        %v745 = vunpack.c.l.s4 1983009808
        %v746 = vunpack.c.0.s8 %v745
        %v747 = vlaneseq
        %v748 = vshrl.u32 %v747, 7
        %v749 = vsub.s32 %v746, %v748
        %v750 = vrot.slane %v736, %v749
        %v751 = vcombine.low %v728, %v743
        %v752 = vcombine.high %v728, %v743
        %v754 = vunpack.c.l.s4 1934713408
        %v755 = vunpack.c.0.s8 %v754
        %v756 = vlaneseq
        %v757 = vshrl.u32 %v756, 7
        %v758 = vsub.s32 %v755, %v757
        %v759 = vrot.slane %v751, %v758
        %v761 = vunpack.c.l.s4 1934713408
        %v762 = vunpack.c.0.s8 %v761
        %v763 = vlaneseq
        %v764 = vshrl.u32 %v763, 7
        %v765 = vsub.s32 %v762, %v764
        %v766 = vrot.slane %v752, %v765
        %v767 = vcombine.low %v735, %v750
        %v768 = vcombine.high %v735, %v750
        %v770 = vunpack.c.l.s4 1934713408
        %v771 = vunpack.c.0.s8 %v770
        %v772 = vlaneseq
        %v773 = vshrl.u32 %v772, 7
        %v774 = vsub.s32 %v771, %v773
        %v775 = vrot.slane %v767, %v774
        %v777 = vunpack.c.l.s4 1934713408
        %v778 = vunpack.c.0.s8 %v777
        %v779 = vlaneseq
        %v780 = vshrl.u32 %v779, 7
        %v781 = vsub.s32 %v778, %v780
        %v782 = vrot.slane %v768, %v781
        %v783 = vcombine.high %v759, 0.0
        %v784 = vcombine.high %v766, 0.0
        %v785 = vcombine.high %v775, 0.0
        %v786 = vcombine.high %v782, 0.0
        %v787 = vcombine.low %v759, %v766
        %v789 = vunpack.c.l.s4 1983009808
        %v790 = vunpack.c.0.s8 %v789
        %v791 = vlaneseq
        %v792 = vshrl.u32 %v791, 7
        %v793 = vsub.s32 %v790, %v792
        %v794 = vrot.slane %v787, %v793
        %v795 = vcombine.low %v783, %v784
        %v797 = vunpack.c.l.s4 1983009808
        %v798 = vunpack.c.0.s8 %v797
        %v799 = vlaneseq
        %v800 = vshrl.u32 %v799, 7
        %v801 = vsub.s32 %v798, %v800
        %v802 = vrot.slane %v795, %v801
        %v803 = vcombine.low %v775, %v782
        %v805 = vunpack.c.l.s4 1983009808
        %v806 = vunpack.c.0.s8 %v805
        %v807 = vlaneseq
        %v808 = vshrl.u32 %v807, 7
        %v809 = vsub.s32 %v806, %v808
        %v810 = vrot.slane %v803, %v809
        %v811 = vcombine.low %v785, %v786
        %v813 = vunpack.c.l.s4 1983009808
        %v814 = vunpack.c.0.s8 %v813
        %v815 = vlaneseq
        %v816 = vshrl.u32 %v815, 7
        %v817 = vsub.s32 %v814, %v816
        %v818 = vrot.slane %v811, %v817
        %v819 = vcombine.low %v794, %v802
        %v821 = vunpack.c.l.s4 1934713408
        %v822 = vunpack.c.0.s8 %v821
        %v823 = vlaneseq
        %v824 = vshrl.u32 %v823, 7
        %v825 = vsub.s32 %v822, %v824
        %v826 = vrot.slane %v819, %v825
        %v827 = vcombine.low %v810, %v818
        %v829 = vunpack.c.l.s4 1934713408
        %v830 = vunpack.c.0.s8 %v829
        %v831 = vlaneseq
        %v832 = vshrl.u32 %v831, 7
        %v833 = vsub.s32 %v830, %v832
        %v834 = vrot.slane %v827, %v833
        %v835 = vcombine.low %v826, %v834
        %v836 = vcombine.high %v826, %v834
        %837 = vrot.lane.b32.xlu0 %v714, 96
        %v838 = vpop.permute.xlu0 %837
        %839 = vrot.lane.b32.xlu0 %v719, 96
        %v840 = vpop.permute.xlu0 %839
        %v843 = vcombine.high %v838, 0.0
        %v845 = vunpack.c.l.s4 1983009808
        %v846 = vunpack.c.0.s8 %v845
        %v847 = vlaneseq
        %v848 = vshrl.u32 %v847, 7
        %v849 = vsub.s32 %v846, %v848
        %v850 = vrot.slane %v838, %v849
        %v852 = vunpack.c.l.s4 1983009808
        %v853 = vunpack.c.0.s8 %v852
        %v854 = vlaneseq
        %v855 = vshrl.u32 %v854, 7
        %v856 = vsub.s32 %v853, %v855
        %v857 = vrot.slane %v843, %v856
        %v858 = vcombine.high %v840, 0.0
        %v860 = vunpack.c.l.s4 1983009808
        %v861 = vunpack.c.0.s8 %v860
        %v862 = vlaneseq
        %v863 = vshrl.u32 %v862, 7
        %v864 = vsub.s32 %v861, %v863
        %v865 = vrot.slane %v840, %v864
        %v867 = vunpack.c.l.s4 1983009808
        %v868 = vunpack.c.0.s8 %v867
        %v869 = vlaneseq
        %v870 = vshrl.u32 %v869, 7
        %v871 = vsub.s32 %v868, %v870
        %v872 = vrot.slane %v858, %v871
        %v873 = vcombine.low %v850, %v865
        %v874 = vcombine.high %v850, %v865
        %v876 = vunpack.c.l.s4 1934713408
        %v877 = vunpack.c.0.s8 %v876
        %v878 = vlaneseq
        %v879 = vshrl.u32 %v878, 7
        %v880 = vsub.s32 %v877, %v879
        %v881 = vrot.slane %v873, %v880
        %v883 = vunpack.c.l.s4 1934713408
        %v884 = vunpack.c.0.s8 %v883
        %v885 = vlaneseq
        %v886 = vshrl.u32 %v885, 7
        %v887 = vsub.s32 %v884, %v886
        %v888 = vrot.slane %v874, %v887
        %v889 = vcombine.low %v857, %v872
        %v890 = vcombine.high %v857, %v872
        %v892 = vunpack.c.l.s4 1934713408
        %v893 = vunpack.c.0.s8 %v892
        %v894 = vlaneseq
        %v895 = vshrl.u32 %v894, 7
        %v896 = vsub.s32 %v893, %v895
        %v897 = vrot.slane %v889, %v896
        %v899 = vunpack.c.l.s4 1934713408
        %v900 = vunpack.c.0.s8 %v899
        %v901 = vlaneseq
        %v902 = vshrl.u32 %v901, 7
        %v903 = vsub.s32 %v900, %v902
        %v904 = vrot.slane %v890, %v903
        %v905 = vcombine.high %v881, 0.0
        %v906 = vcombine.high %v888, 0.0
        %v907 = vcombine.high %v897, 0.0
        %v908 = vcombine.high %v904, 0.0
        %v909 = vcombine.low %v881, %v888
        %v911 = vunpack.c.l.s4 1983009808
        %v912 = vunpack.c.0.s8 %v911
        %v913 = vlaneseq
        %v914 = vshrl.u32 %v913, 7
        %v915 = vsub.s32 %v912, %v914
        %v916 = vrot.slane %v909, %v915
        %v917 = vcombine.low %v905, %v906
        %v919 = vunpack.c.l.s4 1983009808
        %v920 = vunpack.c.0.s8 %v919
        %v921 = vlaneseq
        %v922 = vshrl.u32 %v921, 7
        %v923 = vsub.s32 %v920, %v922
        %v924 = vrot.slane %v917, %v923
        %v925 = vcombine.low %v897, %v904
        %v927 = vunpack.c.l.s4 1983009808
        %v928 = vunpack.c.0.s8 %v927
        %v929 = vlaneseq
        %v930 = vshrl.u32 %v929, 7
        %v931 = vsub.s32 %v928, %v930
        %v932 = vrot.slane %v925, %v931
        %v933 = vcombine.low %v907, %v908
        %v935 = vunpack.c.l.s4 1983009808
        %v936 = vunpack.c.0.s8 %v935
        %v937 = vlaneseq
        %v938 = vshrl.u32 %v937, 7
        %v939 = vsub.s32 %v936, %v938
        %v940 = vrot.slane %v933, %v939
        %v941 = vcombine.low %v916, %v924
        %v943 = vunpack.c.l.s4 1934713408
        %v944 = vunpack.c.0.s8 %v943
        %v945 = vlaneseq
        %v946 = vshrl.u32 %v945, 7
        %v947 = vsub.s32 %v944, %v946
        %v948 = vrot.slane %v941, %v947
        %v949 = vcombine.low %v932, %v940
        %v951 = vunpack.c.l.s4 1934713408
        %v952 = vunpack.c.0.s8 %v951
        %v953 = vlaneseq
        %v954 = vshrl.u32 %v953, 7
        %v955 = vsub.s32 %v952, %v954
        %v956 = vrot.slane %v949, %v955
        %v957 = vcombine.low %v948, %v956
        %v958 = vcombine.high %v948, %v956
        %959 = vrot.lane.b32.xlu0 %v714, 64
        %v960 = vpop.permute.xlu0 %959
        %961 = vrot.lane.b32.xlu0 %v719, 64
        %v962 = vpop.permute.xlu0 %961
        %v965 = vcombine.high %v960, 0.0
        %v967 = vunpack.c.l.s4 1983009808
        %v968 = vunpack.c.0.s8 %v967
        %v969 = vlaneseq
        %v970 = vshrl.u32 %v969, 7
        %v971 = vsub.s32 %v968, %v970
        %v972 = vrot.slane %v960, %v971
        %v974 = vunpack.c.l.s4 1983009808
        %v975 = vunpack.c.0.s8 %v974
        %v976 = vlaneseq
        %v977 = vshrl.u32 %v976, 7
        %v978 = vsub.s32 %v975, %v977
        %v979 = vrot.slane %v965, %v978
        %v980 = vcombine.high %v962, 0.0
        %v982 = vunpack.c.l.s4 1983009808
        %v983 = vunpack.c.0.s8 %v982
        %v984 = vlaneseq
        %v985 = vshrl.u32 %v984, 7
        %v986 = vsub.s32 %v983, %v985
        %v987 = vrot.slane %v962, %v986
        %v989 = vunpack.c.l.s4 1983009808
        %v990 = vunpack.c.0.s8 %v989
        %v991 = vlaneseq
        %v992 = vshrl.u32 %v991, 7
        %v993 = vsub.s32 %v990, %v992
        %v994 = vrot.slane %v980, %v993
        %v995 = vcombine.low %v972, %v987
        %v996 = vcombine.high %v972, %v987
        %v998 = vunpack.c.l.s4 1934713408
        %v999 = vunpack.c.0.s8 %v998
        %v1000 = vlaneseq
        %v1001 = vshrl.u32 %v1000, 7
        %v1002 = vsub.s32 %v999, %v1001
        %v1003 = vrot.slane %v995, %v1002
        %v1005 = vunpack.c.l.s4 1934713408
        %v1006 = vunpack.c.0.s8 %v1005
        %v1007 = vlaneseq
        %v1008 = vshrl.u32 %v1007, 7
        %v1009 = vsub.s32 %v1006, %v1008
        %v1010 = vrot.slane %v996, %v1009
        %v1011 = vcombine.low %v979, %v994
        %v1012 = vcombine.high %v979, %v994
        %v1014 = vunpack.c.l.s4 1934713408
        %v1015 = vunpack.c.0.s8 %v1014
        %v1016 = vlaneseq
        %v1017 = vshrl.u32 %v1016, 7
        %v1018 = vsub.s32 %v1015, %v1017
        %v1019 = vrot.slane %v1011, %v1018
        %v1021 = vunpack.c.l.s4 1934713408
        %v1022 = vunpack.c.0.s8 %v1021
        %v1023 = vlaneseq
        %v1024 = vshrl.u32 %v1023, 7
        %v1025 = vsub.s32 %v1022, %v1024
        %v1026 = vrot.slane %v1012, %v1025
        %v1027 = vcombine.high %v1003, 0.0
        %v1028 = vcombine.high %v1010, 0.0
        %v1029 = vcombine.high %v1019, 0.0
        %v1030 = vcombine.high %v1026, 0.0
        %v1031 = vcombine.low %v1003, %v1010
        %v1033 = vunpack.c.l.s4 1983009808
        %v1034 = vunpack.c.0.s8 %v1033
        %v1035 = vlaneseq
        %v1036 = vshrl.u32 %v1035, 7
        %v1037 = vsub.s32 %v1034, %v1036
        %v1038 = vrot.slane %v1031, %v1037
        %v1039 = vcombine.low %v1027, %v1028
        %v1041 = vunpack.c.l.s4 1983009808
        %v1042 = vunpack.c.0.s8 %v1041
        %v1043 = vlaneseq
        %v1044 = vshrl.u32 %v1043, 7
        %v1045 = vsub.s32 %v1042, %v1044
        %v1046 = vrot.slane %v1039, %v1045
        %v1047 = vcombine.low %v1019, %v1026
        %v1049 = vunpack.c.l.s4 1983009808
        %v1050 = vunpack.c.0.s8 %v1049
        %v1051 = vlaneseq
        %v1052 = vshrl.u32 %v1051, 7
        %v1053 = vsub.s32 %v1050, %v1052
        %v1054 = vrot.slane %v1047, %v1053
        %v1055 = vcombine.low %v1029, %v1030
        %v1057 = vunpack.c.l.s4 1983009808
        %v1058 = vunpack.c.0.s8 %v1057
        %v1059 = vlaneseq
        %v1060 = vshrl.u32 %v1059, 7
        %v1061 = vsub.s32 %v1058, %v1060
        %v1062 = vrot.slane %v1055, %v1061
        %v1063 = vcombine.low %v1038, %v1046
        %v1065 = vunpack.c.l.s4 1934713408
        %v1066 = vunpack.c.0.s8 %v1065
        %v1067 = vlaneseq
        %v1068 = vshrl.u32 %v1067, 7
        %v1069 = vsub.s32 %v1066, %v1068
        %v1070 = vrot.slane %v1063, %v1069
        %v1071 = vcombine.low %v1054, %v1062
        %v1073 = vunpack.c.l.s4 1934713408
        %v1074 = vunpack.c.0.s8 %v1073
        %v1075 = vlaneseq
        %v1076 = vshrl.u32 %v1075, 7
        %v1077 = vsub.s32 %v1074, %v1076
        %v1078 = vrot.slane %v1071, %v1077
        %v1079 = vcombine.low %v1070, %v1078
        %v1080 = vcombine.high %v1070, %v1078
        %v1082 = vlaneseq
        %v1083 = vshrl.u32 %v1082, 7
        %v1084 = vsub.s32 0, %v1083
        %v1085 = vrot.slane %v632, %v1084
        %vm1087 = vcmask 130048
        %v1089 = vsel %vm1087, %v835, 0
        %v1092 = vsel %vm1087, %v957, 0
        %1094 = vmatprep.subr.mxu0 0.0
        %1095 = vmatpush1.xpose.msra.mxu0 0.0
        %1096 = vmatprep.subr.mxu0 0.0
        %1097 = vmatpush1.xpose.msra.mxu0 0.0
        %1098 = vmatprep.subr.mxu0 0.0
        %1099 = vmatpush1.xpose.msra.mxu0 0.0
        %1100 = vmatprep.subr.mxu0 0.0
        %1101 = vmatpush1.xpose.msra.mxu0 0.0
        %1102 = vmatprep.subr.mxu0 0.0
        %1103 = vmatpush1.xpose.msra.mxu0 0.0
        %1104 = vmatprep.subr.mxu0 0.0
        %1105 = vmatpush1.xpose.msra.mxu0 0.0
        %1106 = vmatprep.subr.mxu0 0.0
        %1107 = vmatpush1.xpose.msra.mxu0 0.0
        %1108 = vmatprep.subr.mxu0 0.0
        %1109 = vmatpush1.xpose.msra.mxu0 0.0
        %1110 = vmatprep.subr.mxu0 0.0
        %1111 = vmatpush1.xpose.msra.mxu0 0.0
        %1112 = vmatprep.subr.mxu0 0.0
        %1113 = vmatpush1.xpose.msra.mxu0 0.0
        %1114 = vmatprep.subr.mxu0 0.0
        %1115 = vmatpush1.xpose.msra.mxu0 0.0
        %1116 = vmatprep.subr.mxu0 0.0
        %1117 = vmatpush1.xpose.msra.mxu0 0.0
        %1118 = vmatprep.subr.mxu0 0.0
        %1119 = vmatpush1.xpose.msra.mxu0 0.0
        %1120 = vmatprep.subr.mxu0 0.0
        %1121 = vmatpush1.xpose.msra.mxu0 0.0
        %1122 = vmatprep.subr.mxu0 0.0
        %1123 = vmatpush1.xpose.msra.mxu0 0.0
        %1124 = vmatprep.subr.mxu0 0.0
        %1125 = vmatpush1.xpose.msra.mxu0 %v1092
        %1126 = vmatprep.subr.mxu0 0.0
        %1127 = vmatpush2.xpose.msra.mxu0 0.0
        %1128 = vmatprep.subr.mxu0 0.0
        %1129 = vmatpush2.xpose.msra.mxu0 0.0
        %1130 = vmatprep.subr.mxu0 0.0
        %1131 = vmatpush2.xpose.msra.mxu0 0.0
        %1132 = vmatprep.subr.mxu0 0.0
        %1133 = vmatpush2.xpose.msra.mxu0 0.0
        %1134 = vmatprep.subr.mxu0 0.0
        %1135 = vmatpush2.xpose.msra.mxu0 0.0
        %1136 = vmatprep.subr.mxu0 0.0
        %1137 = vmatpush2.xpose.msra.mxu0 0.0
        %1138 = vmatprep.subr.mxu0 0.0
        %1139 = vmatpush2.xpose.msra.mxu0 0.0
        %1140 = vmatprep.subr.mxu0 0.0
        %1141 = vmatpush2.xpose.msra.mxu0 0.0
        %1142 = vmatprep.subr.mxu0 0.0
        %1143 = vmatpush2.xpose.msra.mxu0 0.0
        %1144 = vmatprep.subr.mxu0 0.0
        %1145 = vmatpush2.xpose.msra.mxu0 0.0
        %1146 = vmatprep.subr.mxu0 0.0
        %1147 = vmatpush2.xpose.msra.mxu0 0.0
        %1148 = vmatprep.subr.mxu0 0.0
        %1149 = vmatpush2.xpose.msra.mxu0 0.0
        %1150 = vmatprep.subr.mxu0 0.0
        %1151 = vmatpush2.xpose.msra.mxu0 0.0
        %1152 = vmatprep.subr.mxu0 0.0
        %1153 = vmatpush2.xpose.msra.mxu0 0.0
        %1154 = vmatprep.subr.mxu0 0.0
        %1155 = vmatpush2.xpose.msra.mxu0 0.0
        %1156 = vmatprep.subr.mxu0 0.0
        %1157 = vmatpush2.xpose.msra.mxu0 0.0
        %1158 = vmatprep.mubr.f32.mxu0 0.0
        %1159 = vmatmul.mubr.f32.gmra.mxu0 %v1089
        %v1160 = vpop.f32.mrf.mxu0
        %v1161 = vadd.f32 %v1085, %v1160
        %v1162 = vpop.f32.mrf.mxu0
        %1163 = vdwg.mxu0
        %v1165 = vsel %vm1087, %v836, 0
        %v1168 = vsel %vm1087, %v958, 0
        %1170 = vmatprep.subr.mxu0 0.0
        %1171 = vmatpush1.xpose.msra.mxu0 0.0
        %1172 = vmatprep.subr.mxu0 0.0
        %1173 = vmatpush1.xpose.msra.mxu0 0.0
        %1174 = vmatprep.subr.mxu0 0.0
        %1175 = vmatpush1.xpose.msra.mxu0 0.0
        %1176 = vmatprep.subr.mxu0 0.0
        %1177 = vmatpush1.xpose.msra.mxu0 0.0
        %1178 = vmatprep.subr.mxu0 0.0
        %1179 = vmatpush1.xpose.msra.mxu0 0.0
        %1180 = vmatprep.subr.mxu0 0.0
        %1181 = vmatpush1.xpose.msra.mxu0 0.0
        %1182 = vmatprep.subr.mxu0 0.0
        %1183 = vmatpush1.xpose.msra.mxu0 0.0
        %1184 = vmatprep.subr.mxu0 0.0
        %1185 = vmatpush1.xpose.msra.mxu0 0.0
        %1186 = vmatprep.subr.mxu0 0.0
        %1187 = vmatpush1.xpose.msra.mxu0 0.0
        %1188 = vmatprep.subr.mxu0 0.0
        %1189 = vmatpush1.xpose.msra.mxu0 0.0
        %1190 = vmatprep.subr.mxu0 0.0
        %1191 = vmatpush1.xpose.msra.mxu0 0.0
        %1192 = vmatprep.subr.mxu0 0.0
        %1193 = vmatpush1.xpose.msra.mxu0 0.0
        %1194 = vmatprep.subr.mxu0 0.0
        %1195 = vmatpush1.xpose.msra.mxu0 0.0
        %1196 = vmatprep.subr.mxu0 0.0
        %1197 = vmatpush1.xpose.msra.mxu0 0.0
        %1198 = vmatprep.subr.mxu0 0.0
        %1199 = vmatpush1.xpose.msra.mxu0 0.0
        %1200 = vmatprep.subr.mxu0 0.0
        %1201 = vmatpush1.xpose.msra.mxu0 %v1168
        %1202 = vmatprep.subr.mxu0 0.0
        %1203 = vmatpush2.xpose.msra.mxu0 0.0
        %1204 = vmatprep.subr.mxu0 0.0
        %1205 = vmatpush2.xpose.msra.mxu0 0.0
        %1206 = vmatprep.subr.mxu0 0.0
        %1207 = vmatpush2.xpose.msra.mxu0 0.0
        %1208 = vmatprep.subr.mxu0 0.0
        %1209 = vmatpush2.xpose.msra.mxu0 0.0
        %1210 = vmatprep.subr.mxu0 0.0
        %1211 = vmatpush2.xpose.msra.mxu0 0.0
        %1212 = vmatprep.subr.mxu0 0.0
        %1213 = vmatpush2.xpose.msra.mxu0 0.0
        %1214 = vmatprep.subr.mxu0 0.0
        %1215 = vmatpush2.xpose.msra.mxu0 0.0
        %1216 = vmatprep.subr.mxu0 0.0
        %1217 = vmatpush2.xpose.msra.mxu0 0.0
        %1218 = vmatprep.subr.mxu0 0.0
        %1219 = vmatpush2.xpose.msra.mxu0 0.0
        %1220 = vmatprep.subr.mxu0 0.0
        %1221 = vmatpush2.xpose.msra.mxu0 0.0
        %1222 = vmatprep.subr.mxu0 0.0
        %1223 = vmatpush2.xpose.msra.mxu0 0.0
        %1224 = vmatprep.subr.mxu0 0.0
        %1225 = vmatpush2.xpose.msra.mxu0 0.0
        %1226 = vmatprep.subr.mxu0 0.0
        %1227 = vmatpush2.xpose.msra.mxu0 0.0
        %1228 = vmatprep.subr.mxu0 0.0
        %1229 = vmatpush2.xpose.msra.mxu0 0.0
        %1230 = vmatprep.subr.mxu0 0.0
        %1231 = vmatpush2.xpose.msra.mxu0 0.0
        %1232 = vmatprep.subr.mxu0 0.0
        %1233 = vmatpush2.xpose.msra.mxu0 0.0
        %1234 = vmatprep.mubr.f32.mxu0 0.0
        %1235 = vmatmul.mubr.f32.gmra.mxu0 %v1165
        %v1236 = vpop.f32.mrf.mxu0
        %v1237 = vadd.f32 %v1085, %v1236
        %v1238 = vpop.f32.mrf.mxu0
        %1239 = vdwg.mxu0
        %vm1240 = vcmask 64512
        %v1241 = vsel %vm1240, %v1161, -inf
        %1242 = vmax.xlane.f32.xlu0 %v1241
        %v1243 = vpop.xlane.xlu0 %1242
        %v1244 = vsel %vm1240, %v1237, -inf
        %1245 = vmax.xlane.f32.xlu0 %v1244
        %v1246 = vpop.xlane.xlu0 %1245
        %v1247 = vsub.f32 %v1161, %v1243
        %v1248 = vsub.f32 %v1237, %v1246
        %v1249 = vmul.f32 %v1247, 1.442695
        %v1250 = vpow.pop %v1249
        %v1251 = vmul.f32 %v1248, 1.442695
        %v1252 = vpow.pop %v1251
        %v1253 = vsel %vm1240, %v1250, 0.0
        %1254 = vadd.xlane.f32.xlu0 %v1253
        %v1255 = vpop.xlane.xlu0 %1254
        %v1256 = vsel %vm1240, %v1252, 0.0
        %1257 = vadd.xlane.f32.xlu0 %v1256
        %v1258 = vpop.xlane.xlu0 %1257
        %v1259 = vrcp.pop %v1255
        %v1260 = vrcp.pop %v1258
        %v1261 = vmul.f32 %v1250, %v1259
        %v1262 = vmul.f32 %v1252, %v1260
        %v1264 = vsel %vm1240, %v1261, 0
        %1266 = vmatprep.subr.mxu0 0.0
        %1267 = vmatpush1.msra.mxu0 0.0
        %1268 = vmatprep.subr.mxu0 0.0
        %1269 = vmatpush1.msra.mxu0 0.0
        %1270 = vmatprep.subr.mxu0 0.0
        %1271 = vmatpush1.msra.mxu0 0.0
        %1272 = vmatprep.subr.mxu0 0.0
        %1273 = vmatpush1.msra.mxu0 0.0
        %1274 = vmatprep.subr.mxu0 0.0
        %1275 = vmatpush1.msra.mxu0 0.0
        %1276 = vmatprep.subr.mxu0 0.0
        %1277 = vmatpush1.msra.mxu0 0.0
        %1278 = vmatprep.subr.mxu0 0.0
        %1279 = vmatpush1.msra.mxu0 0.0
        %1280 = vmatprep.subr.mxu0 0.0
        %1281 = vmatpush1.msra.mxu0 0.0
        %1282 = vmatprep.subr.mxu0 0.0
        %1283 = vmatpush1.msra.mxu0 0.0
        %1284 = vmatprep.subr.mxu0 0.0
        %1285 = vmatpush1.msra.mxu0 0.0
        %1286 = vmatprep.subr.mxu0 0.0
        %1287 = vmatpush1.msra.mxu0 0.0
        %1288 = vmatprep.subr.mxu0 0.0
        %1289 = vmatpush1.msra.mxu0 0.0
        %1290 = vmatprep.subr.mxu0 0.0
        %1291 = vmatpush1.msra.mxu0 0.0
        %1292 = vmatprep.subr.mxu0 0.0
        %1293 = vmatpush1.msra.mxu0 0.0
        %1294 = vmatprep.subr.mxu0 0.0
        %1295 = vmatpush1.msra.mxu0 0.0
        %1296 = vmatprep.subr.mxu0 0.0
        %1297 = vmatpush1.msra.mxu0 %v1079
        %1298 = vmatprep.subr.mxu0 0.0
        %1299 = vmatpush2.msra.mxu0 0.0
        %1300 = vmatprep.subr.mxu0 0.0
        %1301 = vmatpush2.msra.mxu0 0.0
        %1302 = vmatprep.subr.mxu0 0.0
        %1303 = vmatpush2.msra.mxu0 0.0
        %1304 = vmatprep.subr.mxu0 0.0
        %1305 = vmatpush2.msra.mxu0 0.0
        %1306 = vmatprep.subr.mxu0 0.0
        %1307 = vmatpush2.msra.mxu0 0.0
        %1308 = vmatprep.subr.mxu0 0.0
        %1309 = vmatpush2.msra.mxu0 0.0
        %1310 = vmatprep.subr.mxu0 0.0
        %1311 = vmatpush2.msra.mxu0 0.0
        %1312 = vmatprep.subr.mxu0 0.0
        %1313 = vmatpush2.msra.mxu0 0.0
        %1314 = vmatprep.subr.mxu0 0.0
        %1315 = vmatpush2.msra.mxu0 0.0
        %1316 = vmatprep.subr.mxu0 0.0
        %1317 = vmatpush2.msra.mxu0 0.0
        %1318 = vmatprep.subr.mxu0 0.0
        %1319 = vmatpush2.msra.mxu0 0.0
        %1320 = vmatprep.subr.mxu0 0.0
        %1321 = vmatpush2.msra.mxu0 0.0
        %1322 = vmatprep.subr.mxu0 0.0
        %1323 = vmatpush2.msra.mxu0 0.0
        %1324 = vmatprep.subr.mxu0 0.0
        %1325 = vmatpush2.msra.mxu0 0.0
        %1326 = vmatprep.subr.mxu0 0.0
        %1327 = vmatpush2.msra.mxu0 0.0
        %1328 = vmatprep.subr.mxu0 0.0
        %1329 = vmatpush2.msra.mxu0 0.0
        %1330 = vmatprep.mubr.f32.mxu0 0.0
        %1331 = vmatmul.mubr.f32.gmra.mxu0 %v1264
        %v1332 = vpop.f32.mrf.mxu0
        %v1333 = vadd.f32 0.0, %v1332
        %v1334 = vpop.f32.mrf.mxu0
        %1335 = vdwg.mxu0
        %v1337 = vsel %vm1240, %v1262, 0
        %1339 = vmatprep.subr.mxu0 0.0
        %1340 = vmatpush1.msra.mxu0 0.0
        %1341 = vmatprep.subr.mxu0 0.0
        %1342 = vmatpush1.msra.mxu0 0.0
        %1343 = vmatprep.subr.mxu0 0.0
        %1344 = vmatpush1.msra.mxu0 0.0
        %1345 = vmatprep.subr.mxu0 0.0
        %1346 = vmatpush1.msra.mxu0 0.0
        %1347 = vmatprep.subr.mxu0 0.0
        %1348 = vmatpush1.msra.mxu0 0.0
        %1349 = vmatprep.subr.mxu0 0.0
        %1350 = vmatpush1.msra.mxu0 0.0
        %1351 = vmatprep.subr.mxu0 0.0
        %1352 = vmatpush1.msra.mxu0 0.0
        %1353 = vmatprep.subr.mxu0 0.0
        %1354 = vmatpush1.msra.mxu0 0.0
        %1355 = vmatprep.subr.mxu0 0.0
        %1356 = vmatpush1.msra.mxu0 0.0
        %1357 = vmatprep.subr.mxu0 0.0
        %1358 = vmatpush1.msra.mxu0 0.0
        %1359 = vmatprep.subr.mxu0 0.0
        %1360 = vmatpush1.msra.mxu0 0.0
        %1361 = vmatprep.subr.mxu0 0.0
        %1362 = vmatpush1.msra.mxu0 0.0
        %1363 = vmatprep.subr.mxu0 0.0
        %1364 = vmatpush1.msra.mxu0 0.0
        %1365 = vmatprep.subr.mxu0 0.0
        %1366 = vmatpush1.msra.mxu0 0.0
        %1367 = vmatprep.subr.mxu0 0.0
        %1368 = vmatpush1.msra.mxu0 0.0
        %1369 = vmatprep.subr.mxu0 0.0
        %1370 = vmatpush1.msra.mxu0 %v1080
        %1371 = vmatprep.subr.mxu0 0.0
        %1372 = vmatpush2.msra.mxu0 0.0
        %1373 = vmatprep.subr.mxu0 0.0
        %1374 = vmatpush2.msra.mxu0 0.0
        %1375 = vmatprep.subr.mxu0 0.0
        %1376 = vmatpush2.msra.mxu0 0.0
        %1377 = vmatprep.subr.mxu0 0.0
        %1378 = vmatpush2.msra.mxu0 0.0
        %1379 = vmatprep.subr.mxu0 0.0
        %1380 = vmatpush2.msra.mxu0 0.0
        %1381 = vmatprep.subr.mxu0 0.0
        %1382 = vmatpush2.msra.mxu0 0.0
        %1383 = vmatprep.subr.mxu0 0.0
        %1384 = vmatpush2.msra.mxu0 0.0
        %1385 = vmatprep.subr.mxu0 0.0
        %1386 = vmatpush2.msra.mxu0 0.0
        %1387 = vmatprep.subr.mxu0 0.0
        %1388 = vmatpush2.msra.mxu0 0.0
        %1389 = vmatprep.subr.mxu0 0.0
        %1390 = vmatpush2.msra.mxu0 0.0
        %1391 = vmatprep.subr.mxu0 0.0
        %1392 = vmatpush2.msra.mxu0 0.0
        %1393 = vmatprep.subr.mxu0 0.0
        %1394 = vmatpush2.msra.mxu0 0.0
        %1395 = vmatprep.subr.mxu0 0.0
        %1396 = vmatpush2.msra.mxu0 0.0
        %1397 = vmatprep.subr.mxu0 0.0
        %1398 = vmatpush2.msra.mxu0 0.0
        %1399 = vmatprep.subr.mxu0 0.0
        %1400 = vmatpush2.msra.mxu0 0.0
        %1401 = vmatprep.subr.mxu0 0.0
        %1402 = vmatpush2.msra.mxu0 0.0
        %1403 = vmatprep.mubr.f32.mxu0 0.0
        %1404 = vmatmul.mubr.f32.gmra.mxu0 %v1337
        %v1405 = vpop.f32.mrf.mxu0
        %v1406 = vadd.f32 0.0, %v1405
        %v1407 = vpop.f32.mrf.mxu0
        %1408 = vdwg.mxu0
        %v1409 = vcombine.high %v1333, 0.0
        %v1411 = vunpack.c.l.s4 1983009808
        %v1412 = vunpack.c.0.s8 %v1411
        %v1413 = vlaneseq
        %v1414 = vshrl.u32 %v1413, 7
        %v1415 = vsub.s32 %v1412, %v1414
        %v1416 = vrot.slane %v1333, %v1415
        %v1418 = vunpack.c.l.s4 1983009808
        %v1419 = vunpack.c.0.s8 %v1418
        %v1420 = vlaneseq
        %v1421 = vshrl.u32 %v1420, 7
        %v1422 = vsub.s32 %v1419, %v1421
        %v1423 = vrot.slane %v1409, %v1422
        %v1424 = vcombine.high %v1406, 0.0
        %v1426 = vunpack.c.l.s4 1983009808
        %v1427 = vunpack.c.0.s8 %v1426
        %v1428 = vlaneseq
        %v1429 = vshrl.u32 %v1428, 7
        %v1430 = vsub.s32 %v1427, %v1429
        %v1431 = vrot.slane %v1406, %v1430
        %v1433 = vunpack.c.l.s4 1983009808
        %v1434 = vunpack.c.0.s8 %v1433
        %v1435 = vlaneseq
        %v1436 = vshrl.u32 %v1435, 7
        %v1437 = vsub.s32 %v1434, %v1436
        %v1438 = vrot.slane %v1424, %v1437
        %v1439 = vcombine.low %v1416, %v1431
        %v1440 = vcombine.high %v1416, %v1431
        %v1442 = vunpack.c.l.s4 1934713408
        %v1443 = vunpack.c.0.s8 %v1442
        %v1444 = vlaneseq
        %v1445 = vshrl.u32 %v1444, 7
        %v1446 = vsub.s32 %v1443, %v1445
        %v1447 = vrot.slane %v1439, %v1446
        %v1449 = vunpack.c.l.s4 1934713408
        %v1450 = vunpack.c.0.s8 %v1449
        %v1451 = vlaneseq
        %v1452 = vshrl.u32 %v1451, 7
        %v1453 = vsub.s32 %v1450, %v1452
        %v1454 = vrot.slane %v1440, %v1453
        %v1455 = vcombine.low %v1423, %v1438
        %v1456 = vcombine.high %v1423, %v1438
        %v1458 = vunpack.c.l.s4 1934713408
        %v1459 = vunpack.c.0.s8 %v1458
        %v1460 = vlaneseq
        %v1461 = vshrl.u32 %v1460, 7
        %v1462 = vsub.s32 %v1459, %v1461
        %v1463 = vrot.slane %v1455, %v1462
        %v1465 = vunpack.c.l.s4 1934713408
        %v1466 = vunpack.c.0.s8 %v1465
        %v1467 = vlaneseq
        %v1468 = vshrl.u32 %v1467, 7
        %v1469 = vsub.s32 %v1466, %v1468
        %v1470 = vrot.slane %v1456, %v1469
        %v1471 = vcombine.high %v1447, 0.0
        %v1472 = vcombine.high %v1454, 0.0
        %v1473 = vcombine.high %v1463, 0.0
        %v1474 = vcombine.high %v1470, 0.0
        %v1475 = vcombine.low %v1447, %v1454
        %v1477 = vunpack.c.l.s4 1983009808
        %v1478 = vunpack.c.0.s8 %v1477
        %v1479 = vlaneseq
        %v1480 = vshrl.u32 %v1479, 7
        %v1481 = vsub.s32 %v1478, %v1480
        %v1482 = vrot.slane %v1475, %v1481
        %v1483 = vcombine.low %v1471, %v1472
        %v1485 = vunpack.c.l.s4 1983009808
        %v1486 = vunpack.c.0.s8 %v1485
        %v1487 = vlaneseq
        %v1488 = vshrl.u32 %v1487, 7
        %v1489 = vsub.s32 %v1486, %v1488
        %v1490 = vrot.slane %v1483, %v1489
        %v1491 = vcombine.low %v1463, %v1470
        %v1493 = vunpack.c.l.s4 1983009808
        %v1494 = vunpack.c.0.s8 %v1493
        %v1495 = vlaneseq
        %v1496 = vshrl.u32 %v1495, 7
        %v1497 = vsub.s32 %v1494, %v1496
        %v1498 = vrot.slane %v1491, %v1497
        %v1499 = vcombine.low %v1473, %v1474
        %v1501 = vunpack.c.l.s4 1983009808
        %v1502 = vunpack.c.0.s8 %v1501
        %v1503 = vlaneseq
        %v1504 = vshrl.u32 %v1503, 7
        %v1505 = vsub.s32 %v1502, %v1504
        %v1506 = vrot.slane %v1499, %v1505
        %v1507 = vcombine.low %v1482, %v1490
        %v1509 = vunpack.c.l.s4 1934713408
        %v1510 = vunpack.c.0.s8 %v1509
        %v1511 = vlaneseq
        %v1512 = vshrl.u32 %v1511, 7
        %v1513 = vsub.s32 %v1510, %v1512
        %v1514 = vrot.slane %v1507, %v1513
        %v1515 = vcombine.low %v1498, %v1506
        %v1517 = vunpack.c.l.s4 1934713408
        %v1518 = vunpack.c.0.s8 %v1517
        %v1519 = vlaneseq
        %v1520 = vshrl.u32 %v1519, 7
        %v1521 = vsub.s32 %v1518, %v1520
        %v1522 = vrot.slane %v1515, %v1521
        %v1523 = vcombine.low %v1514, %v1522
        %v1524 = vcombine.high %v1514, %v1522
        %1526 = vrot.lane.b32.xlu0 %v1524, 16
        %v1527 = vpop.permute.xlu0 %1526
        %v1529 = vsel %vm1087, %v1523, %v1527
        %v1530 = vld [vmem:[%s6] sm:$0xff]
        %v1531 = vld [vmem:[%s6 + $0x8] sm:$0xff]
        %v1532 = vld [vmem:[%s6 + $0x10] sm:$0xff]
        %v1533 = vld [vmem:[%s6 + $0x18] sm:$0xff]
        %v1534 = vld [vmem:[%s7] sm:$0x1]
        %v1536 = vlaneseq
        %v1537 = vshrl.u32 %v1536, 7
        %v1538 = vsub.s32 0, %v1537
        %v1539 = vrot.slane %v1534, %v1538
        %v1542 = vsel %vm601, %v1529, 0
        %1544 = vmatprep.subr.mxu0 0.0
        %1545 = vmatpush1.msra.mxu0 0.0
        %1546 = vmatprep.subr.mxu0 0.0
        %1547 = vmatpush1.msra.mxu0 0.0
        %1548 = vmatprep.subr.mxu0 0.0
        %1549 = vmatpush1.msra.mxu0 0.0
        %1550 = vmatprep.subr.mxu0 0.0
        %1551 = vmatpush1.msra.mxu0 0.0
        %1552 = vmatprep.subr.mxu0 0.0
        %1553 = vmatpush1.msra.mxu0 0.0
        %1554 = vmatprep.subr.mxu0 0.0
        %1555 = vmatpush1.msra.mxu0 0.0
        %1556 = vmatprep.subr.mxu0 0.0
        %1557 = vmatpush1.msra.mxu0 0.0
        %1558 = vmatprep.subr.mxu0 0.0
        %1559 = vmatpush1.msra.mxu0 0.0
        %1560 = vmatprep.subr.mxu0 0.0
        %1561 = vmatpush1.msra.mxu0 0.0
        %1562 = vmatprep.subr.mxu0 0.0
        %1563 = vmatpush1.msra.mxu0 0.0
        %1564 = vmatprep.subr.mxu0 0.0
        %1565 = vmatpush1.msra.mxu0 0.0
        %1566 = vmatprep.subr.mxu0 0.0
        %1567 = vmatpush1.msra.mxu0 0.0
        %1568 = vmatprep.subr.mxu0 0.0
        %1569 = vmatpush1.msra.mxu0 %v1533
        %1570 = vmatprep.subr.mxu0 0.0
        %1571 = vmatpush1.msra.mxu0 %v1532
        %1572 = vmatprep.subr.mxu0 0.0
        %1573 = vmatpush1.msra.mxu0 %v1531
        %1574 = vmatprep.subr.mxu0 0.0
        %1575 = vmatpush1.msra.mxu0 %v1530
        %1576 = vmatprep.subr.mxu0 0.0
        %1577 = vmatpush2.msra.mxu0 0.0
        %1578 = vmatprep.subr.mxu0 0.0
        %1579 = vmatpush2.msra.mxu0 0.0
        %1580 = vmatprep.subr.mxu0 0.0
        %1581 = vmatpush2.msra.mxu0 0.0
        %1582 = vmatprep.subr.mxu0 0.0
        %1583 = vmatpush2.msra.mxu0 0.0
        %1584 = vmatprep.subr.mxu0 0.0
        %1585 = vmatpush2.msra.mxu0 0.0
        %1586 = vmatprep.subr.mxu0 0.0
        %1587 = vmatpush2.msra.mxu0 0.0
        %1588 = vmatprep.subr.mxu0 0.0
        %1589 = vmatpush2.msra.mxu0 0.0
        %1590 = vmatprep.subr.mxu0 0.0
        %1591 = vmatpush2.msra.mxu0 0.0
        %1592 = vmatprep.subr.mxu0 0.0
        %1593 = vmatpush2.msra.mxu0 0.0
        %1594 = vmatprep.subr.mxu0 0.0
        %1595 = vmatpush2.msra.mxu0 0.0
        %1596 = vmatprep.subr.mxu0 0.0
        %1597 = vmatpush2.msra.mxu0 0.0
        %1598 = vmatprep.subr.mxu0 0.0
        %1599 = vmatpush2.msra.mxu0 0.0
        %1600 = vmatprep.subr.mxu0 0.0
        %1601 = vmatpush2.msra.mxu0 0.0
        %1602 = vmatprep.subr.mxu0 0.0
        %1603 = vmatpush2.msra.mxu0 0.0
        %1604 = vmatprep.subr.mxu0 0.0
        %1605 = vmatpush2.msra.mxu0 0.0
        %1606 = vmatprep.subr.mxu0 0.0
        %1607 = vmatpush2.msra.mxu0 0.0
        %1608 = vmatprep.mubr.f32.mxu0 0.0
        %1609 = vmatmul.mubr.f32.gmra.mxu0 %v1542
        %v1610 = vpop.f32.mrf.mxu0
        %v1611 = vadd.f32 %v1539, %v1610
        %v1612 = vpop.f32.mrf.mxu0
        %1613 = vdwg.mxu0
        %v1614 = vadd.f32 %v631, %v1611
        %v1615 = vld [vmem:[%s8] sm:$0x1]
        %v1616 = vld [vmem:[%s9] sm:$0x1]
        %v1617 = vsel %vm601, %v1614, 0.0
        %1618 = vadd.xlane.f32.xlu0 %v1617
        %v1619 = vpop.xlane.xlu0 %1618
        %v1620 = vmul.f32 %v1619, %v605
        %v1621 = vmul.f32 %v1614, %v1614
        %v1622 = vsel %vm601, %v1621, 0.0
        %1623 = vadd.xlane.f32.xlu0 %v1622
        %v1624 = vpop.xlane.xlu0 %1623
        %v1625 = vmul.f32 %v1624, %v605
        %v1626 = vmul.f32 %v1620, %v1620
        %v1627 = vsub.f32 %v1625, %v1626
        %v1628 = vsub.f32 %v1614, %v1620
        %v1629 = vadd.f32 %v1627, 1e-07
        %v1630 = vrsqrt.pop %v1629
        %v1631 = vmul.f32 %v1628, %v1630
        %v1633 = vlaneseq
        %v1634 = vshrl.u32 %v1633, 7
        %v1635 = vsub.s32 0, %v1634
        %v1636 = vrot.slane %v1615, %v1635
        %v1638 = vmul.f32 %v1631, %v1636
        %v1640 = vlaneseq
        %v1641 = vshrl.u32 %v1640, 7
        %v1642 = vsub.s32 0, %v1641
        %v1643 = vrot.slane %v1616, %v1642
        %v1645 = vadd.f32 %v1638, %v1643
        %v1646 = vld [vmem:[%s10] sm:$0xff]
        %v1647 = vld [vmem:[%s10 + $0x8] sm:$0xff]
        %v1648 = vld [vmem:[%s10 + $0x10] sm:$0xff]
        %v1649 = vld [vmem:[%s10 + $0x18] sm:$0xff]
        %v1650 = vld [vmem:[%s11] sm:$0x1]
        %v1652 = vlaneseq
        %v1653 = vshrl.u32 %v1652, 7
        %v1654 = vsub.s32 0, %v1653
        %v1655 = vrot.slane %v1650, %v1654
        %v1658 = vsel %vm601, %v1645, 0
        %1660 = vmatprep.subr.mxu0 0.0
        %1661 = vmatpush1.msra.mxu0 0.0
        %1662 = vmatprep.subr.mxu0 0.0
        %1663 = vmatpush1.msra.mxu0 0.0
        %1664 = vmatprep.subr.mxu0 0.0
        %1665 = vmatpush1.msra.mxu0 0.0
        %1666 = vmatprep.subr.mxu0 0.0
        %1667 = vmatpush1.msra.mxu0 0.0
        %1668 = vmatprep.subr.mxu0 0.0
        %1669 = vmatpush1.msra.mxu0 0.0
        %1670 = vmatprep.subr.mxu0 0.0
        %1671 = vmatpush1.msra.mxu0 0.0
        %1672 = vmatprep.subr.mxu0 0.0
        %1673 = vmatpush1.msra.mxu0 0.0
        %1674 = vmatprep.subr.mxu0 0.0
        %1675 = vmatpush1.msra.mxu0 0.0
        %1676 = vmatprep.subr.mxu0 0.0
        %1677 = vmatpush1.msra.mxu0 0.0
        %1678 = vmatprep.subr.mxu0 0.0
        %1679 = vmatpush1.msra.mxu0 0.0
        %1680 = vmatprep.subr.mxu0 0.0
        %1681 = vmatpush1.msra.mxu0 0.0
        %1682 = vmatprep.subr.mxu0 0.0
        %1683 = vmatpush1.msra.mxu0 0.0
        %1684 = vmatprep.subr.mxu0 0.0
        %1685 = vmatpush1.msra.mxu0 %v1649
        %1686 = vmatprep.subr.mxu0 0.0
        %1687 = vmatpush1.msra.mxu0 %v1648
        %1688 = vmatprep.subr.mxu0 0.0
        %1689 = vmatpush1.msra.mxu0 %v1647
        %1690 = vmatprep.subr.mxu0 0.0
        %1691 = vmatpush1.msra.mxu0 %v1646
        %1692 = vmatprep.subr.mxu0 0.0
        %1693 = vmatpush2.msra.mxu0 0.0
        %1694 = vmatprep.subr.mxu0 0.0
        %1695 = vmatpush2.msra.mxu0 0.0
        %1696 = vmatprep.subr.mxu0 0.0
        %1697 = vmatpush2.msra.mxu0 0.0
        %1698 = vmatprep.subr.mxu0 0.0
        %1699 = vmatpush2.msra.mxu0 0.0
        %1700 = vmatprep.subr.mxu0 0.0
        %1701 = vmatpush2.msra.mxu0 0.0
        %1702 = vmatprep.subr.mxu0 0.0
        %1703 = vmatpush2.msra.mxu0 0.0
        %1704 = vmatprep.subr.mxu0 0.0
        %1705 = vmatpush2.msra.mxu0 0.0
        %1706 = vmatprep.subr.mxu0 0.0
        %1707 = vmatpush2.msra.mxu0 0.0
        %1708 = vmatprep.subr.mxu0 0.0
        %1709 = vmatpush2.msra.mxu0 0.0
        %1710 = vmatprep.subr.mxu0 0.0
        %1711 = vmatpush2.msra.mxu0 0.0
        %1712 = vmatprep.subr.mxu0 0.0
        %1713 = vmatpush2.msra.mxu0 0.0
        %1714 = vmatprep.subr.mxu0 0.0
        %1715 = vmatpush2.msra.mxu0 0.0
        %1716 = vmatprep.subr.mxu0 0.0
        %1717 = vmatpush2.msra.mxu0 0.0
        %1718 = vmatprep.subr.mxu0 0.0
        %1719 = vmatpush2.msra.mxu0 0.0
        %1720 = vmatprep.subr.mxu0 0.0
        %1721 = vmatpush2.msra.mxu0 0.0
        %1722 = vmatprep.subr.mxu0 0.0
        %1723 = vmatpush2.msra.mxu0 0.0
        %1724 = vmatprep.mubr.f32.mxu0 0.0
        %1725 = vmatmul.mubr.f32.gmra.mxu0 %v1658
        %v1726 = vpop.f32.mrf.mxu0
        %v1727 = vadd.f32 %v1655, %v1726
        %v1728 = vpop.f32.mrf.mxu0
        %1729 = vdwg.mxu0
        %v1730 = vmul.f32 %v1727, %v1727
        %v1731 = vmul.f32 %v1727, %v1730
        %v1732 = vmul.f32 %v1731, 0.044715
        %v1733 = vadd.f32 %v1727, %v1732
        %v1734 = vmul.f32 %v1733, 0.7978846
        %v1735 = vtanh.pop %v1734
        %v1736 = vadd.f32 %v1735, 1.0
        %v1737 = vmul.f32 %v1736, 0.5
        %v1738 = vmul.f32 %v1727, %v1737
        %v1739 = vld [vmem:[%s12] sm:$0xff]
        %v1740 = vld [vmem:[%s12 + $0x8] sm:$0xff]
        %v1741 = vld [vmem:[%s12 + $0x10] sm:$0xff]
        %v1742 = vld [vmem:[%s12 + $0x18] sm:$0xff]
        %v1743 = vld [vmem:[%s12 + $0x20] sm:$0xff]
        %v1744 = vld [vmem:[%s12 + $0x28] sm:$0xff]
        %v1745 = vld [vmem:[%s12 + $0x30] sm:$0xff]
        %v1746 = vld [vmem:[%s12 + $0x38] sm:$0xff]
        %v1747 = vld [vmem:[%s12 + $0x40] sm:$0xff]
        %v1748 = vld [vmem:[%s12 + $0x48] sm:$0xff]
        %v1749 = vld [vmem:[%s12 + $0x50] sm:$0xff]
        %v1750 = vld [vmem:[%s12 + $0x58] sm:$0xff]
        %v1751 = vld [vmem:[%s12 + $0x60] sm:$0xff]
        %v1752 = vld [vmem:[%s12 + $0x68] sm:$0xff]
        %v1753 = vld [vmem:[%s12 + $0x70] sm:$0xff]
        %v1754 = vld [vmem:[%s12 + $0x78] sm:$0xff]
        %v1755 = vld [vmem:[%s13] sm:$0x1]
        %v1757 = vlaneseq
        %v1758 = vshrl.u32 %v1757, 7
        %v1759 = vsub.s32 0, %v1758
        %v1760 = vrot.slane %v1755, %v1759
        %1762 = vmatprep.subr.mxu0 0.0
        %1763 = vmatpush1.msra.mxu0 %v1754
        %1764 = vmatprep.subr.mxu0 0.0
        %1765 = vmatpush1.msra.mxu0 %v1753
        %1766 = vmatprep.subr.mxu0 0.0
        %1767 = vmatpush1.msra.mxu0 %v1752
        %1768 = vmatprep.subr.mxu0 0.0
        %1769 = vmatpush1.msra.mxu0 %v1751
        %1770 = vmatprep.subr.mxu0 0.0
        %1771 = vmatpush1.msra.mxu0 %v1750
        %1772 = vmatprep.subr.mxu0 0.0
        %1773 = vmatpush1.msra.mxu0 %v1749
        %1774 = vmatprep.subr.mxu0 0.0
        %1775 = vmatpush1.msra.mxu0 %v1748
        %1776 = vmatprep.subr.mxu0 0.0
        %1777 = vmatpush1.msra.mxu0 %v1747
        %1778 = vmatprep.subr.mxu0 0.0
        %1779 = vmatpush1.msra.mxu0 %v1746
        %1780 = vmatprep.subr.mxu0 0.0
        %1781 = vmatpush1.msra.mxu0 %v1745
        %1782 = vmatprep.subr.mxu0 0.0
        %1783 = vmatpush1.msra.mxu0 %v1744
        %1784 = vmatprep.subr.mxu0 0.0
        %1785 = vmatpush1.msra.mxu0 %v1743
        %1786 = vmatprep.subr.mxu0 0.0
        %1787 = vmatpush1.msra.mxu0 %v1742
        %1788 = vmatprep.subr.mxu0 0.0
        %1789 = vmatpush1.msra.mxu0 %v1741
        %1790 = vmatprep.subr.mxu0 0.0
        %1791 = vmatpush1.msra.mxu0 %v1740
        %1792 = vmatprep.subr.mxu0 0.0
        %1793 = vmatpush1.msra.mxu0 %v1739
        %1794 = vmatprep.subr.mxu0 0.0
        %1795 = vmatpush2.msra.mxu0 0.0
        %1796 = vmatprep.subr.mxu0 0.0
        %1797 = vmatpush2.msra.mxu0 0.0
        %1798 = vmatprep.subr.mxu0 0.0
        %1799 = vmatpush2.msra.mxu0 0.0
        %1800 = vmatprep.subr.mxu0 0.0
        %1801 = vmatpush2.msra.mxu0 0.0
        %1802 = vmatprep.subr.mxu0 0.0
        %1803 = vmatpush2.msra.mxu0 0.0
        %1804 = vmatprep.subr.mxu0 0.0
        %1805 = vmatpush2.msra.mxu0 0.0
        %1806 = vmatprep.subr.mxu0 0.0
        %1807 = vmatpush2.msra.mxu0 0.0
        %1808 = vmatprep.subr.mxu0 0.0
        %1809 = vmatpush2.msra.mxu0 0.0
        %1810 = vmatprep.subr.mxu0 0.0
        %1811 = vmatpush2.msra.mxu0 0.0
        %1812 = vmatprep.subr.mxu0 0.0
        %1813 = vmatpush2.msra.mxu0 0.0
        %1814 = vmatprep.subr.mxu0 0.0
        %1815 = vmatpush2.msra.mxu0 0.0
        %1816 = vmatprep.subr.mxu0 0.0
        %1817 = vmatpush2.msra.mxu0 0.0
        %1818 = vmatprep.subr.mxu0 0.0
        %1819 = vmatpush2.msra.mxu0 0.0
        %1820 = vmatprep.subr.mxu0 0.0
        %1821 = vmatpush2.msra.mxu0 0.0
        %1822 = vmatprep.subr.mxu0 0.0
        %1823 = vmatpush2.msra.mxu0 0.0
        %1824 = vmatprep.subr.mxu0 0.0
        %1825 = vmatpush2.msra.mxu0 0.0
        %1826 = vmatprep.mubr.f32.mxu0 0.0
        %1827 = vmatmul.mubr.f32.gmra.mxu0 %v1738
        %v1828 = vpop.f32.mrf.mxu0
        %v1829 = vadd.f32 %v1760, %v1828
        %v1830 = vpop.f32.mrf.mxu0
        %1831 = vdwg.mxu0
        %v1832 = vadd.f32 %v1645, %v1829
        %v1833 = vld [vmem:[%s14] sm:$0x1]
        %v1834 = vld [vmem:[%s15] sm:$0x1]
        %v1835 = vsel %vm601, %v1832, 0.0
        %1836 = vadd.xlane.f32.xlu0 %v1835
        %v1837 = vpop.xlane.xlu0 %1836
        %v1838 = vmul.f32 %v1837, %v605
        %v1839 = vmul.f32 %v1832, %v1832
        %v1840 = vsel %vm601, %v1839, 0.0
        %1841 = vadd.xlane.f32.xlu0 %v1840
        %v1842 = vpop.xlane.xlu0 %1841
        %v1843 = vmul.f32 %v1842, %v605
        %v1844 = vmul.f32 %v1838, %v1838
        %v1845 = vsub.f32 %v1843, %v1844
        %v1846 = vsub.f32 %v1832, %v1838
        %v1847 = vadd.f32 %v1845, 1e-07
        %v1848 = vrsqrt.pop %v1847
        %v1849 = vmul.f32 %v1846, %v1848
        %v1851 = vlaneseq
        %v1852 = vshrl.u32 %v1851, 7
        %v1853 = vsub.s32 0, %v1852
        %v1854 = vrot.slane %v1833, %v1853
        %v1856 = vmul.f32 %v1849, %v1854
        %v1858 = vlaneseq
        %v1859 = vshrl.u32 %v1858, 7
        %v1860 = vsub.s32 0, %v1859
        %v1861 = vrot.slane %v1834, %v1860
        %v1863 = vadd.f32 %v1856, %v1861
        %s1864 = scalar_lea.vmem [#allocation2], 32
        %v1865 = vld [vmem:[%s1864] sm:$0xff]
        %v1866 = vld [vmem:[%s1864 + $0x8] sm:$0xff]
        %v1867 = vld [vmem:[%s1864 + $0x10] sm:$0xff]
        %v1868 = vld [vmem:[%s1864 + $0x18] sm:$0xff]
        %s1869 = scalar_lea.vmem %s5, 1
        %v1870 = vld [vmem:[%s1869] sm:$0x1]
        %v1872 = vlaneseq
        %v1873 = vshrl.u32 %v1872, 7
        %v1874 = vsub.s32 0, %v1873
        %v1875 = vrot.slane %v1870, %v1874
        %v1878 = vsel %vm601, %v1863, 0
        %1880 = vmatprep.subr.mxu0 0.0
        %1881 = vmatpush1.msra.mxu0 0.0
        %1882 = vmatprep.subr.mxu0 0.0
        %1883 = vmatpush1.msra.mxu0 0.0
        %1884 = vmatprep.subr.mxu0 0.0
        %1885 = vmatpush1.msra.mxu0 0.0
        %1886 = vmatprep.subr.mxu0 0.0
        %1887 = vmatpush1.msra.mxu0 0.0
        %1888 = vmatprep.subr.mxu0 0.0
        %1889 = vmatpush1.msra.mxu0 0.0
        %1890 = vmatprep.subr.mxu0 0.0
        %1891 = vmatpush1.msra.mxu0 0.0
        %1892 = vmatprep.subr.mxu0 0.0
        %1893 = vmatpush1.msra.mxu0 0.0
        %1894 = vmatprep.subr.mxu0 0.0
        %1895 = vmatpush1.msra.mxu0 0.0
        %1896 = vmatprep.subr.mxu0 0.0
        %1897 = vmatpush1.msra.mxu0 0.0
        %1898 = vmatprep.subr.mxu0 0.0
        %1899 = vmatpush1.msra.mxu0 0.0
        %1900 = vmatprep.subr.mxu0 0.0
        %1901 = vmatpush1.msra.mxu0 0.0
        %1902 = vmatprep.subr.mxu0 0.0
        %1903 = vmatpush1.msra.mxu0 0.0
        %1904 = vmatprep.subr.mxu0 0.0
        %1905 = vmatpush1.msra.mxu0 %v1868
        %1906 = vmatprep.subr.mxu0 0.0
        %1907 = vmatpush1.msra.mxu0 %v1867
        %1908 = vmatprep.subr.mxu0 0.0
        %1909 = vmatpush1.msra.mxu0 %v1866
        %1910 = vmatprep.subr.mxu0 0.0
        %1911 = vmatpush1.msra.mxu0 %v1865
        %1912 = vmatprep.subr.mxu0 0.0
        %1913 = vmatpush2.msra.mxu0 0.0
        %1914 = vmatprep.subr.mxu0 0.0
        %1915 = vmatpush2.msra.mxu0 0.0
        %1916 = vmatprep.subr.mxu0 0.0
        %1917 = vmatpush2.msra.mxu0 0.0
        %1918 = vmatprep.subr.mxu0 0.0
        %1919 = vmatpush2.msra.mxu0 0.0
        %1920 = vmatprep.subr.mxu0 0.0
        %1921 = vmatpush2.msra.mxu0 0.0
        %1922 = vmatprep.subr.mxu0 0.0
        %1923 = vmatpush2.msra.mxu0 0.0
        %1924 = vmatprep.subr.mxu0 0.0
        %1925 = vmatpush2.msra.mxu0 0.0
        %1926 = vmatprep.subr.mxu0 0.0
        %1927 = vmatpush2.msra.mxu0 0.0
        %1928 = vmatprep.subr.mxu0 0.0
        %1929 = vmatpush2.msra.mxu0 0.0
        %1930 = vmatprep.subr.mxu0 0.0
        %1931 = vmatpush2.msra.mxu0 0.0
        %1932 = vmatprep.subr.mxu0 0.0
        %1933 = vmatpush2.msra.mxu0 0.0
        %1934 = vmatprep.subr.mxu0 0.0
        %1935 = vmatpush2.msra.mxu0 0.0
        %1936 = vmatprep.subr.mxu0 0.0
        %1937 = vmatpush2.msra.mxu0 0.0
        %1938 = vmatprep.subr.mxu0 0.0
        %1939 = vmatpush2.msra.mxu0 0.0
        %1940 = vmatprep.subr.mxu0 0.0
        %1941 = vmatpush2.msra.mxu0 0.0
        %1942 = vmatprep.subr.mxu0 0.0
        %1943 = vmatpush2.msra.mxu0 0.0
        %1944 = vmatprep.mubr.f32.mxu0 0.0
        %1945 = vmatmul.mubr.f32.gmra.mxu0 %v1878
        %v1946 = vpop.f32.mrf.mxu0
        %v1947 = vadd.f32 %v1875, %v1946
        %v1948 = vpop.f32.mrf.mxu0
        %1949 = vdwg.mxu0
        %1951 = vrot.lane.b32.xlu0 %v1947, 112
        %v1952 = vpop.permute.xlu0 %1951
        %v1954 = vcombine.high %v1947, 0.0
        %v1956 = vunpack.c.l.s4 1983009808
        %v1957 = vunpack.c.0.s8 %v1956
        %v1958 = vlaneseq
        %v1959 = vshrl.u32 %v1958, 7
        %v1960 = vsub.s32 %v1957, %v1959
        %v1961 = vrot.slane %v1947, %v1960
        %v1963 = vunpack.c.l.s4 1983009808
        %v1964 = vunpack.c.0.s8 %v1963
        %v1965 = vlaneseq
        %v1966 = vshrl.u32 %v1965, 7
        %v1967 = vsub.s32 %v1964, %v1966
        %v1968 = vrot.slane %v1954, %v1967
        %v1969 = vcombine.high %v1952, 0.0
        %v1971 = vunpack.c.l.s4 1983009808
        %v1972 = vunpack.c.0.s8 %v1971
        %v1973 = vlaneseq
        %v1974 = vshrl.u32 %v1973, 7
        %v1975 = vsub.s32 %v1972, %v1974
        %v1976 = vrot.slane %v1952, %v1975
        %v1978 = vunpack.c.l.s4 1983009808
        %v1979 = vunpack.c.0.s8 %v1978
        %v1980 = vlaneseq
        %v1981 = vshrl.u32 %v1980, 7
        %v1982 = vsub.s32 %v1979, %v1981
        %v1983 = vrot.slane %v1969, %v1982
        %v1984 = vcombine.low %v1961, %v1976
        %v1985 = vcombine.high %v1961, %v1976
        %v1987 = vunpack.c.l.s4 1934713408
        %v1988 = vunpack.c.0.s8 %v1987
        %v1989 = vlaneseq
        %v1990 = vshrl.u32 %v1989, 7
        %v1991 = vsub.s32 %v1988, %v1990
        %v1992 = vrot.slane %v1984, %v1991
        %v1994 = vunpack.c.l.s4 1934713408
        %v1995 = vunpack.c.0.s8 %v1994
        %v1996 = vlaneseq
        %v1997 = vshrl.u32 %v1996, 7
        %v1998 = vsub.s32 %v1995, %v1997
        %v1999 = vrot.slane %v1985, %v1998
        %v2000 = vcombine.low %v1968, %v1983
        %v2001 = vcombine.high %v1968, %v1983
        %v2003 = vunpack.c.l.s4 1934713408
        %v2004 = vunpack.c.0.s8 %v2003
        %v2005 = vlaneseq
        %v2006 = vshrl.u32 %v2005, 7
        %v2007 = vsub.s32 %v2004, %v2006
        %v2008 = vrot.slane %v2000, %v2007
        %v2010 = vunpack.c.l.s4 1934713408
        %v2011 = vunpack.c.0.s8 %v2010
        %v2012 = vlaneseq
        %v2013 = vshrl.u32 %v2012, 7
        %v2014 = vsub.s32 %v2011, %v2013
        %v2015 = vrot.slane %v2001, %v2014
        %v2016 = vcombine.high %v1992, 0.0
        %v2017 = vcombine.high %v1999, 0.0
        %v2018 = vcombine.high %v2008, 0.0
        %v2019 = vcombine.high %v2015, 0.0
        %v2020 = vcombine.low %v1992, %v1999
        %v2022 = vunpack.c.l.s4 1983009808
        %v2023 = vunpack.c.0.s8 %v2022
        %v2024 = vlaneseq
        %v2025 = vshrl.u32 %v2024, 7
        %v2026 = vsub.s32 %v2023, %v2025
        %v2027 = vrot.slane %v2020, %v2026
        %v2028 = vcombine.low %v2016, %v2017
        %v2030 = vunpack.c.l.s4 1983009808
        %v2031 = vunpack.c.0.s8 %v2030
        %v2032 = vlaneseq
        %v2033 = vshrl.u32 %v2032, 7
        %v2034 = vsub.s32 %v2031, %v2033
        %v2035 = vrot.slane %v2028, %v2034
        %v2036 = vcombine.low %v2008, %v2015
        %v2038 = vunpack.c.l.s4 1983009808
        %v2039 = vunpack.c.0.s8 %v2038
        %v2040 = vlaneseq
        %v2041 = vshrl.u32 %v2040, 7
        %v2042 = vsub.s32 %v2039, %v2041
        %v2043 = vrot.slane %v2036, %v2042
        %v2044 = vcombine.low %v2018, %v2019
        %v2046 = vunpack.c.l.s4 1983009808
        %v2047 = vunpack.c.0.s8 %v2046
        %v2048 = vlaneseq
        %v2049 = vshrl.u32 %v2048, 7
        %v2050 = vsub.s32 %v2047, %v2049
        %v2051 = vrot.slane %v2044, %v2050
        %v2052 = vcombine.low %v2027, %v2035
        %v2054 = vunpack.c.l.s4 1934713408
        %v2055 = vunpack.c.0.s8 %v2054
        %v2056 = vlaneseq
        %v2057 = vshrl.u32 %v2056, 7
        %v2058 = vsub.s32 %v2055, %v2057
        %v2059 = vrot.slane %v2052, %v2058
        %v2060 = vcombine.low %v2043, %v2051
        %v2062 = vunpack.c.l.s4 1934713408
        %v2063 = vunpack.c.0.s8 %v2062
        %v2064 = vlaneseq
        %v2065 = vshrl.u32 %v2064, 7
        %v2066 = vsub.s32 %v2063, %v2065
        %v2067 = vrot.slane %v2060, %v2066
        %v2068 = vcombine.low %v2059, %v2067
        %v2069 = vcombine.high %v2059, %v2067
        %2070 = vrot.lane.b32.xlu0 %v1947, 96
        %v2071 = vpop.permute.xlu0 %2070
        %2072 = vrot.lane.b32.xlu0 %v1952, 96
        %v2073 = vpop.permute.xlu0 %2072
        %v2076 = vcombine.high %v2071, 0.0
        %v2078 = vunpack.c.l.s4 1983009808
        %v2079 = vunpack.c.0.s8 %v2078
        %v2080 = vlaneseq
        %v2081 = vshrl.u32 %v2080, 7
        %v2082 = vsub.s32 %v2079, %v2081
        %v2083 = vrot.slane %v2071, %v2082
        %v2085 = vunpack.c.l.s4 1983009808
        %v2086 = vunpack.c.0.s8 %v2085
        %v2087 = vlaneseq
        %v2088 = vshrl.u32 %v2087, 7
        %v2089 = vsub.s32 %v2086, %v2088
        %v2090 = vrot.slane %v2076, %v2089
        %v2091 = vcombine.high %v2073, 0.0
        %v2093 = vunpack.c.l.s4 1983009808
        %v2094 = vunpack.c.0.s8 %v2093
        %v2095 = vlaneseq
        %v2096 = vshrl.u32 %v2095, 7
        %v2097 = vsub.s32 %v2094, %v2096
        %v2098 = vrot.slane %v2073, %v2097
        %v2100 = vunpack.c.l.s4 1983009808
        %v2101 = vunpack.c.0.s8 %v2100
        %v2102 = vlaneseq
        %v2103 = vshrl.u32 %v2102, 7
        %v2104 = vsub.s32 %v2101, %v2103
        %v2105 = vrot.slane %v2091, %v2104
        %v2106 = vcombine.low %v2083, %v2098
        %v2107 = vcombine.high %v2083, %v2098
        %v2109 = vunpack.c.l.s4 1934713408
        %v2110 = vunpack.c.0.s8 %v2109
        %v2111 = vlaneseq
        %v2112 = vshrl.u32 %v2111, 7
        %v2113 = vsub.s32 %v2110, %v2112
        %v2114 = vrot.slane %v2106, %v2113
        %v2116 = vunpack.c.l.s4 1934713408
        %v2117 = vunpack.c.0.s8 %v2116
        %v2118 = vlaneseq
        %v2119 = vshrl.u32 %v2118, 7
        %v2120 = vsub.s32 %v2117, %v2119
        %v2121 = vrot.slane %v2107, %v2120
        %v2122 = vcombine.low %v2090, %v2105
        %v2123 = vcombine.high %v2090, %v2105
        %v2125 = vunpack.c.l.s4 1934713408
        %v2126 = vunpack.c.0.s8 %v2125
        %v2127 = vlaneseq
        %v2128 = vshrl.u32 %v2127, 7
        %v2129 = vsub.s32 %v2126, %v2128
        %v2130 = vrot.slane %v2122, %v2129
        %v2132 = vunpack.c.l.s4 1934713408
        %v2133 = vunpack.c.0.s8 %v2132
        %v2134 = vlaneseq
        %v2135 = vshrl.u32 %v2134, 7
        %v2136 = vsub.s32 %v2133, %v2135
        %v2137 = vrot.slane %v2123, %v2136
        %v2138 = vcombine.high %v2114, 0.0
        %v2139 = vcombine.high %v2121, 0.0
        %v2140 = vcombine.high %v2130, 0.0
        %v2141 = vcombine.high %v2137, 0.0
        %v2142 = vcombine.low %v2114, %v2121
        %v2144 = vunpack.c.l.s4 1983009808
        %v2145 = vunpack.c.0.s8 %v2144
        %v2146 = vlaneseq
        %v2147 = vshrl.u32 %v2146, 7
        %v2148 = vsub.s32 %v2145, %v2147
        %v2149 = vrot.slane %v2142, %v2148
        %v2150 = vcombine.low %v2138, %v2139
        %v2152 = vunpack.c.l.s4 1983009808
        %v2153 = vunpack.c.0.s8 %v2152
        %v2154 = vlaneseq
        %v2155 = vshrl.u32 %v2154, 7
        %v2156 = vsub.s32 %v2153, %v2155
        %v2157 = vrot.slane %v2150, %v2156
        %v2158 = vcombine.low %v2130, %v2137
        %v2160 = vunpack.c.l.s4 1983009808
        %v2161 = vunpack.c.0.s8 %v2160
        %v2162 = vlaneseq
        %v2163 = vshrl.u32 %v2162, 7
        %v2164 = vsub.s32 %v2161, %v2163
        %v2165 = vrot.slane %v2158, %v2164
        %v2166 = vcombine.low %v2140, %v2141
        %v2168 = vunpack.c.l.s4 1983009808
        %v2169 = vunpack.c.0.s8 %v2168
        %v2170 = vlaneseq
        %v2171 = vshrl.u32 %v2170, 7
        %v2172 = vsub.s32 %v2169, %v2171
        %v2173 = vrot.slane %v2166, %v2172
        %v2174 = vcombine.low %v2149, %v2157
        %v2176 = vunpack.c.l.s4 1934713408
        %v2177 = vunpack.c.0.s8 %v2176
        %v2178 = vlaneseq
        %v2179 = vshrl.u32 %v2178, 7
        %v2180 = vsub.s32 %v2177, %v2179
        %v2181 = vrot.slane %v2174, %v2180
        %v2182 = vcombine.low %v2165, %v2173
        %v2184 = vunpack.c.l.s4 1934713408
        %v2185 = vunpack.c.0.s8 %v2184
        %v2186 = vlaneseq
        %v2187 = vshrl.u32 %v2186, 7
        %v2188 = vsub.s32 %v2185, %v2187
        %v2189 = vrot.slane %v2182, %v2188
        %v2190 = vcombine.low %v2181, %v2189
        %v2191 = vcombine.high %v2181, %v2189
        %2192 = vrot.lane.b32.xlu0 %v1947, 64
        %v2193 = vpop.permute.xlu0 %2192
        %2194 = vrot.lane.b32.xlu0 %v1952, 64
        %v2195 = vpop.permute.xlu0 %2194
        %v2198 = vcombine.high %v2193, 0.0
        %v2200 = vunpack.c.l.s4 1983009808
        %v2201 = vunpack.c.0.s8 %v2200
        %v2202 = vlaneseq
        %v2203 = vshrl.u32 %v2202, 7
        %v2204 = vsub.s32 %v2201, %v2203
        %v2205 = vrot.slane %v2193, %v2204
        %v2207 = vunpack.c.l.s4 1983009808
        %v2208 = vunpack.c.0.s8 %v2207
        %v2209 = vlaneseq
        %v2210 = vshrl.u32 %v2209, 7
        %v2211 = vsub.s32 %v2208, %v2210
        %v2212 = vrot.slane %v2198, %v2211
        %v2213 = vcombine.high %v2195, 0.0
        %v2215 = vunpack.c.l.s4 1983009808
        %v2216 = vunpack.c.0.s8 %v2215
        %v2217 = vlaneseq
        %v2218 = vshrl.u32 %v2217, 7
        %v2219 = vsub.s32 %v2216, %v2218
        %v2220 = vrot.slane %v2195, %v2219
        %v2222 = vunpack.c.l.s4 1983009808
        %v2223 = vunpack.c.0.s8 %v2222
        %v2224 = vlaneseq
        %v2225 = vshrl.u32 %v2224, 7
        %v2226 = vsub.s32 %v2223, %v2225
        %v2227 = vrot.slane %v2213, %v2226
        %v2228 = vcombine.low %v2205, %v2220
        %v2229 = vcombine.high %v2205, %v2220
        %v2231 = vunpack.c.l.s4 1934713408
        %v2232 = vunpack.c.0.s8 %v2231
        %v2233 = vlaneseq
        %v2234 = vshrl.u32 %v2233, 7
        %v2235 = vsub.s32 %v2232, %v2234
        %v2236 = vrot.slane %v2228, %v2235
        %v2238 = vunpack.c.l.s4 1934713408
        %v2239 = vunpack.c.0.s8 %v2238
        %v2240 = vlaneseq
        %v2241 = vshrl.u32 %v2240, 7
        %v2242 = vsub.s32 %v2239, %v2241
        %v2243 = vrot.slane %v2229, %v2242
        %v2244 = vcombine.low %v2212, %v2227
        %v2245 = vcombine.high %v2212, %v2227
        %v2247 = vunpack.c.l.s4 1934713408
        %v2248 = vunpack.c.0.s8 %v2247
        %v2249 = vlaneseq
        %v2250 = vshrl.u32 %v2249, 7
        %v2251 = vsub.s32 %v2248, %v2250
        %v2252 = vrot.slane %v2244, %v2251
        %v2254 = vunpack.c.l.s4 1934713408
        %v2255 = vunpack.c.0.s8 %v2254
        %v2256 = vlaneseq
        %v2257 = vshrl.u32 %v2256, 7
        %v2258 = vsub.s32 %v2255, %v2257
        %v2259 = vrot.slane %v2245, %v2258
        %v2260 = vcombine.high %v2236, 0.0
        %v2261 = vcombine.high %v2243, 0.0
        %v2262 = vcombine.high %v2252, 0.0
        %v2263 = vcombine.high %v2259, 0.0
        %v2264 = vcombine.low %v2236, %v2243
        %v2266 = vunpack.c.l.s4 1983009808
        %v2267 = vunpack.c.0.s8 %v2266
        %v2268 = vlaneseq
        %v2269 = vshrl.u32 %v2268, 7
        %v2270 = vsub.s32 %v2267, %v2269
        %v2271 = vrot.slane %v2264, %v2270
        %v2272 = vcombine.low %v2260, %v2261
        %v2274 = vunpack.c.l.s4 1983009808
        %v2275 = vunpack.c.0.s8 %v2274
        %v2276 = vlaneseq
        %v2277 = vshrl.u32 %v2276, 7
        %v2278 = vsub.s32 %v2275, %v2277
        %v2279 = vrot.slane %v2272, %v2278
        %v2280 = vcombine.low %v2252, %v2259
        %v2282 = vunpack.c.l.s4 1983009808
        %v2283 = vunpack.c.0.s8 %v2282
        %v2284 = vlaneseq
        %v2285 = vshrl.u32 %v2284, 7
        %v2286 = vsub.s32 %v2283, %v2285
        %v2287 = vrot.slane %v2280, %v2286
        %v2288 = vcombine.low %v2262, %v2263
        %v2290 = vunpack.c.l.s4 1983009808
        %v2291 = vunpack.c.0.s8 %v2290
        %v2292 = vlaneseq
        %v2293 = vshrl.u32 %v2292, 7
        %v2294 = vsub.s32 %v2291, %v2293
        %v2295 = vrot.slane %v2288, %v2294
        %v2296 = vcombine.low %v2271, %v2279
        %v2298 = vunpack.c.l.s4 1934713408
        %v2299 = vunpack.c.0.s8 %v2298
        %v2300 = vlaneseq
        %v2301 = vshrl.u32 %v2300, 7
        %v2302 = vsub.s32 %v2299, %v2301
        %v2303 = vrot.slane %v2296, %v2302
        %v2304 = vcombine.low %v2287, %v2295
        %v2306 = vunpack.c.l.s4 1934713408
        %v2307 = vunpack.c.0.s8 %v2306
        %v2308 = vlaneseq
        %v2309 = vshrl.u32 %v2308, 7
        %v2310 = vsub.s32 %v2307, %v2309
        %v2311 = vrot.slane %v2304, %v2310
        %v2312 = vcombine.low %v2303, %v2311
        %v2313 = vcombine.high %v2303, %v2311
        %v2315 = vsel %vm1087, %v2068, 0
        %v2318 = vsel %vm1087, %v2190, 0
        %2320 = vmatprep.subr.mxu0 0.0
        %2321 = vmatpush1.xpose.msra.mxu0 0.0
        %2322 = vmatprep.subr.mxu0 0.0
        %2323 = vmatpush1.xpose.msra.mxu0 0.0
        %2324 = vmatprep.subr.mxu0 0.0
        %2325 = vmatpush1.xpose.msra.mxu0 0.0
        %2326 = vmatprep.subr.mxu0 0.0
        %2327 = vmatpush1.xpose.msra.mxu0 0.0
        %2328 = vmatprep.subr.mxu0 0.0
        %2329 = vmatpush1.xpose.msra.mxu0 0.0
        %2330 = vmatprep.subr.mxu0 0.0
        %2331 = vmatpush1.xpose.msra.mxu0 0.0
        %2332 = vmatprep.subr.mxu0 0.0
        %2333 = vmatpush1.xpose.msra.mxu0 0.0
        %2334 = vmatprep.subr.mxu0 0.0
        %2335 = vmatpush1.xpose.msra.mxu0 0.0
        %2336 = vmatprep.subr.mxu0 0.0
        %2337 = vmatpush1.xpose.msra.mxu0 0.0
        %2338 = vmatprep.subr.mxu0 0.0
        %2339 = vmatpush1.xpose.msra.mxu0 0.0
        %2340 = vmatprep.subr.mxu0 0.0
        %2341 = vmatpush1.xpose.msra.mxu0 0.0
        %2342 = vmatprep.subr.mxu0 0.0
        %2343 = vmatpush1.xpose.msra.mxu0 0.0
        %2344 = vmatprep.subr.mxu0 0.0
        %2345 = vmatpush1.xpose.msra.mxu0 0.0
        %2346 = vmatprep.subr.mxu0 0.0
        %2347 = vmatpush1.xpose.msra.mxu0 0.0
        %2348 = vmatprep.subr.mxu0 0.0
        %2349 = vmatpush1.xpose.msra.mxu0 0.0
        %2350 = vmatprep.subr.mxu0 0.0
        %2351 = vmatpush1.xpose.msra.mxu0 %v2318
        %2352 = vmatprep.subr.mxu0 0.0
        %2353 = vmatpush2.xpose.msra.mxu0 0.0
        %2354 = vmatprep.subr.mxu0 0.0
        %2355 = vmatpush2.xpose.msra.mxu0 0.0
        %2356 = vmatprep.subr.mxu0 0.0
        %2357 = vmatpush2.xpose.msra.mxu0 0.0
        %2358 = vmatprep.subr.mxu0 0.0
        %2359 = vmatpush2.xpose.msra.mxu0 0.0
        %2360 = vmatprep.subr.mxu0 0.0
        %2361 = vmatpush2.xpose.msra.mxu0 0.0
        %2362 = vmatprep.subr.mxu0 0.0
        %2363 = vmatpush2.xpose.msra.mxu0 0.0
        %2364 = vmatprep.subr.mxu0 0.0
        %2365 = vmatpush2.xpose.msra.mxu0 0.0
        %2366 = vmatprep.subr.mxu0 0.0
        %2367 = vmatpush2.xpose.msra.mxu0 0.0
        %2368 = vmatprep.subr.mxu0 0.0
        %2369 = vmatpush2.xpose.msra.mxu0 0.0
        %2370 = vmatprep.subr.mxu0 0.0
        %2371 = vmatpush2.xpose.msra.mxu0 0.0
        %2372 = vmatprep.subr.mxu0 0.0
        %2373 = vmatpush2.xpose.msra.mxu0 0.0
        %2374 = vmatprep.subr.mxu0 0.0
        %2375 = vmatpush2.xpose.msra.mxu0 0.0
        %2376 = vmatprep.subr.mxu0 0.0
        %2377 = vmatpush2.xpose.msra.mxu0 0.0
        %2378 = vmatprep.subr.mxu0 0.0
        %2379 = vmatpush2.xpose.msra.mxu0 0.0
        %2380 = vmatprep.subr.mxu0 0.0
        %2381 = vmatpush2.xpose.msra.mxu0 0.0
        %2382 = vmatprep.subr.mxu0 0.0
        %2383 = vmatpush2.xpose.msra.mxu0 0.0
        %2384 = vmatprep.mubr.f32.mxu0 0.0
        %2385 = vmatmul.mubr.f32.gmra.mxu0 %v2315
        %v2386 = vpop.f32.mrf.mxu0
        %v2387 = vadd.f32 %v1085, %v2386
        %v2388 = vpop.f32.mrf.mxu0
        %2389 = vdwg.mxu0
        %v2391 = vsel %vm1087, %v2069, 0
        %v2394 = vsel %vm1087, %v2191, 0
        %2396 = vmatprep.subr.mxu0 0.0
        %2397 = vmatpush1.xpose.msra.mxu0 0.0
        %2398 = vmatprep.subr.mxu0 0.0
        %2399 = vmatpush1.xpose.msra.mxu0 0.0
        %2400 = vmatprep.subr.mxu0 0.0
        %2401 = vmatpush1.xpose.msra.mxu0 0.0
        %2402 = vmatprep.subr.mxu0 0.0
        %2403 = vmatpush1.xpose.msra.mxu0 0.0
        %2404 = vmatprep.subr.mxu0 0.0
        %2405 = vmatpush1.xpose.msra.mxu0 0.0
        %2406 = vmatprep.subr.mxu0 0.0
        %2407 = vmatpush1.xpose.msra.mxu0 0.0
        %2408 = vmatprep.subr.mxu0 0.0
        %2409 = vmatpush1.xpose.msra.mxu0 0.0
        %2410 = vmatprep.subr.mxu0 0.0
        %2411 = vmatpush1.xpose.msra.mxu0 0.0
        %2412 = vmatprep.subr.mxu0 0.0
        %2413 = vmatpush1.xpose.msra.mxu0 0.0
        %2414 = vmatprep.subr.mxu0 0.0
        %2415 = vmatpush1.xpose.msra.mxu0 0.0
        %2416 = vmatprep.subr.mxu0 0.0
        %2417 = vmatpush1.xpose.msra.mxu0 0.0
        %2418 = vmatprep.subr.mxu0 0.0
        %2419 = vmatpush1.xpose.msra.mxu0 0.0
        %2420 = vmatprep.subr.mxu0 0.0
        %2421 = vmatpush1.xpose.msra.mxu0 0.0
        %2422 = vmatprep.subr.mxu0 0.0
        %2423 = vmatpush1.xpose.msra.mxu0 0.0
        %2424 = vmatprep.subr.mxu0 0.0
        %2425 = vmatpush1.xpose.msra.mxu0 0.0
        %2426 = vmatprep.subr.mxu0 0.0
        %2427 = vmatpush1.xpose.msra.mxu0 %v2394
        %2428 = vmatprep.subr.mxu0 0.0
        %2429 = vmatpush2.xpose.msra.mxu0 0.0
        %2430 = vmatprep.subr.mxu0 0.0
        %2431 = vmatpush2.xpose.msra.mxu0 0.0
        %2432 = vmatprep.subr.mxu0 0.0
        %2433 = vmatpush2.xpose.msra.mxu0 0.0
        %2434 = vmatprep.subr.mxu0 0.0
        %2435 = vmatpush2.xpose.msra.mxu0 0.0
        %2436 = vmatprep.subr.mxu0 0.0
        %2437 = vmatpush2.xpose.msra.mxu0 0.0
        %2438 = vmatprep.subr.mxu0 0.0
        %2439 = vmatpush2.xpose.msra.mxu0 0.0
        %2440 = vmatprep.subr.mxu0 0.0
        %2441 = vmatpush2.xpose.msra.mxu0 0.0
        %2442 = vmatprep.subr.mxu0 0.0
        %2443 = vmatpush2.xpose.msra.mxu0 0.0
        %2444 = vmatprep.subr.mxu0 0.0
        %2445 = vmatpush2.xpose.msra.mxu0 0.0
        %2446 = vmatprep.subr.mxu0 0.0
        %2447 = vmatpush2.xpose.msra.mxu0 0.0
        %2448 = vmatprep.subr.mxu0 0.0
        %2449 = vmatpush2.xpose.msra.mxu0 0.0
        %2450 = vmatprep.subr.mxu0 0.0
        %2451 = vmatpush2.xpose.msra.mxu0 0.0
        %2452 = vmatprep.subr.mxu0 0.0
        %2453 = vmatpush2.xpose.msra.mxu0 0.0
        %2454 = vmatprep.subr.mxu0 0.0
        %2455 = vmatpush2.xpose.msra.mxu0 0.0
        %2456 = vmatprep.subr.mxu0 0.0
        %2457 = vmatpush2.xpose.msra.mxu0 0.0
        %2458 = vmatprep.subr.mxu0 0.0
        %2459 = vmatpush2.xpose.msra.mxu0 0.0
        %2460 = vmatprep.mubr.f32.mxu0 0.0
        %2461 = vmatmul.mubr.f32.gmra.mxu0 %v2391
        %v2462 = vpop.f32.mrf.mxu0
        %v2463 = vadd.f32 %v1085, %v2462
        %v2464 = vpop.f32.mrf.mxu0
        %2465 = vdwg.mxu0
        %v2466 = vsel %vm1240, %v2387, -inf
        %2467 = vmax.xlane.f32.xlu0 %v2466
        %v2468 = vpop.xlane.xlu0 %2467
        %v2469 = vsel %vm1240, %v2463, -inf
        %2470 = vmax.xlane.f32.xlu0 %v2469
        %v2471 = vpop.xlane.xlu0 %2470
        %v2472 = vsub.f32 %v2387, %v2468
        %v2473 = vsub.f32 %v2463, %v2471
        %v2474 = vmul.f32 %v2472, 1.442695
        %v2475 = vpow.pop %v2474
        %v2476 = vmul.f32 %v2473, 1.442695
        %v2477 = vpow.pop %v2476
        %v2478 = vsel %vm1240, %v2475, 0.0
        %2479 = vadd.xlane.f32.xlu0 %v2478
        %v2480 = vpop.xlane.xlu0 %2479
        %v2481 = vsel %vm1240, %v2477, 0.0
        %2482 = vadd.xlane.f32.xlu0 %v2481
        %v2483 = vpop.xlane.xlu0 %2482
        %v2484 = vrcp.pop %v2480
        %v2485 = vrcp.pop %v2483
        %v2486 = vmul.f32 %v2475, %v2484
        %v2487 = vmul.f32 %v2477, %v2485
        %v2489 = vsel %vm1240, %v2486, 0
        %2491 = vmatprep.subr.mxu0 0.0
        %2492 = vmatpush1.msra.mxu0 0.0
        %2493 = vmatprep.subr.mxu0 0.0
        %2494 = vmatpush1.msra.mxu0 0.0
        %2495 = vmatprep.subr.mxu0 0.0
        %2496 = vmatpush1.msra.mxu0 0.0
        %2497 = vmatprep.subr.mxu0 0.0
        %2498 = vmatpush1.msra.mxu0 0.0
        %2499 = vmatprep.subr.mxu0 0.0
        %2500 = vmatpush1.msra.mxu0 0.0
        %2501 = vmatprep.subr.mxu0 0.0
        %2502 = vmatpush1.msra.mxu0 0.0
        %2503 = vmatprep.subr.mxu0 0.0
        %2504 = vmatpush1.msra.mxu0 0.0
        %2505 = vmatprep.subr.mxu0 0.0
        %2506 = vmatpush1.msra.mxu0 0.0
        %2507 = vmatprep.subr.mxu0 0.0
        %2508 = vmatpush1.msra.mxu0 0.0
        %2509 = vmatprep.subr.mxu0 0.0
        %2510 = vmatpush1.msra.mxu0 0.0
        %2511 = vmatprep.subr.mxu0 0.0
        %2512 = vmatpush1.msra.mxu0 0.0
        %2513 = vmatprep.subr.mxu0 0.0
        %2514 = vmatpush1.msra.mxu0 0.0
        %2515 = vmatprep.subr.mxu0 0.0
        %2516 = vmatpush1.msra.mxu0 0.0
        %2517 = vmatprep.subr.mxu0 0.0
        %2518 = vmatpush1.msra.mxu0 0.0
        %2519 = vmatprep.subr.mxu0 0.0
        %2520 = vmatpush1.msra.mxu0 0.0
        %2521 = vmatprep.subr.mxu0 0.0
        %2522 = vmatpush1.msra.mxu0 %v2312
        %2523 = vmatprep.subr.mxu0 0.0
        %2524 = vmatpush2.msra.mxu0 0.0
        %2525 = vmatprep.subr.mxu0 0.0
        %2526 = vmatpush2.msra.mxu0 0.0
        %2527 = vmatprep.subr.mxu0 0.0
        %2528 = vmatpush2.msra.mxu0 0.0
        %2529 = vmatprep.subr.mxu0 0.0
        %2530 = vmatpush2.msra.mxu0 0.0
        %2531 = vmatprep.subr.mxu0 0.0
        %2532 = vmatpush2.msra.mxu0 0.0
        %2533 = vmatprep.subr.mxu0 0.0
        %2534 = vmatpush2.msra.mxu0 0.0
        %2535 = vmatprep.subr.mxu0 0.0
        %2536 = vmatpush2.msra.mxu0 0.0
        %2537 = vmatprep.subr.mxu0 0.0
        %2538 = vmatpush2.msra.mxu0 0.0
        %2539 = vmatprep.subr.mxu0 0.0
        %2540 = vmatpush2.msra.mxu0 0.0
        %2541 = vmatprep.subr.mxu0 0.0
        %2542 = vmatpush2.msra.mxu0 0.0
        %2543 = vmatprep.subr.mxu0 0.0
        %2544 = vmatpush2.msra.mxu0 0.0
        %2545 = vmatprep.subr.mxu0 0.0
        %2546 = vmatpush2.msra.mxu0 0.0
        %2547 = vmatprep.subr.mxu0 0.0
        %2548 = vmatpush2.msra.mxu0 0.0
        %2549 = vmatprep.subr.mxu0 0.0
        %2550 = vmatpush2.msra.mxu0 0.0
        %2551 = vmatprep.subr.mxu0 0.0
        %2552 = vmatpush2.msra.mxu0 0.0
        %2553 = vmatprep.subr.mxu0 0.0
        %2554 = vmatpush2.msra.mxu0 0.0
        %2555 = vmatprep.mubr.f32.mxu0 0.0
        %2556 = vmatmul.mubr.f32.gmra.mxu0 %v2489
        %v2557 = vpop.f32.mrf.mxu0
        %v2558 = vadd.f32 0.0, %v2557
        %v2559 = vpop.f32.mrf.mxu0
        %2560 = vdwg.mxu0
        %v2562 = vsel %vm1240, %v2487, 0
        %2564 = vmatprep.subr.mxu0 0.0
        %2565 = vmatpush1.msra.mxu0 0.0
        %2566 = vmatprep.subr.mxu0 0.0
        %2567 = vmatpush1.msra.mxu0 0.0
        %2568 = vmatprep.subr.mxu0 0.0
        %2569 = vmatpush1.msra.mxu0 0.0
        %2570 = vmatprep.subr.mxu0 0.0
        %2571 = vmatpush1.msra.mxu0 0.0
        %2572 = vmatprep.subr.mxu0 0.0
        %2573 = vmatpush1.msra.mxu0 0.0
        %2574 = vmatprep.subr.mxu0 0.0
        %2575 = vmatpush1.msra.mxu0 0.0
        %2576 = vmatprep.subr.mxu0 0.0
        %2577 = vmatpush1.msra.mxu0 0.0
        %2578 = vmatprep.subr.mxu0 0.0
        %2579 = vmatpush1.msra.mxu0 0.0
        %2580 = vmatprep.subr.mxu0 0.0
        %2581 = vmatpush1.msra.mxu0 0.0
        %2582 = vmatprep.subr.mxu0 0.0
        %2583 = vmatpush1.msra.mxu0 0.0
        %2584 = vmatprep.subr.mxu0 0.0
        %2585 = vmatpush1.msra.mxu0 0.0
        %2586 = vmatprep.subr.mxu0 0.0
        %2587 = vmatpush1.msra.mxu0 0.0
        %2588 = vmatprep.subr.mxu0 0.0
        %2589 = vmatpush1.msra.mxu0 0.0
        %2590 = vmatprep.subr.mxu0 0.0
        %2591 = vmatpush1.msra.mxu0 0.0
        %2592 = vmatprep.subr.mxu0 0.0
        %2593 = vmatpush1.msra.mxu0 0.0
        %2594 = vmatprep.subr.mxu0 0.0
        %2595 = vmatpush1.msra.mxu0 %v2313
        %2596 = vmatprep.subr.mxu0 0.0
        %2597 = vmatpush2.msra.mxu0 0.0
        %2598 = vmatprep.subr.mxu0 0.0
        %2599 = vmatpush2.msra.mxu0 0.0
        %2600 = vmatprep.subr.mxu0 0.0
        %2601 = vmatpush2.msra.mxu0 0.0
        %2602 = vmatprep.subr.mxu0 0.0
        %2603 = vmatpush2.msra.mxu0 0.0
        %2604 = vmatprep.subr.mxu0 0.0
        %2605 = vmatpush2.msra.mxu0 0.0
        %2606 = vmatprep.subr.mxu0 0.0
        %2607 = vmatpush2.msra.mxu0 0.0
        %2608 = vmatprep.subr.mxu0 0.0
        %2609 = vmatpush2.msra.mxu0 0.0
        %2610 = vmatprep.subr.mxu0 0.0
        %2611 = vmatpush2.msra.mxu0 0.0
        %2612 = vmatprep.subr.mxu0 0.0
        %2613 = vmatpush2.msra.mxu0 0.0
        %2614 = vmatprep.subr.mxu0 0.0
        %2615 = vmatpush2.msra.mxu0 0.0
        %2616 = vmatprep.subr.mxu0 0.0
        %2617 = vmatpush2.msra.mxu0 0.0
        %2618 = vmatprep.subr.mxu0 0.0
        %2619 = vmatpush2.msra.mxu0 0.0
        %2620 = vmatprep.subr.mxu0 0.0
        %2621 = vmatpush2.msra.mxu0 0.0
        %2622 = vmatprep.subr.mxu0 0.0
        %2623 = vmatpush2.msra.mxu0 0.0
        %2624 = vmatprep.subr.mxu0 0.0
        %2625 = vmatpush2.msra.mxu0 0.0
        %2626 = vmatprep.subr.mxu0 0.0
        %2627 = vmatpush2.msra.mxu0 0.0
        %2628 = vmatprep.mubr.f32.mxu0 0.0
        %2629 = vmatmul.mubr.f32.gmra.mxu0 %v2562
        %v2630 = vpop.f32.mrf.mxu0
        %v2631 = vadd.f32 0.0, %v2630
        %v2632 = vpop.f32.mrf.mxu0
        %2633 = vdwg.mxu0
        %v2634 = vcombine.high %v2558, 0.0
        %v2636 = vunpack.c.l.s4 1983009808
        %v2637 = vunpack.c.0.s8 %v2636
        %v2638 = vlaneseq
        %v2639 = vshrl.u32 %v2638, 7
        %v2640 = vsub.s32 %v2637, %v2639
        %v2641 = vrot.slane %v2558, %v2640
        %v2643 = vunpack.c.l.s4 1983009808
        %v2644 = vunpack.c.0.s8 %v2643
        %v2645 = vlaneseq
        %v2646 = vshrl.u32 %v2645, 7
        %v2647 = vsub.s32 %v2644, %v2646
        %v2648 = vrot.slane %v2634, %v2647
        %v2649 = vcombine.high %v2631, 0.0
        %v2651 = vunpack.c.l.s4 1983009808
        %v2652 = vunpack.c.0.s8 %v2651
        %v2653 = vlaneseq
        %v2654 = vshrl.u32 %v2653, 7
        %v2655 = vsub.s32 %v2652, %v2654
        %v2656 = vrot.slane %v2631, %v2655
        %v2658 = vunpack.c.l.s4 1983009808
        %v2659 = vunpack.c.0.s8 %v2658
        %v2660 = vlaneseq
        %v2661 = vshrl.u32 %v2660, 7
        %v2662 = vsub.s32 %v2659, %v2661
        %v2663 = vrot.slane %v2649, %v2662
        %v2664 = vcombine.low %v2641, %v2656
        %v2665 = vcombine.high %v2641, %v2656
        %v2667 = vunpack.c.l.s4 1934713408
        %v2668 = vunpack.c.0.s8 %v2667
        %v2669 = vlaneseq
        %v2670 = vshrl.u32 %v2669, 7
        %v2671 = vsub.s32 %v2668, %v2670
        %v2672 = vrot.slane %v2664, %v2671
        %v2674 = vunpack.c.l.s4 1934713408
        %v2675 = vunpack.c.0.s8 %v2674
        %v2676 = vlaneseq
        %v2677 = vshrl.u32 %v2676, 7
        %v2678 = vsub.s32 %v2675, %v2677
        %v2679 = vrot.slane %v2665, %v2678
        %v2680 = vcombine.low %v2648, %v2663
        %v2681 = vcombine.high %v2648, %v2663
        %v2683 = vunpack.c.l.s4 1934713408
        %v2684 = vunpack.c.0.s8 %v2683
        %v2685 = vlaneseq
        %v2686 = vshrl.u32 %v2685, 7
        %v2687 = vsub.s32 %v2684, %v2686
        %v2688 = vrot.slane %v2680, %v2687
        %v2690 = vunpack.c.l.s4 1934713408
        %v2691 = vunpack.c.0.s8 %v2690
        %v2692 = vlaneseq
        %v2693 = vshrl.u32 %v2692, 7
        %v2694 = vsub.s32 %v2691, %v2693
        %v2695 = vrot.slane %v2681, %v2694
        %v2696 = vcombine.high %v2672, 0.0
        %v2697 = vcombine.high %v2679, 0.0
        %v2698 = vcombine.high %v2688, 0.0
        %v2699 = vcombine.high %v2695, 0.0
        %v2700 = vcombine.low %v2672, %v2679
        %v2702 = vunpack.c.l.s4 1983009808
        %v2703 = vunpack.c.0.s8 %v2702
        %v2704 = vlaneseq
        %v2705 = vshrl.u32 %v2704, 7
        %v2706 = vsub.s32 %v2703, %v2705
        %v2707 = vrot.slane %v2700, %v2706
        %v2708 = vcombine.low %v2696, %v2697
        %v2710 = vunpack.c.l.s4 1983009808
        %v2711 = vunpack.c.0.s8 %v2710
        %v2712 = vlaneseq
        %v2713 = vshrl.u32 %v2712, 7
        %v2714 = vsub.s32 %v2711, %v2713
        %v2715 = vrot.slane %v2708, %v2714
        %v2716 = vcombine.low %v2688, %v2695
        %v2718 = vunpack.c.l.s4 1983009808
        %v2719 = vunpack.c.0.s8 %v2718
        %v2720 = vlaneseq
        %v2721 = vshrl.u32 %v2720, 7
        %v2722 = vsub.s32 %v2719, %v2721
        %v2723 = vrot.slane %v2716, %v2722
        %v2724 = vcombine.low %v2698, %v2699
        %v2726 = vunpack.c.l.s4 1983009808
        %v2727 = vunpack.c.0.s8 %v2726
        %v2728 = vlaneseq
        %v2729 = vshrl.u32 %v2728, 7
        %v2730 = vsub.s32 %v2727, %v2729
        %v2731 = vrot.slane %v2724, %v2730
        %v2732 = vcombine.low %v2707, %v2715
        %v2734 = vunpack.c.l.s4 1934713408
        %v2735 = vunpack.c.0.s8 %v2734
        %v2736 = vlaneseq
        %v2737 = vshrl.u32 %v2736, 7
        %v2738 = vsub.s32 %v2735, %v2737
        %v2739 = vrot.slane %v2732, %v2738
        %v2740 = vcombine.low %v2723, %v2731
        %v2742 = vunpack.c.l.s4 1934713408
        %v2743 = vunpack.c.0.s8 %v2742
        %v2744 = vlaneseq
        %v2745 = vshrl.u32 %v2744, 7
        %v2746 = vsub.s32 %v2743, %v2745
        %v2747 = vrot.slane %v2740, %v2746
        %v2748 = vcombine.low %v2739, %v2747
        %v2749 = vcombine.high %v2739, %v2747
        %2751 = vrot.lane.b32.xlu0 %v2749, 16
        %v2752 = vpop.permute.xlu0 %2751
        %v2754 = vsel %vm1087, %v2748, %v2752
        %s2755 = scalar_lea.vmem %s6, 32
        %v2756 = vld [vmem:[%s2755] sm:$0xff]
        %v2757 = vld [vmem:[%s2755 + $0x8] sm:$0xff]
        %v2758 = vld [vmem:[%s2755 + $0x10] sm:$0xff]
        %v2759 = vld [vmem:[%s2755 + $0x18] sm:$0xff]
        %s2760 = scalar_lea.vmem %s7, 1
        %v2761 = vld [vmem:[%s2760] sm:$0x1]
        %v2763 = vlaneseq
        %v2764 = vshrl.u32 %v2763, 7
        %v2765 = vsub.s32 0, %v2764
        %v2766 = vrot.slane %v2761, %v2765
        %v2769 = vsel %vm601, %v2754, 0
        %2771 = vmatprep.subr.mxu0 0.0
        %2772 = vmatpush1.msra.mxu0 0.0
        %2773 = vmatprep.subr.mxu0 0.0
        %2774 = vmatpush1.msra.mxu0 0.0
        %2775 = vmatprep.subr.mxu0 0.0
        %2776 = vmatpush1.msra.mxu0 0.0
        %2777 = vmatprep.subr.mxu0 0.0
        %2778 = vmatpush1.msra.mxu0 0.0
        %2779 = vmatprep.subr.mxu0 0.0
        %2780 = vmatpush1.msra.mxu0 0.0
        %2781 = vmatprep.subr.mxu0 0.0
        %2782 = vmatpush1.msra.mxu0 0.0
        %2783 = vmatprep.subr.mxu0 0.0
        %2784 = vmatpush1.msra.mxu0 0.0
        %2785 = vmatprep.subr.mxu0 0.0
        %2786 = vmatpush1.msra.mxu0 0.0
        %2787 = vmatprep.subr.mxu0 0.0
        %2788 = vmatpush1.msra.mxu0 0.0
        %2789 = vmatprep.subr.mxu0 0.0
        %2790 = vmatpush1.msra.mxu0 0.0
        %2791 = vmatprep.subr.mxu0 0.0
        %2792 = vmatpush1.msra.mxu0 0.0
        %2793 = vmatprep.subr.mxu0 0.0
        %2794 = vmatpush1.msra.mxu0 0.0
        %2795 = vmatprep.subr.mxu0 0.0
        %2796 = vmatpush1.msra.mxu0 %v2759
        %2797 = vmatprep.subr.mxu0 0.0
        %2798 = vmatpush1.msra.mxu0 %v2758
        %2799 = vmatprep.subr.mxu0 0.0
        %2800 = vmatpush1.msra.mxu0 %v2757
        %2801 = vmatprep.subr.mxu0 0.0
        %2802 = vmatpush1.msra.mxu0 %v2756
        %2803 = vmatprep.subr.mxu0 0.0
        %2804 = vmatpush2.msra.mxu0 0.0
        %2805 = vmatprep.subr.mxu0 0.0
        %2806 = vmatpush2.msra.mxu0 0.0
        %2807 = vmatprep.subr.mxu0 0.0
        %2808 = vmatpush2.msra.mxu0 0.0
        %2809 = vmatprep.subr.mxu0 0.0
        %2810 = vmatpush2.msra.mxu0 0.0
        %2811 = vmatprep.subr.mxu0 0.0
        %2812 = vmatpush2.msra.mxu0 0.0
        %2813 = vmatprep.subr.mxu0 0.0
        %2814 = vmatpush2.msra.mxu0 0.0
        %2815 = vmatprep.subr.mxu0 0.0
        %2816 = vmatpush2.msra.mxu0 0.0
        %2817 = vmatprep.subr.mxu0 0.0
        %2818 = vmatpush2.msra.mxu0 0.0
        %2819 = vmatprep.subr.mxu0 0.0
        %2820 = vmatpush2.msra.mxu0 0.0
        %2821 = vmatprep.subr.mxu0 0.0
        %2822 = vmatpush2.msra.mxu0 0.0
        %2823 = vmatprep.subr.mxu0 0.0
        %2824 = vmatpush2.msra.mxu0 0.0
        %2825 = vmatprep.subr.mxu0 0.0
        %2826 = vmatpush2.msra.mxu0 0.0
        %2827 = vmatprep.subr.mxu0 0.0
        %2828 = vmatpush2.msra.mxu0 0.0
        %2829 = vmatprep.subr.mxu0 0.0
        %2830 = vmatpush2.msra.mxu0 0.0
        %2831 = vmatprep.subr.mxu0 0.0
        %2832 = vmatpush2.msra.mxu0 0.0
        %2833 = vmatprep.subr.mxu0 0.0
        %2834 = vmatpush2.msra.mxu0 0.0
        %2835 = vmatprep.mubr.f32.mxu0 0.0
        %2836 = vmatmul.mubr.f32.gmra.mxu0 %v2769
        %v2837 = vpop.f32.mrf.mxu0
        %v2838 = vadd.f32 %v2766, %v2837
        %v2839 = vpop.f32.mrf.mxu0
        %2840 = vdwg.mxu0
        %v2841 = vadd.f32 %v1863, %v2838
        %s2842 = scalar_lea.vmem %s8, 1
        %v2843 = vld [vmem:[%s2842] sm:$0x1]
        %s2844 = scalar_lea.vmem %s9, 1
        %v2845 = vld [vmem:[%s2844] sm:$0x1]
        %v2846 = vsel %vm601, %v2841, 0.0
        %2847 = vadd.xlane.f32.xlu0 %v2846
        %v2848 = vpop.xlane.xlu0 %2847
        %v2849 = vmul.f32 %v2848, %v605
        %v2850 = vmul.f32 %v2841, %v2841
        %v2851 = vsel %vm601, %v2850, 0.0
        %2852 = vadd.xlane.f32.xlu0 %v2851
        %v2853 = vpop.xlane.xlu0 %2852
        %v2854 = vmul.f32 %v2853, %v605
        %v2855 = vmul.f32 %v2849, %v2849
        %v2856 = vsub.f32 %v2854, %v2855
        %v2857 = vsub.f32 %v2841, %v2849
        %v2858 = vadd.f32 %v2856, 1e-07
        %v2859 = vrsqrt.pop %v2858
        %v2860 = vmul.f32 %v2857, %v2859
        %v2862 = vlaneseq
        %v2863 = vshrl.u32 %v2862, 7
        %v2864 = vsub.s32 0, %v2863
        %v2865 = vrot.slane %v2843, %v2864
        %v2867 = vmul.f32 %v2860, %v2865
        %v2869 = vlaneseq
        %v2870 = vshrl.u32 %v2869, 7
        %v2871 = vsub.s32 0, %v2870
        %v2872 = vrot.slane %v2845, %v2871
        %v2874 = vadd.f32 %v2867, %v2872
        %s2875 = scalar_lea.vmem %s10, 32
        %v2876 = vld [vmem:[%s2875] sm:$0xff]
        %v2877 = vld [vmem:[%s2875 + $0x8] sm:$0xff]
        %v2878 = vld [vmem:[%s2875 + $0x10] sm:$0xff]
        %v2879 = vld [vmem:[%s2875 + $0x18] sm:$0xff]
        %s2880 = scalar_lea.vmem %s11, 1
        %v2881 = vld [vmem:[%s2880] sm:$0x1]
        %v2883 = vlaneseq
        %v2884 = vshrl.u32 %v2883, 7
        %v2885 = vsub.s32 0, %v2884
        %v2886 = vrot.slane %v2881, %v2885
        %v2889 = vsel %vm601, %v2874, 0
        %2891 = vmatprep.subr.mxu0 0.0
        %2892 = vmatpush1.msra.mxu0 0.0
        %2893 = vmatprep.subr.mxu0 0.0
        %2894 = vmatpush1.msra.mxu0 0.0
        %2895 = vmatprep.subr.mxu0 0.0
        %2896 = vmatpush1.msra.mxu0 0.0
        %2897 = vmatprep.subr.mxu0 0.0
        %2898 = vmatpush1.msra.mxu0 0.0
        %2899 = vmatprep.subr.mxu0 0.0
        %2900 = vmatpush1.msra.mxu0 0.0
        %2901 = vmatprep.subr.mxu0 0.0
        %2902 = vmatpush1.msra.mxu0 0.0
        %2903 = vmatprep.subr.mxu0 0.0
        %2904 = vmatpush1.msra.mxu0 0.0
        %2905 = vmatprep.subr.mxu0 0.0
        %2906 = vmatpush1.msra.mxu0 0.0
        %2907 = vmatprep.subr.mxu0 0.0
        %2908 = vmatpush1.msra.mxu0 0.0
        %2909 = vmatprep.subr.mxu0 0.0
        %2910 = vmatpush1.msra.mxu0 0.0
        %2911 = vmatprep.subr.mxu0 0.0
        %2912 = vmatpush1.msra.mxu0 0.0
        %2913 = vmatprep.subr.mxu0 0.0
        %2914 = vmatpush1.msra.mxu0 0.0
        %2915 = vmatprep.subr.mxu0 0.0
        %2916 = vmatpush1.msra.mxu0 %v2879
        %2917 = vmatprep.subr.mxu0 0.0
        %2918 = vmatpush1.msra.mxu0 %v2878
        %2919 = vmatprep.subr.mxu0 0.0
        %2920 = vmatpush1.msra.mxu0 %v2877
        %2921 = vmatprep.subr.mxu0 0.0
        %2922 = vmatpush1.msra.mxu0 %v2876
        %2923 = vmatprep.subr.mxu0 0.0
        %2924 = vmatpush2.msra.mxu0 0.0
        %2925 = vmatprep.subr.mxu0 0.0
        %2926 = vmatpush2.msra.mxu0 0.0
        %2927 = vmatprep.subr.mxu0 0.0
        %2928 = vmatpush2.msra.mxu0 0.0
        %2929 = vmatprep.subr.mxu0 0.0
        %2930 = vmatpush2.msra.mxu0 0.0
        %2931 = vmatprep.subr.mxu0 0.0
        %2932 = vmatpush2.msra.mxu0 0.0
        %2933 = vmatprep.subr.mxu0 0.0
        %2934 = vmatpush2.msra.mxu0 0.0
        %2935 = vmatprep.subr.mxu0 0.0
        %2936 = vmatpush2.msra.mxu0 0.0
        %2937 = vmatprep.subr.mxu0 0.0
        %2938 = vmatpush2.msra.mxu0 0.0
        %2939 = vmatprep.subr.mxu0 0.0
        %2940 = vmatpush2.msra.mxu0 0.0
        %2941 = vmatprep.subr.mxu0 0.0
        %2942 = vmatpush2.msra.mxu0 0.0
        %2943 = vmatprep.subr.mxu0 0.0
        %2944 = vmatpush2.msra.mxu0 0.0
        %2945 = vmatprep.subr.mxu0 0.0
        %2946 = vmatpush2.msra.mxu0 0.0
        %2947 = vmatprep.subr.mxu0 0.0
        %2948 = vmatpush2.msra.mxu0 0.0
        %2949 = vmatprep.subr.mxu0 0.0
        %2950 = vmatpush2.msra.mxu0 0.0
        %2951 = vmatprep.subr.mxu0 0.0
        %2952 = vmatpush2.msra.mxu0 0.0
        %2953 = vmatprep.subr.mxu0 0.0
        %2954 = vmatpush2.msra.mxu0 0.0
        %2955 = vmatprep.mubr.f32.mxu0 0.0
        %2956 = vmatmul.mubr.f32.gmra.mxu0 %v2889
        %v2957 = vpop.f32.mrf.mxu0
        %v2958 = vadd.f32 %v2886, %v2957
        %v2959 = vpop.f32.mrf.mxu0
        %2960 = vdwg.mxu0
        %v2961 = vmul.f32 %v2958, %v2958
        %v2962 = vmul.f32 %v2958, %v2961
        %v2963 = vmul.f32 %v2962, 0.044715
        %v2964 = vadd.f32 %v2958, %v2963
        %v2965 = vmul.f32 %v2964, 0.7978846
        %v2966 = vtanh.pop %v2965
        %v2967 = vadd.f32 %v2966, 1.0
        %v2968 = vmul.f32 %v2967, 0.5
        %v2969 = vmul.f32 %v2958, %v2968
        %s2970 = scalar_lea.vmem %s12, 128
        %v2971 = vld [vmem:[%s2970] sm:$0xff]
        %v2972 = vld [vmem:[%s2970 + $0x8] sm:$0xff]
        %v2973 = vld [vmem:[%s2970 + $0x10] sm:$0xff]
        %v2974 = vld [vmem:[%s2970 + $0x18] sm:$0xff]
        %v2975 = vld [vmem:[%s2970 + $0x20] sm:$0xff]
        %v2976 = vld [vmem:[%s2970 + $0x28] sm:$0xff]
        %v2977 = vld [vmem:[%s2970 + $0x30] sm:$0xff]
        %v2978 = vld [vmem:[%s2970 + $0x38] sm:$0xff]
        %v2979 = vld [vmem:[%s2970 + $0x40] sm:$0xff]
        %v2980 = vld [vmem:[%s2970 + $0x48] sm:$0xff]
        %v2981 = vld [vmem:[%s2970 + $0x50] sm:$0xff]
        %v2982 = vld [vmem:[%s2970 + $0x58] sm:$0xff]
        %v2983 = vld [vmem:[%s2970 + $0x60] sm:$0xff]
        %v2984 = vld [vmem:[%s2970 + $0x68] sm:$0xff]
        %v2985 = vld [vmem:[%s2970 + $0x70] sm:$0xff]
        %v2986 = vld [vmem:[%s2970 + $0x78] sm:$0xff]
        %s2987 = scalar_lea.vmem %s13, 1
        %v2988 = vld [vmem:[%s2987] sm:$0x1]
        %v2990 = vlaneseq
        %v2991 = vshrl.u32 %v2990, 7
        %v2992 = vsub.s32 0, %v2991
        %v2993 = vrot.slane %v2988, %v2992
        %2995 = vmatprep.subr.mxu0 0.0
        %2996 = vmatpush1.msra.mxu0 %v2986
        %2997 = vmatprep.subr.mxu0 0.0
        %2998 = vmatpush1.msra.mxu0 %v2985
        %2999 = vmatprep.subr.mxu0 0.0
        %3000 = vmatpush1.msra.mxu0 %v2984
        %3001 = vmatprep.subr.mxu0 0.0
        %3002 = vmatpush1.msra.mxu0 %v2983
        %3003 = vmatprep.subr.mxu0 0.0
        %3004 = vmatpush1.msra.mxu0 %v2982
        %3005 = vmatprep.subr.mxu0 0.0
        %3006 = vmatpush1.msra.mxu0 %v2981
        %3007 = vmatprep.subr.mxu0 0.0
        %3008 = vmatpush1.msra.mxu0 %v2980
        %3009 = vmatprep.subr.mxu0 0.0
        %3010 = vmatpush1.msra.mxu0 %v2979
        %3011 = vmatprep.subr.mxu0 0.0
        %3012 = vmatpush1.msra.mxu0 %v2978
        %3013 = vmatprep.subr.mxu0 0.0
        %3014 = vmatpush1.msra.mxu0 %v2977
        %3015 = vmatprep.subr.mxu0 0.0
        %3016 = vmatpush1.msra.mxu0 %v2976
        %3017 = vmatprep.subr.mxu0 0.0
        %3018 = vmatpush1.msra.mxu0 %v2975
        %3019 = vmatprep.subr.mxu0 0.0
        %3020 = vmatpush1.msra.mxu0 %v2974
        %3021 = vmatprep.subr.mxu0 0.0
        %3022 = vmatpush1.msra.mxu0 %v2973
        %3023 = vmatprep.subr.mxu0 0.0
        %3024 = vmatpush1.msra.mxu0 %v2972
        %3025 = vmatprep.subr.mxu0 0.0
        %3026 = vmatpush1.msra.mxu0 %v2971
        %3027 = vmatprep.subr.mxu0 0.0
        %3028 = vmatpush2.msra.mxu0 0.0
        %3029 = vmatprep.subr.mxu0 0.0
        %3030 = vmatpush2.msra.mxu0 0.0
        %3031 = vmatprep.subr.mxu0 0.0
        %3032 = vmatpush2.msra.mxu0 0.0
        %3033 = vmatprep.subr.mxu0 0.0
        %3034 = vmatpush2.msra.mxu0 0.0
        %3035 = vmatprep.subr.mxu0 0.0
        %3036 = vmatpush2.msra.mxu0 0.0
        %3037 = vmatprep.subr.mxu0 0.0
        %3038 = vmatpush2.msra.mxu0 0.0
        %3039 = vmatprep.subr.mxu0 0.0
        %3040 = vmatpush2.msra.mxu0 0.0
        %3041 = vmatprep.subr.mxu0 0.0
        %3042 = vmatpush2.msra.mxu0 0.0
        %3043 = vmatprep.subr.mxu0 0.0
        %3044 = vmatpush2.msra.mxu0 0.0
        %3045 = vmatprep.subr.mxu0 0.0
        %3046 = vmatpush2.msra.mxu0 0.0
        %3047 = vmatprep.subr.mxu0 0.0
        %3048 = vmatpush2.msra.mxu0 0.0
        %3049 = vmatprep.subr.mxu0 0.0
        %3050 = vmatpush2.msra.mxu0 0.0
        %3051 = vmatprep.subr.mxu0 0.0
        %3052 = vmatpush2.msra.mxu0 0.0
        %3053 = vmatprep.subr.mxu0 0.0
        %3054 = vmatpush2.msra.mxu0 0.0
        %3055 = vmatprep.subr.mxu0 0.0
        %3056 = vmatpush2.msra.mxu0 0.0
        %3057 = vmatprep.subr.mxu0 0.0
        %3058 = vmatpush2.msra.mxu0 0.0
        %3059 = vmatprep.mubr.f32.mxu0 0.0
        %3060 = vmatmul.mubr.f32.gmra.mxu0 %v2969
        %v3061 = vpop.f32.mrf.mxu0
        %v3062 = vadd.f32 %v2993, %v3061
        %v3063 = vpop.f32.mrf.mxu0
        %3064 = vdwg.mxu0
        %v3065 = vadd.f32 %v2874, %v3062
        %s3066 = scalar_lea.vmem %s14, 1
        %v3067 = vld [vmem:[%s3066] sm:$0x1]
        %s3068 = scalar_lea.vmem %s15, 1
        %v3069 = vld [vmem:[%s3068] sm:$0x1]
        %v3070 = vsel %vm601, %v3065, 0.0
        %3071 = vadd.xlane.f32.xlu0 %v3070
        %v3072 = vpop.xlane.xlu0 %3071
        %v3073 = vmul.f32 %v3072, %v605
        %v3074 = vmul.f32 %v3065, %v3065
        %v3075 = vsel %vm601, %v3074, 0.0
        %3076 = vadd.xlane.f32.xlu0 %v3075
        %v3077 = vpop.xlane.xlu0 %3076
        %v3078 = vmul.f32 %v3077, %v605
        %v3079 = vmul.f32 %v3073, %v3073
        %v3080 = vsub.f32 %v3078, %v3079
        %v3081 = vsub.f32 %v3065, %v3073
        %v3082 = vadd.f32 %v3080, 1e-07
        %v3083 = vrsqrt.pop %v3082
        %v3084 = vmul.f32 %v3081, %v3083
        %v3086 = vlaneseq
        %v3087 = vshrl.u32 %v3086, 7
        %v3088 = vsub.s32 0, %v3087
        %v3089 = vrot.slane %v3067, %v3088
        %v3091 = vmul.f32 %v3084, %v3089
        %v3093 = vlaneseq
        %v3094 = vshrl.u32 %v3093, 7
        %v3095 = vsub.s32 0, %v3094
        %v3096 = vrot.slane %v3069, %v3095
        %v3098 = vadd.f32 %v3091, %v3096
        %v3099 = vld [vmem:[%s16] sm:$0xff]
        %v3100 = vld [vmem:[%s16 + $0x8] sm:$0xff]
        %v3101 = vld [vmem:[%s16 + $0x10] sm:$0xff]
        %v3102 = vld [vmem:[%s16 + $0x18] sm:$0xff]
        %v3103 = vld [vmem:[%s17] sm:$0x1]
        %v3105 = vsel %vm601, %v3098, 0
        %3107 = vmatprep.subr.mxu0 0.0
        %3108 = vmatpush1.msra.mxu0 0.0
        %3109 = vmatprep.subr.mxu0 0.0
        %3110 = vmatpush1.msra.mxu0 0.0
        %3111 = vmatprep.subr.mxu0 0.0
        %3112 = vmatpush1.msra.mxu0 0.0
        %3113 = vmatprep.subr.mxu0 0.0
        %3114 = vmatpush1.msra.mxu0 0.0
        %3115 = vmatprep.subr.mxu0 0.0
        %3116 = vmatpush1.msra.mxu0 0.0
        %3117 = vmatprep.subr.mxu0 0.0
        %3118 = vmatpush1.msra.mxu0 0.0
        %3119 = vmatprep.subr.mxu0 0.0
        %3120 = vmatpush1.msra.mxu0 0.0
        %3121 = vmatprep.subr.mxu0 0.0
        %3122 = vmatpush1.msra.mxu0 0.0
        %3123 = vmatprep.subr.mxu0 0.0
        %3124 = vmatpush1.msra.mxu0 0.0
        %3125 = vmatprep.subr.mxu0 0.0
        %3126 = vmatpush1.msra.mxu0 0.0
        %3127 = vmatprep.subr.mxu0 0.0
        %3128 = vmatpush1.msra.mxu0 0.0
        %3129 = vmatprep.subr.mxu0 0.0
        %3130 = vmatpush1.msra.mxu0 0.0
        %3131 = vmatprep.subr.mxu0 0.0
        %3132 = vmatpush1.msra.mxu0 %v3102
        %3133 = vmatprep.subr.mxu0 0.0
        %3134 = vmatpush1.msra.mxu0 %v3101
        %3135 = vmatprep.subr.mxu0 0.0
        %3136 = vmatpush1.msra.mxu0 %v3100
        %3137 = vmatprep.subr.mxu0 0.0
        %3138 = vmatpush1.msra.mxu0 %v3099
        %3139 = vmatprep.subr.mxu0 0.0
        %3140 = vmatpush2.msra.mxu0 0.0
        %3141 = vmatprep.subr.mxu0 0.0
        %3142 = vmatpush2.msra.mxu0 0.0
        %3143 = vmatprep.subr.mxu0 0.0
        %3144 = vmatpush2.msra.mxu0 0.0
        %3145 = vmatprep.subr.mxu0 0.0
        %3146 = vmatpush2.msra.mxu0 0.0
        %3147 = vmatprep.subr.mxu0 0.0
        %3148 = vmatpush2.msra.mxu0 0.0
        %3149 = vmatprep.subr.mxu0 0.0
        %3150 = vmatpush2.msra.mxu0 0.0
        %3151 = vmatprep.subr.mxu0 0.0
        %3152 = vmatpush2.msra.mxu0 0.0
        %3153 = vmatprep.subr.mxu0 0.0
        %3154 = vmatpush2.msra.mxu0 0.0
        %3155 = vmatprep.subr.mxu0 0.0
        %3156 = vmatpush2.msra.mxu0 0.0
        %3157 = vmatprep.subr.mxu0 0.0
        %3158 = vmatpush2.msra.mxu0 0.0
        %3159 = vmatprep.subr.mxu0 0.0
        %3160 = vmatpush2.msra.mxu0 0.0
        %3161 = vmatprep.subr.mxu0 0.0
        %3162 = vmatpush2.msra.mxu0 0.0
        %3163 = vmatprep.subr.mxu0 0.0
        %3164 = vmatpush2.msra.mxu0 0.0
        %3165 = vmatprep.subr.mxu0 0.0
        %3166 = vmatpush2.msra.mxu0 0.0
        %3167 = vmatprep.subr.mxu0 0.0
        %3168 = vmatpush2.msra.mxu0 0.0
        %3169 = vmatprep.subr.mxu0 0.0
        %3170 = vmatpush2.msra.mxu0 0.0
        %3171 = vmatprep.mubr.f32.mxu0 0.0
        %3172 = vmatmul.mubr.f32.gmra.mxu0 %v3105
        %v3173 = vpop.f32.mrf.mxu0
        %v3174 = vadd.f32 %v3103, %v3173
        %v3175 = vpop.f32.mrf.mxu0
        %3176 = vdwg.mxu0
        %3177 = vst [vmem:[%s597] sm:$0x1] %v3174
        %p3178 = scmp.lt.s32.totalorder %s30, 1
        %s3179 = scalar_select %p3178, %s30, 1
        %s3180 = scalar_lea.vmem %s18, %s3179
        // Predicated region
        $region97: #{forward.1} parent=91 // pred_check
          %p3181 = pneg %p436
        $region98: #{forward.1} parent=91 // pred_check_branch
          %3183 = sbr.rel (%p3181) target = $region100
        $region99: #{forward.1} parent=91 // pred_region
          _
        $region100: #{forward.1} parent=91 // pred_fallthru
          _
      $region92: #{forward.1} parent=5 // pred_fallthru
        _
      %p3184 = scmp.le.s32.totalorder 2, %s25
      // Predicated region
      $region101: #{forward.1} parent=5 // pred_check
        %p3185 = pneg %p3184
      $region102: #{forward.1} parent=5 // pred_check_branch
        %3187 = sbr.rel (%p3185) target = $region104
      $region103: #{forward.1} parent=5 // pred_region
        %s3188 = ssub.s32 %s25, 2
        // Predicated region
        $region105: #{forward.1} parent=103 // pred_check
          %p3189 = pneg %p442
        $region106: #{forward.1} parent=103 // pred_check_branch
          %3191 = sbr.rel (%p3189) target = $region108
        $region107: #{forward.1} parent=103 // pred_region
          %p3192 = scmp.lt.s32.totalorder %s31, 1
          %s3193 = scalar_select %p3192, %s31, 1
          %s3194 = scalar_lea.vmem %s18, %s3193
        $region108: #{forward.1} parent=103 // pred_fallthru
          _
      $region104: #{forward.1} parent=5 // pred_fallthru
        _
    $region6: #{forward.1} parent=1 // loop_footer
      %s29 = sadd.s32 1, %s25
    $region7: #{forward.1} parent=1 // loop_footer_branch
      %24 = sbr.rel target = $region3
    $region8: #{forward.1} parent=1 // loop_exit
      _
    %3195 = vsyncpa [#allocation3], 1
    %s3196 = scalar_lea.sflag [#allocation3], 1
    %3197 = vsyncpa %s3196, 1

</llo_original>
